<compile_context>
chip_gen: v5e
topology: v5e:2x2
jax: 0.10.0
libtpu: 0.0.40
codegen_flags: <defaults>
</compile_context>

<pallas_src>
import jax
import jax.numpy as jnp
from jax.experimental import pallas as pl
from jax.experimental.pallas import tpu as pltpu

KH = KW = 3  # en_lstm kernel_size = (3, 3), "same" padding


# ----------------------------------------------------------------------------
# Kernel 1: input-side gate conv (x part of conv([x, h])) + bias, one frame per
# grid step, fully parallel over B*T.  3x3 "same" conv done as a single im2col
# matmul (M = H*W, K = 9*Cin, N = 4*Ch) on the MXU with bf16 inputs / f32 acc.
# ----------------------------------------------------------------------------
def _xgates_kernel(xpad_ref, wx_ref, b_ref, out_ref):
    # xpad_ref: (H+2, W+2, Cin) bf16   zero-padded input frame
    # wx_ref  : (9*Cin, 4*Ch)   bf16   x-side conv weights, im2col packed
    # b_ref   : (1, 4*Ch)       f32    gate bias
    # out_ref : (H*W, 4*Ch)     f32    conv_x(x_t) + bias
    Hp, Wp, Cin = xpad_ref.shape
    H, W = Hp - 2, Wp - 2
    wins = [xpad_ref[dy:dy + H, dx:dx + W, :]
            for dy in range(KH) for dx in range(KW)]
    patch = jnp.concatenate(wins, axis=-1).reshape(H * W, KH * KW * Cin)
    out_ref[...] = jnp.dot(patch, wx_ref[...],
                           preferred_element_type=jnp.float32) + b_ref[...]


# ----------------------------------------------------------------------------
# Kernel 2: the recurrence.  grid=(B, T) with T sequential ("arbitrary").
# h (zero-padded, bf16) lives in VMEM scratch across all T steps; the c state
# accumulates directly in the revisited c_out block (no extra scratch / extra
# store).  The h-side conv is one big im2col matmul (K = 9*Ch) per step; gates
# are computed on a lane-dense (H*W, 4*Ch) accumulator.
# ----------------------------------------------------------------------------
def _recurrent_kernel(xg_ref, wh_ref, h_out_ref, c_out_ref, hpad_ref):
    # xg_ref   : (H*W, 4*Ch)   f32   precomputed conv_x(x_t) + bias
    # wh_ref   : (9*Ch, 4*Ch)  bf16  h-side conv weights (VMEM-resident)
    # h_out_ref: (H*W, Ch)     f32   layer output h_t
    # c_out_ref: (H*W, Ch)     f32   same block across t -> carries the c state
    # hpad_ref : (H+2, W+2, Ch) bf16 scratch: zero-padded h state
    t = pl.program_id(1)
    HW, Ch = h_out_ref.shape
    Hp, Wp, _ = hpad_ref.shape
    H, W = Hp - 2, Wp - 2

    @pl.when(t == 0)
    def _init():
        hpad_ref[...] = jnp.zeros_like(hpad_ref)
        c_out_ref[...] = jnp.zeros_like(c_out_ref)

    # im2col of the padded previous hidden state -> one big MXU matmul
    # (single large-K matmul keeps the accumulation inside the MXU instead of
    # 9 small matmuls with a spilled f32 accumulator).
    wins = [hpad_ref[dy:dy + H, dx:dx + W, :]
            for dy in range(KH) for dx in range(KW)]
    patch = jnp.concatenate(wins, axis=-1).reshape(HW, KH * KW * Ch)

    gates = xg_ref[...] + jnp.dot(patch, wh_ref[...],
                                  preferred_element_type=jnp.float32)

    # gate splits fall on 128-lane boundaries when Ch is a multiple of 128
    # (true for the real module: hidden_dim = 128).
    i_g = jax.nn.sigmoid(gates[:, 0 * Ch:1 * Ch])
    f_g = jax.nn.sigmoid(gates[:, 1 * Ch:2 * Ch])
    o_g = jax.nn.sigmoid(gates[:, 2 * Ch:3 * Ch])
    g_g = jnp.tanh(gates[:, 3 * Ch:4 * Ch])

    c_next = f_g * c_out_ref[...] + i_g * g_g
    h_next = o_g * jnp.tanh(c_next)

    c_out_ref[...] = c_next
    h_out_ref[...] = h_next

    # Carry h: only the interior rows of the zero-padded scratch are rewritten
    # (the border rows stay zero from the t==0 init); a single sublane-axis
    # concat adds the two zero columns.  h is stored bf16 (MXU input dtype).
    h3 = h_next.astype(jnp.bfloat16).reshape(H, W, Ch)
    zcol = jnp.zeros((H, 1, Ch), jnp.bfloat16)
    hpad_ref[1:H + 1, :, :] = jnp.concatenate([zcol, h3, zcol], axis=1)


# ----------------------------------------------------------------------------
# Public wrapper: ConvLSTM (num_layers=1, batch_first=True), zero init state.
# ----------------------------------------------------------------------------
def convlstm_forward(x_btchw, w_oihw, bias):
    """x_btchw: (B, T, Cin, H, W); w_oihw: (4*Ch, Cin+Ch, 3, 3); bias: (4*Ch,).

    Returns ([layer_output (B,T,Ch,H,W)], [(h_last, c_last)]) in PyTorch layout,
    matching ConvLSTM.forward with hidden_state=None (zero init).
    """
    B, T, Cin, H, W = x_btchw.shape
    Ch = w_oihw.shape[0] // 4
    HW = H * W

    # Split the gate conv into x-side / h-side and pack for im2col matmuls:
    # (KH, KW, I, O) row-major -> (9*I, O).  bf16 weights for the MXU.
    w_x = jnp.transpose(w_oihw[:, :Cin], (2, 3, 1, 0)).reshape(
        KH * KW * Cin, 4 * Ch).astype(jnp.bfloat16)
    w_h = jnp.transpose(w_oihw[:, Cin:], (2, 3, 1, 0)).reshape(
        KH * KW * Ch, 4 * Ch).astype(jnp.bfloat16)
    b2d = bias.reshape(1, 4 * Ch).astype(jnp.float32)

    # NCHW -> NHWC, flatten (B,T); the x-side conv is independent of the
    # recurrence, so it runs once as a fully parallel batched matmul.
    x = jnp.transpose(x_btchw, (0, 1, 3, 4, 2)).reshape(B * T, H, W, Cin)
    xpad = jnp.pad(x, ((0, 0), (1, 1), (1, 1), (0, 0))).astype(jnp.bfloat16)

    xg = pl.pallas_call(
        _xgates_kernel,
        out_shape=jax.ShapeDtypeStruct((B * T, HW, 4 * Ch), jnp.float32),
        grid=(B * T,),
        in_specs=[
            pl.BlockSpec((None, H + 2, W + 2, Cin), lambda n: (n, 0, 0, 0)),
            pl.BlockSpec((KH * KW * Cin, 4 * Ch), lambda n: (0, 0)),
            pl.BlockSpec((1, 4 * Ch), lambda n: (0, 0)),
        ],
        out_specs=pl.BlockSpec((None, HW, 4 * Ch), lambda n: (n, 0, 0)),
        compiler_params=pltpu.CompilerParams(
            dimension_semantics=("parallel",),
            vmem_limit_bytes=64 * 1024 * 1024),
    )(xpad, w_x, b2d)
    xg = xg.reshape(B, T, HW, 4 * Ch)

    # Recurrence: single pallas_call, grid=(B, T).  B is "parallel" (megacore
    # sharding on v7x); T is "arbitrary" because h/c carry across it in VMEM.
    layer_hw, c_last_hw = pl.pallas_call(
        _recurrent_kernel,
        out_shape=(jax.ShapeDtypeStruct((B, T, HW, Ch), jnp.float32),
                   jax.ShapeDtypeStruct((B, HW, Ch), jnp.float32)),
        grid=(B, T),
        in_specs=[
            pl.BlockSpec((None, None, HW, 4 * Ch), lambda b, t: (b, t, 0, 0)),
            pl.BlockSpec((KH * KW * Ch, 4 * Ch), lambda b, t: (0, 0)),
        ],
        out_specs=(
            pl.BlockSpec((None, None, HW, Ch), lambda b, t: (b, t, 0, 0)),
            pl.BlockSpec((None, HW, Ch), lambda b, t: (b, 0, 0)),
        ),
        scratch_shapes=[
            pltpu.VMEM((H + 2, W + 2, Ch), jnp.bfloat16),   # padded h state
        ],
        compiler_params=pltpu.CompilerParams(
            dimension_semantics=("parallel", "arbitrary"),
            vmem_limit_bytes=64 * 1024 * 1024),
    )(xg, w_h)

    layer_out = layer_hw.reshape(B, T, H, W, Ch)
    layer_out_nchw = jnp.transpose(layer_out, (0, 1, 4, 2, 3))
    h_last_nchw = layer_out_nchw[:, -1]
    c_last_nchw = jnp.transpose(c_last_hw.reshape(B, H, W, Ch), (0, 3, 1, 2))
    return [layer_out_nchw], [(h_last_nchw, c_last_nchw)]


# ----------------------------------------------------------------------------
# Pure-JAX reference (mirrors the PyTorch ConvLSTMCell / ConvLSTM exactly, f32)
# ----------------------------------------------------------------------------
def convlstm_ref(x_btchw, w_oihw, bias):
    B, T, Cin, H, W = x_btchw.shape
    Ch = w_oihw.shape[0] // 4
    h = jnp.zeros((B, Ch, H, W), jnp.float32)
    c = jnp.zeros((B, Ch, H, W), jnp.float32)
    outs = []
    for t in range(T):
        comb = jnp.concatenate([x_btchw[:, t], h], axis=1)
        conv = jax.lax.conv_general_dilated(
            comb, w_oihw, window_strides=(1, 1), padding="SAME",
            dimension_numbers=("NCHW", "OIHW", "NCHW"))
        conv = conv + bias.reshape(1, -1, 1, 1)
        cc_i, cc_f, cc_o, cc_g = jnp.split(conv, 4, axis=1)
        i = jax.nn.sigmoid(cc_i)
        f = jax.nn.sigmoid(cc_f)
        o = jax.nn.sigmoid(cc_o)
        g = jnp.tanh(cc_g)
        c = f * c + i * g
        h = o * jnp.tanh(c)
        outs.append(h)
    return jnp.stack(outs, axis=1), h, c


if __name__ == "__main__":
    key = jax.random.PRNGKey(0)
    k_x, k_w, k_b = jax.random.split(key, 3)

    # Small shapes consistent with en_lstm (hidden_dim=128 as in the module,
    # scaled-down Cin / spatial / seq): (B, T, Cin, H, W)
    B, T, Cin, H, W = 2, 4, 32, 16, 16
    Chid = 128
    Ctot = Cin + Chid

    x = jax.random.normal(k_x, (B, T, Cin, H, W), jnp.float32)

    # deterministic Conv2d-style init (uniform +- 1/sqrt(fan_in)), OIHW layout
    fan_in = Ctot * KH * KW
    bound = 1.0 / float(fan_in) ** 0.5
    w_oihw = jax.random.uniform(k_w, (4 * Chid, Ctot, KH, KW), jnp.float32,
                                minval=-bound, maxval=bound)
    bias = jax.random.uniform(k_b, (4 * Chid,), jnp.float32,
                              minval=-bound, maxval=bound)

    layer_outputs, last_states = convlstm_forward(x, w_oihw, bias)
    out = jax.block_until_ready(layer_outputs[0])
    h_last = jax.block_until_ready(last_states[0][0])
    c_last = jax.block_until_ready(last_states[0][1])

    # correctness check against the pure-JAX f32 reference (bf16 MXU inputs ->
    # slightly relaxed tolerance)
    ref_out, ref_h, ref_c = convlstm_ref(x, w_oihw, bias)
    assert out.shape == (B, T, Chid, H, W)
    assert jnp.allclose(out, ref_out, rtol=2e-2, atol=2e-2)
    assert jnp.allclose(h_last, ref_h, rtol=2e-2, atol=2e-2)
    assert jnp.allclose(c_last, ref_c, rtol=2e-2, atol=2e-2)

    print("KERNEL_OK")
</pallas_src>

<mosaic_0001>
module attributes {stable_mosaic.version = 11 : i64} {
  func.func @_xgates_kernel(%arg0: i32, %arg1: memref<1x18x18x32xbf16, #tpu.memory_space<vmem>>, %arg2: memref<288x512xbf16, #tpu.memory_space<vmem>>, %arg3: memref<1x512xf32, #tpu.memory_space<vmem>>, %arg4: memref<1x256x512xf32, #tpu.memory_space<vmem>>) attributes {dimension_semantics = [#tpu.dimension_semantics<parallel>], iteration_bounds = array<i64: 8>, scalar_prefetch = 0 : i64, scratch_operands = 0 : i64, tpu.core_type = #tpu.core_type<tc>, window_params = [{transform_indices = @transform_0, window_bounds = array<i64: 1, 18, 18, 32>}, {pipeline_mode = #tpu.pipeline_mode<synchronous>, transform_indices = @transform_1, window_bounds = array<i64: 288, 512>}, {pipeline_mode = #tpu.pipeline_mode<synchronous>, transform_indices = @transform_2, window_bounds = array<i64: 1, 512>}, {transform_indices = @transform_3, window_bounds = array<i64: 1, 256, 512>}]} {
    %c0 = arith.constant 0 : index
    %c0_0 = arith.constant 0 : index
    %c0_1 = arith.constant 0 : index
    %c0_2 = arith.constant 0 : index
    %0 = vector.load %arg1[%c0, %c0_0, %c0_1, %c0_2] : memref<1x18x18x32xbf16, #tpu.memory_space<vmem>>, vector<1x16x16x32xbf16>
    %1 = vector.shape_cast %0 : vector<1x16x16x32xbf16> to vector<16x16x32xbf16>
    %c0_3 = arith.constant 0 : index
    %c0_4 = arith.constant 0 : index
    %c1 = arith.constant 1 : index
    %c0_5 = arith.constant 0 : index
    %2 = vector.load %arg1[%c0_3, %c0_4, %c1, %c0_5] : memref<1x18x18x32xbf16, #tpu.memory_space<vmem>>, vector<1x16x16x32xbf16>
    %3 = vector.shape_cast %2 : vector<1x16x16x32xbf16> to vector<16x16x32xbf16>
    %c0_6 = arith.constant 0 : index
    %c0_7 = arith.constant 0 : index
    %c2 = arith.constant 2 : index
    %c0_8 = arith.constant 0 : index
    %4 = vector.load %arg1[%c0_6, %c0_7, %c2, %c0_8] : memref<1x18x18x32xbf16, #tpu.memory_space<vmem>>, vector<1x16x16x32xbf16>
    %5 = vector.shape_cast %4 : vector<1x16x16x32xbf16> to vector<16x16x32xbf16>
    %c0_9 = arith.constant 0 : index
    %c1_10 = arith.constant 1 : index
    %c0_11 = arith.constant 0 : index
    %c0_12 = arith.constant 0 : index
    %6 = vector.load %arg1[%c0_9, %c1_10, %c0_11, %c0_12] : memref<1x18x18x32xbf16, #tpu.memory_space<vmem>>, vector<1x16x16x32xbf16>
    %7 = vector.shape_cast %6 : vector<1x16x16x32xbf16> to vector<16x16x32xbf16>
    %c0_13 = arith.constant 0 : index
    %c1_14 = arith.constant 1 : index
    %c1_15 = arith.constant 1 : index
    %c0_16 = arith.constant 0 : index
    %8 = vector.load %arg1[%c0_13, %c1_14, %c1_15, %c0_16] : memref<1x18x18x32xbf16, #tpu.memory_space<vmem>>, vector<1x16x16x32xbf16>
    %9 = vector.shape_cast %8 : vector<1x16x16x32xbf16> to vector<16x16x32xbf16>
    %c0_17 = arith.constant 0 : index
    %c1_18 = arith.constant 1 : index
    %c2_19 = arith.constant 2 : index
    %c0_20 = arith.constant 0 : index
    %10 = vector.load %arg1[%c0_17, %c1_18, %c2_19, %c0_20] : memref<1x18x18x32xbf16, #tpu.memory_space<vmem>>, vector<1x16x16x32xbf16>
    %11 = vector.shape_cast %10 : vector<1x16x16x32xbf16> to vector<16x16x32xbf16>
    %c0_21 = arith.constant 0 : index
    %c2_22 = arith.constant 2 : index
    %c0_23 = arith.constant 0 : index
    %c0_24 = arith.constant 0 : index
    %12 = vector.load %arg1[%c0_21, %c2_22, %c0_23, %c0_24] : memref<1x18x18x32xbf16, #tpu.memory_space<vmem>>, vector<1x16x16x32xbf16>
    %13 = vector.shape_cast %12 : vector<1x16x16x32xbf16> to vector<16x16x32xbf16>
    %c0_25 = arith.constant 0 : index
    %c2_26 = arith.constant 2 : index
    %c1_27 = arith.constant 1 : index
    %c0_28 = arith.constant 0 : index
    %14 = vector.load %arg1[%c0_25, %c2_26, %c1_27, %c0_28] : memref<1x18x18x32xbf16, #tpu.memory_space<vmem>>, vector<1x16x16x32xbf16>
    %15 = vector.shape_cast %14 : vector<1x16x16x32xbf16> to vector<16x16x32xbf16>
    %c0_29 = arith.constant 0 : index
    %c2_30 = arith.constant 2 : index
    %c2_31 = arith.constant 2 : index
    %c0_32 = arith.constant 0 : index
    %16 = vector.load %arg1[%c0_29, %c2_30, %c2_31, %c0_32] : memref<1x18x18x32xbf16, #tpu.memory_space<vmem>>, vector<1x16x16x32xbf16>
    %17 = vector.shape_cast %16 : vector<1x16x16x32xbf16> to vector<16x16x32xbf16>
    %18 = tpu.concatenate %1, %3, %5, %7, %9, %11, %13, %15, %17 in 2 : vector<16x16x32xbf16>, vector<16x16x32xbf16>, vector<16x16x32xbf16>, vector<16x16x32xbf16>, vector<16x16x32xbf16>, vector<16x16x32xbf16>, vector<16x16x32xbf16>, vector<16x16x32xbf16>, vector<16x16x32xbf16> -> vector<16x16x288xbf16>
    %19 = vector.shape_cast %18 : vector<16x16x288xbf16> to vector<256x288xbf16>
    %c0_33 = arith.constant 0 : index
    %c0_34 = arith.constant 0 : index
    %20 = vector.load %arg2[%c0_33, %c0_34] : memref<288x512xbf16, #tpu.memory_space<vmem>>, vector<288x512xbf16>
    %cst = arith.constant dense<0.000000e+00> : vector<256x512xf32>
    %21 = tpu.matmul %19, %20, %cst {dimension_numbers = #tpu.dot_dimension_numbers<[1], [0], [0], [1], [0, 0, 1, 1], [], []>} : vector<256x288xbf16>, vector<288x512xbf16>, vector<256x512xf32> -> vector<256x512xf32>
    %c0_35 = arith.constant 0 : index
    %c0_36 = arith.constant 0 : index
    %22 = vector.load %arg3[%c0_35, %c0_36] : memref<1x512xf32, #tpu.memory_space<vmem>>, vector<1x512xf32>
    %23 = vector.broadcast %22 : vector<1x512xf32> to vector<256x512xf32>
    %24 = arith.addf %21, %23 : vector<256x512xf32>
    %c0_37 = arith.constant 0 : index
    %c0_38 = arith.constant 0 : index
    %c0_39 = arith.constant 0 : index
    %25 = vector.load %arg4[%c0_37, %c0_38, %c0_39] : memref<1x256x512xf32, #tpu.memory_space<vmem>>, vector<1x256x512xf32>
    %26 = vector.shape_cast %25 : vector<1x256x512xf32> to vector<256x512xf32>
    %27 = vector.shape_cast %24 : vector<256x512xf32> to vector<1x256x512xf32>
    tpu.vector_store %arg4[%c0_37, %c0_38, %c0_39], %27 {strides = array<i32>} : memref<1x256x512xf32, #tpu.memory_space<vmem>>, vector<1x256x512xf32>,
    return
  }
  func.func @transform_0(%arg0: i32) -> (i32, i32, i32, i32) {
    %c0_i32 = arith.constant 0 : i32
    %c0_i32_0 = arith.constant 0 : i32
    %c0_i32_1 = arith.constant 0 : i32
    %c0_i32_2 = arith.constant 0 : i32
    return %arg0, %c0_i32, %c0_i32_0, %c0_i32_1 : i32, i32, i32, i32
  }
  func.func @transform_1(%arg0: i32) -> (i32, i32) {
    %c0_i32 = arith.constant 0 : i32
    %c0_i32_0 = arith.constant 0 : i32
    %c0_i32_1 = arith.constant 0 : i32
    return %c0_i32, %c0_i32_0 : i32, i32
  }
  func.func @transform_2(%arg0: i32) -> (i32, i32) {
    %c0_i32 = arith.constant 0 : i32
    %c0_i32_0 = arith.constant 0 : i32
    %c0_i32_1 = arith.constant 0 : i32
    return %c0_i32, %c0_i32_0 : i32, i32
  }
  func.func @transform_3(%arg0: i32) -> (i32, i32, i32) {
    %c0_i32 = arith.constant 0 : i32
    %c0_i32_0 = arith.constant 0 : i32
    %c0_i32_1 = arith.constant 0 : i32
    return %arg0, %c0_i32, %c0_i32_0 : i32, i32, i32
  }
}

</mosaic_0001>

<llo_original>
// kernel: tpu_custom_call.1
$region0: #{tpu_custom_call.1}
  #allocation0 [shape = 'u32[]', space=smem, size = 0x4, offset = 0x4, fixed_abs, tag = 'smem constant byte address 0x4 - core index']
  #allocation1 [shape = 'u32[72,128]{1,0:T(1,128)}', space=vmem, size = 0x9000, scoped, tag = 'internal scratch']
  %s0 = inlined_call_operand.vmem [shape: bf16[8,18,18,32], index: 0, kind: input, shape index: {}]
  %s1 = inlined_call_operand.hbm [shape: bf16[288,512], index: 1, kind: input, shape index: {}]
  %s2 = inlined_call_operand.hbm [shape: f32[1,512], index: 2, kind: input, shape index: {}]
  %s3 = inlined_call_operand.hbm [shape: f32[8,256,512], index: 3, kind: output, shape index: {}]
  %s4 = sld [smem:[#allocation0]]
  $region53: #{tpu_custom_call.1} parent=0
    _
  %s6 = ssub.s32 1, %s4
  %s7 = scalar_select 0, %s6, %s4
  $region1: #{tpu_custom_call.1} parent=0
    #allocation2 [shape = 'u8[294912]{0}', space=vmem, size = 0x48000, scoped, tag = 'input window, operand 1, single buffered']
    #allocation3 [shape = 's32[2]{0}', space=sflag, size = 0x8, scoped, tag = 'scoped memory for tpu_custom_call.1']
    #allocation4 [shape = 's32[2]{0}', space=sflag, size = 0x8, scoped, tag = 'scoped memory for tpu_custom_call.1']
    #allocation5 [shape = 'u8[2048]{0}', space=vmem, size = 0x800, scoped, tag = 'input window, operand 2, single buffered']
    #allocation6 [shape = 's32[1]{0}', space=sflag, size = 0x4, scoped, tag = 'scoped memory for tpu_custom_call.1']
    #allocation7 [shape = 'u8[1048576]{0}', space=vmem, size = 0x100000, scoped, tag = 'output window, operand 0']
    %8 = vsyncpa [#allocation3], 0
    %9 = vsyncpa [#allocation6], 0
    %10 = vsyncpa [#allocation4], 0
    %s11 = scalar_lea.sflag [#allocation4], 1
    %12 = vsyncpa %s11, 0
    loop: start=0, step=1, limit=10
    $region2: #{tpu_custom_call.1} parent=1 // loop_pre_header
      _
    $region3: #{tpu_custom_call.1} parent=1 // loop_header
      %s14 = sphi 0, %s18
      %p15 = scmp.ge.s32.totalorder %s14, 10
      %s24 = sphi 0, %s26
      %s27 = sphi 0, %s24
      %s28 = sphi 0, %s27
      %s44 = sphi 0, %s28
      %s48 = sphi 0, %s48
      %s50 = sphi 0, %s48
      %s51 = sphi 0, %s50
      %s65 = sphi 0, %s51
      %s69 = sphi 0, %s69
      %s71 = sphi 0, %s69
      %s72 = sphi 0, %s71
      %s86 = sphi 0, %s72
      %s92 = sphi 0, %s94
      %s95 = sphi 0, %s92
      %s96 = sphi 0, %s95
      %s112 = sphi 0, %s96
    $region4: #{tpu_custom_call.1} parent=1 // loop_header_branch
      %17 = sbr.rel (%p15) target = $region8
    $region5: #{tpu_custom_call.1} parent=1 // loop_body
      %s19 = ssub.s32 %s14, 1
      %s20 = ssub.s32 %s14, 2
      %s21 = sadd.s32 %s14, 1
      %s22 = ssub.s32 %s14, %s21
      %p23 = scmp.eq.s32.totalorder %s22, 0
      %s25 = sadd.s32 %s24, 1
      %s26 = scalar_select %p23, %s24, %s25
      %p29 = pneg %p23
      %p30 = scmp.eq.s32.totalorder %s14, 7
      %p31 = por %p29, %p30
      %p32 = scmp.ne.s32.totalorder %s24, %s27
      %p33 = scmp.eq.s32.totalorder %s14, 0
      %p34 = por %p32, %p33
      %p35 = scmp.ne.s32.totalorder %s24, %s27
      %p36 = scmp.eq.s32.totalorder %s19, 7
      %p37 = por %p35, %p36
      %p38 = scmp.ne.s32.totalorder %s27, %s28
      %p39 = scmp.eq.s32.totalorder %s19, 0
      %p40 = por %p38, %p39
      %p41 = scmp.ne.s32.totalorder %s27, %s28
      %p42 = scmp.eq.s32.totalorder %s20, 7
      %p43 = por %p41, %p42
      %p45 = scmp.ne.s32.totalorder %s28, %s44
      %p46 = scmp.eq.s32.totalorder %s20, 0
      %p47 = por %p45, %p46
      %s49 = sadd.s32 %s48, 1
      %p52 = scmp.eq.s32.totalorder %s14, 7
      %p53 = scmp.ne.s32.totalorder %s48, %s50
      %p54 = scmp.eq.s32.totalorder %s14, 0
      %p55 = por %p53, %p54
      %p56 = scmp.ne.s32.totalorder %s48, %s50
      %p57 = scmp.eq.s32.totalorder %s19, 7
      %p58 = por %p56, %p57
      %p59 = scmp.ne.s32.totalorder %s50, %s51
      %p60 = scmp.eq.s32.totalorder %s19, 0
      %p61 = por %p59, %p60
      %p62 = scmp.ne.s32.totalorder %s50, %s51
      %p63 = scmp.eq.s32.totalorder %s20, 7
      %p64 = por %p62, %p63
      %p66 = scmp.ne.s32.totalorder %s51, %s65
      %p67 = scmp.eq.s32.totalorder %s20, 0
      %p68 = por %p66, %p67
      %s70 = sadd.s32 %s69, 1
      %p73 = scmp.eq.s32.totalorder %s14, 7
      %p74 = scmp.ne.s32.totalorder %s69, %s71
      %p75 = scmp.eq.s32.totalorder %s14, 0
      %p76 = por %p74, %p75
      %p77 = scmp.ne.s32.totalorder %s69, %s71
      %p78 = scmp.eq.s32.totalorder %s19, 7
      %p79 = por %p77, %p78
      %p80 = scmp.ne.s32.totalorder %s71, %s72
      %p81 = scmp.eq.s32.totalorder %s19, 0
      %p82 = por %p80, %p81
      %p83 = scmp.ne.s32.totalorder %s71, %s72
      %p84 = scmp.eq.s32.totalorder %s20, 7
      %p85 = por %p83, %p84
      %p87 = scmp.ne.s32.totalorder %s72, %s86
      %p88 = scmp.eq.s32.totalorder %s20, 0
      %p89 = por %p87, %p88
      %s90 = ssub.s32 %s14, %s21
      %p91 = scmp.eq.s32.totalorder %s90, 0
      %s93 = sadd.s32 %s92, 1
      %s94 = scalar_select %p91, %s92, %s93
      %p97 = pneg %p91
      %p98 = scmp.eq.s32.totalorder %s14, 7
      %p99 = por %p97, %p98
      %p100 = scmp.ne.s32.totalorder %s92, %s95
      %p101 = scmp.eq.s32.totalorder %s14, 0
      %p102 = por %p100, %p101
      %p103 = scmp.ne.s32.totalorder %s92, %s95
      %p104 = scmp.eq.s32.totalorder %s19, 7
      %p105 = por %p103, %p104
      %p106 = scmp.ne.s32.totalorder %s95, %s96
      %p107 = scmp.eq.s32.totalorder %s19, 0
      %p108 = por %p106, %p107
      %p109 = scmp.ne.s32.totalorder %s95, %s96
      %p110 = scmp.eq.s32.totalorder %s20, 7
      %p111 = por %p109, %p110
      %p113 = scmp.ne.s32.totalorder %s96, %s112
      %p114 = scmp.eq.s32.totalorder %s20, 0
      %p115 = por %p113, %p114
      %p116 = scmp.le.s32.totalorder 1, %s14
      %p117 = scmp.lt.s32.totalorder %s14, 9
      %p118 = pnand %p116, %p117
      %p119 = pneg %p118
      // Predicated region
      $region9: #{tpu_custom_call.1} parent=5 // pred_check
        _
      $region10: #{tpu_custom_call.1} parent=5 // pred_check_branch
        %121 = sbr.rel (%p118) target = $region12
      $region11: #{tpu_custom_call.1} parent=5 // pred_region
        %s122 = ssub.s32 %s14, 1
        // Predicated region
        $region13: #{tpu_custom_call.1} parent=11 // pred_check
          %p123 = pneg %p61
        $region14: #{tpu_custom_call.1} parent=11 // pred_check_branch
          %125 = sbr.rel (%p123) target = $region16
        $region15: #{tpu_custom_call.1} parent=11 // pred_region
          %127 = vsyncadd [#allocation3], 0
          %s128 = sshll.u32 %s1, 4
          %s129 = int_to_ptr.hbm [resolvable:$true] %s128
          %s130 = sshll.u32 [#allocation2], 4
          %s131 = int_to_ptr.vmem [resolvable:$true] %s130
          %136 = dma.hbm_to_vmem [thread:$0]  %s129, 9216, %s131, [#allocation3], 256, 256, 16
        $region16: #{tpu_custom_call.1} parent=11 // pred_fallthru
          _
        // Predicated region
        $region17: #{tpu_custom_call.1} parent=11 // pred_check
          %p137 = pneg %p82
        $region18: #{tpu_custom_call.1} parent=11 // pred_check_branch
          %139 = sbr.rel (%p137) target = $region20
        $region19: #{tpu_custom_call.1} parent=11 // pred_region
          %141 = vsyncadd [#allocation6], 0
          %s143 = sshll.u32 %s2, 4
          %s144 = int_to_ptr.hbm [resolvable:$true] %s143
          %s145 = sshll.u32 [#allocation5], 4
          %s146 = int_to_ptr.vmem [resolvable:$true] %s145
          %148 = dma.hbm_to_vmem [thread:$0]  %s144, 64, %s146, [#allocation6]
        $region20: #{tpu_custom_call.1} parent=11 // pred_fallthru
          _
      $region12: #{tpu_custom_call.1} parent=5 // pred_fallthru
        _
      %p149 = scmp.lt.s32.totalorder %s14, 8
      // Predicated region
      $region21: #{tpu_custom_call.1} parent=5 // pred_check
        %p150 = pneg %p149
      $region22: #{tpu_custom_call.1} parent=5 // pred_check_branch
        %152 = sbr.rel (%p150) target = $region24
      $region23: #{tpu_custom_call.1} parent=5 // pred_region
        // Predicated region
        $region25: #{tpu_custom_call.1} parent=23 // pred_check
          %p153 = pneg %p34
        $region26: #{tpu_custom_call.1} parent=23 // pred_check_branch
          %155 = sbr.rel (%p153) target = $region28
        $region27: #{tpu_custom_call.1} parent=23 // pred_region
          %p156 = scmp.lt.s32.totalorder %s14, 7
          %s157 = scalar_select %p156, %s14, 7
          %s158 = smul.addr %s157, 54
          %s159 = smul.addr %s158, 4
          %s160 = scalar_lea.vmem %s0, %s159
        $region28: #{tpu_custom_call.1} parent=23 // pred_fallthru
          _
      $region24: #{tpu_custom_call.1} parent=5 // pred_fallthru
        _
      %p161 = scmp.le.s32.totalorder 1, %s14
      %p162 = scmp.lt.s32.totalorder %s14, 9
      %p163 = pnand %p161, %p162
      %p164 = pneg %p163
      // Predicated region
      $region29: #{tpu_custom_call.1} parent=5 // pred_check
        _
      $region30: #{tpu_custom_call.1} parent=5 // pred_check_branch
        %166 = sbr.rel (%p163) target = $region32
      $region31: #{tpu_custom_call.1} parent=5 // pred_region
        %s167 = ssub.s32 %s14, 1
        // Predicated region
        $region33: #{tpu_custom_call.1} parent=31 // pred_check
          %p168 = pneg %p61
        $region34: #{tpu_custom_call.1} parent=31 // pred_check_branch
          %170 = sbr.rel (%p168) target = $region36
        $region35: #{tpu_custom_call.1} parent=31 // pred_region
          %172 = dma.done [#allocation3], 9216
        $region36: #{tpu_custom_call.1} parent=31 // pred_fallthru
          _
        // Predicated region
        $region37: #{tpu_custom_call.1} parent=31 // pred_check
          %p173 = pneg %p82
        $region38: #{tpu_custom_call.1} parent=31 // pred_check_branch
          %175 = sbr.rel (%p173) target = $region40
        $region39: #{tpu_custom_call.1} parent=31 // pred_region
          %177 = dma.done [#allocation6], 64
        $region40: #{tpu_custom_call.1} parent=31 // pred_fallthru
          _
        %p178 = scmp.lt.s32.totalorder %s19, 7
        %s179 = scalar_select %p178, %s19, 7
        %s180 = smul.addr %s179, 54
        %s181 = smul.addr %s180, 4
        %s182 = scalar_lea.vmem %s0, %s181
        %p183 = pneg %p40
        %p184 = pneg %p37
        %p185 = pneg %p61
        %p186 = pneg %p58
        %p187 = pneg %p82
        %p188 = pneg %p79
        %p189 = pneg %p108
        %p190 = pneg %p105
        %s191 = sand.u32 %s95, 1
        %s192 = scalar_lea.sflag [#allocation4], %s191
        %s193 = sand.u32 %s95, 1
        %s194 = smul.addr %s193, 1024
        %s195 = scalar_lea.vmem [#allocation7], %s194
        %p196 = scmp.lt.s32.totalorder %s19, 7
        %s197 = scalar_select %p196, %s19, 7
        %s198 = smul.addr %s197, 54
        %s199 = smul.addr %s198, 4
        %s200 = scalar_lea.vmem %s0, %s199
        %v202 = vld [vmem:[%s200] sm:$0xf]
        %v203 = vld [vmem:[%s200 + $0x4] sm:$0xf]
        %v204 = vld [vmem:[%s200 + $0xc] sm:$0xf]
        %v205 = vld [vmem:[%s200 + $0x10] sm:$0xf]
        %v206 = vld [vmem:[%s200 + $0x18] sm:$0xf]
        %v207 = vld [vmem:[%s200 + $0x1c] sm:$0xf]
        %v208 = vld [vmem:[%s200 + $0x24] sm:$0xf]
        %v209 = vld [vmem:[%s200 + $0x28] sm:$0xf]
        %v210 = vld [vmem:[%s200 + $0x30] sm:$0xf]
        %v211 = vld [vmem:[%s200 + $0x34] sm:$0xf]
        %v212 = vld [vmem:[%s200 + $0x3c] sm:$0xf]
        %v213 = vld [vmem:[%s200 + $0x40] sm:$0xf]
        %v214 = vld [vmem:[%s200 + $0x48] sm:$0xf]
        %v215 = vld [vmem:[%s200 + $0x4c] sm:$0xf]
        %v216 = vld [vmem:[%s200 + $0x54] sm:$0xf]
        %v217 = vld [vmem:[%s200 + $0x58] sm:$0xf]
        %v218 = vld [vmem:[%s200 + $0x60] sm:$0xf]
        %v219 = vld [vmem:[%s200 + $0x64] sm:$0xf]
        %v220 = vld [vmem:[%s200 + $0x6c] sm:$0xf]
        %v221 = vld [vmem:[%s200 + $0x70] sm:$0xf]
        %v222 = vld [vmem:[%s200 + $0x78] sm:$0xf]
        %v223 = vld [vmem:[%s200 + $0x7c] sm:$0xf]
        %v224 = vld [vmem:[%s200 + $0x84] sm:$0xf]
        %v225 = vld [vmem:[%s200 + $0x88] sm:$0xf]
        %v226 = vld [vmem:[%s200 + $0x90] sm:$0xf]
        %v227 = vld [vmem:[%s200 + $0x94] sm:$0xf]
        %v228 = vld [vmem:[%s200 + $0x9c] sm:$0xf]
        %v229 = vld [vmem:[%s200 + $0xa0] sm:$0xf]
        %v230 = vld [vmem:[%s200 + $0xa8] sm:$0xf]
        %v231 = vld [vmem:[%s200 + $0xac] sm:$0xf]
        %v232 = vld [vmem:[%s200 + $0xb4] sm:$0xf]
        %v233 = vld [vmem:[%s200 + $0xb8] sm:$0xf]
        %v234 = vld [vmem:[%s200 + $0x8] sm:$0x1]
        %v235 = vld [vmem:[%s200 + $0x14] sm:$0x1]
        %v236 = vld [vmem:[%s200 + $0x20] sm:$0x1]
        %v237 = vld [vmem:[%s200 + $0x2c] sm:$0x1]
        %v238 = vld [vmem:[%s200 + $0x38] sm:$0x1]
        %v239 = vld [vmem:[%s200 + $0x44] sm:$0x1]
        %v240 = vld [vmem:[%s200 + $0x50] sm:$0x1]
        %v241 = vld [vmem:[%s200 + $0x5c] sm:$0x1]
        %v242 = vld [vmem:[%s200 + $0x68] sm:$0x1]
        %v243 = vld [vmem:[%s200 + $0x74] sm:$0x1]
        %v244 = vld [vmem:[%s200 + $0x80] sm:$0x1]
        %v245 = vld [vmem:[%s200 + $0x8c] sm:$0x1]
        %v246 = vld [vmem:[%s200 + $0x98] sm:$0x1]
        %v247 = vld [vmem:[%s200 + $0xa4] sm:$0x1]
        %v248 = vld [vmem:[%s200 + $0xb0] sm:$0x1]
        %v249 = vld [vmem:[%s200 + $0xbc] sm:$0x1]
        %v250 = vld [vmem:[%s200] sm:$0xe]
        %v251 = vld [vmem:[%s200 + $0xc] sm:$0xe]
        %v252 = vld [vmem:[%s200 + $0x18] sm:$0xe]
        %v253 = vld [vmem:[%s200 + $0x24] sm:$0xe]
        %v254 = vld [vmem:[%s200 + $0x30] sm:$0xe]
        %v255 = vld [vmem:[%s200 + $0x3c] sm:$0xe]
        %v256 = vld [vmem:[%s200 + $0x48] sm:$0xe]
        %v257 = vld [vmem:[%s200 + $0x54] sm:$0xe]
        %v258 = vld [vmem:[%s200 + $0x60] sm:$0xe]
        %v259 = vld [vmem:[%s200 + $0x6c] sm:$0xe]
        %v260 = vld [vmem:[%s200 + $0x78] sm:$0xe]
        %v261 = vld [vmem:[%s200 + $0x84] sm:$0xe]
        %v262 = vld [vmem:[%s200 + $0x90] sm:$0xe]
        %v263 = vld [vmem:[%s200 + $0x9c] sm:$0xe]
        %v264 = vld [vmem:[%s200 + $0xa8] sm:$0xe]
        %v265 = vld [vmem:[%s200 + $0xb4] sm:$0xe]
        %s266 = scalar_lea.vmem %s200, 12
        %v267 = vld [vmem:[%s266] sm:$0xf]
        %v268 = vld [vmem:[%s266 + $0x4] sm:$0xf]
        %v269 = vld [vmem:[%s266 + $0xc] sm:$0xf]
        %v270 = vld [vmem:[%s266 + $0x10] sm:$0xf]
        %v271 = vld [vmem:[%s266 + $0x18] sm:$0xf]
        %v272 = vld [vmem:[%s266 + $0x1c] sm:$0xf]
        %v273 = vld [vmem:[%s266 + $0x24] sm:$0xf]
        %v274 = vld [vmem:[%s266 + $0x28] sm:$0xf]
        %v275 = vld [vmem:[%s266 + $0x30] sm:$0xf]
        %v276 = vld [vmem:[%s266 + $0x34] sm:$0xf]
        %v277 = vld [vmem:[%s266 + $0x3c] sm:$0xf]
        %v278 = vld [vmem:[%s266 + $0x40] sm:$0xf]
        %v279 = vld [vmem:[%s266 + $0x48] sm:$0xf]
        %v280 = vld [vmem:[%s266 + $0x4c] sm:$0xf]
        %v281 = vld [vmem:[%s266 + $0x54] sm:$0xf]
        %v282 = vld [vmem:[%s266 + $0x58] sm:$0xf]
        %v283 = vld [vmem:[%s266 + $0x60] sm:$0xf]
        %v284 = vld [vmem:[%s266 + $0x64] sm:$0xf]
        %v285 = vld [vmem:[%s266 + $0x6c] sm:$0xf]
        %v286 = vld [vmem:[%s266 + $0x70] sm:$0xf]
        %v287 = vld [vmem:[%s266 + $0x78] sm:$0xf]
        %v288 = vld [vmem:[%s266 + $0x7c] sm:$0xf]
        %v289 = vld [vmem:[%s266 + $0x84] sm:$0xf]
        %v290 = vld [vmem:[%s266 + $0x88] sm:$0xf]
        %v291 = vld [vmem:[%s266 + $0x90] sm:$0xf]
        %v292 = vld [vmem:[%s266 + $0x94] sm:$0xf]
        %v293 = vld [vmem:[%s266 + $0x9c] sm:$0xf]
        %v294 = vld [vmem:[%s266 + $0xa0] sm:$0xf]
        %v295 = vld [vmem:[%s266 + $0xa8] sm:$0xf]
        %v296 = vld [vmem:[%s266 + $0xac] sm:$0xf]
        %v297 = vld [vmem:[%s266 + $0xb4] sm:$0xf]
        %v298 = vld [vmem:[%s266 + $0xb8] sm:$0xf]
        %v299 = vld [vmem:[%s266 + $0x8] sm:$0x1]
        %v300 = vld [vmem:[%s266 + $0x14] sm:$0x1]
        %v301 = vld [vmem:[%s266 + $0x20] sm:$0x1]
        %v302 = vld [vmem:[%s266 + $0x2c] sm:$0x1]
        %v303 = vld [vmem:[%s266 + $0x38] sm:$0x1]
        %v304 = vld [vmem:[%s266 + $0x44] sm:$0x1]
        %v305 = vld [vmem:[%s266 + $0x50] sm:$0x1]
        %v306 = vld [vmem:[%s266 + $0x5c] sm:$0x1]
        %v307 = vld [vmem:[%s266 + $0x68] sm:$0x1]
        %v308 = vld [vmem:[%s266 + $0x74] sm:$0x1]
        %v309 = vld [vmem:[%s266 + $0x80] sm:$0x1]
        %v310 = vld [vmem:[%s266 + $0x8c] sm:$0x1]
        %v311 = vld [vmem:[%s266 + $0x98] sm:$0x1]
        %v312 = vld [vmem:[%s266 + $0xa4] sm:$0x1]
        %v313 = vld [vmem:[%s266 + $0xb0] sm:$0x1]
        %v314 = vld [vmem:[%s266 + $0xbc] sm:$0x1]
        %v315 = vld [vmem:[%s266] sm:$0xe]
        %v316 = vld [vmem:[%s266 + $0xc] sm:$0xe]
        %v317 = vld [vmem:[%s266 + $0x18] sm:$0xe]
        %v318 = vld [vmem:[%s266 + $0x24] sm:$0xe]
        %v319 = vld [vmem:[%s266 + $0x30] sm:$0xe]
        %v320 = vld [vmem:[%s266 + $0x3c] sm:$0xe]
        %v321 = vld [vmem:[%s266 + $0x48] sm:$0xe]
        %v322 = vld [vmem:[%s266 + $0x54] sm:$0xe]
        %v323 = vld [vmem:[%s266 + $0x60] sm:$0xe]
        %v324 = vld [vmem:[%s266 + $0x6c] sm:$0xe]
        %v325 = vld [vmem:[%s266 + $0x78] sm:$0xe]
        %v326 = vld [vmem:[%s266 + $0x84] sm:$0xe]
        %v327 = vld [vmem:[%s266 + $0x90] sm:$0xe]
        %v328 = vld [vmem:[%s266 + $0x9c] sm:$0xe]
        %v329 = vld [vmem:[%s266 + $0xa8] sm:$0xe]
        %v330 = vld [vmem:[%s266 + $0xb4] sm:$0xe]
        %s331 = scalar_lea.vmem %s200, 24
        %v332 = vld [vmem:[%s331] sm:$0xf]
        %v333 = vld [vmem:[%s331 + $0x4] sm:$0xf]
        %v334 = vld [vmem:[%s331 + $0xc] sm:$0xf]
        %v335 = vld [vmem:[%s331 + $0x10] sm:$0xf]
        %v336 = vld [vmem:[%s331 + $0x18] sm:$0xf]
        %v337 = vld [vmem:[%s331 + $0x1c] sm:$0xf]
        %v338 = vld [vmem:[%s331 + $0x24] sm:$0xf]
        %v339 = vld [vmem:[%s331 + $0x28] sm:$0xf]
        %v340 = vld [vmem:[%s331 + $0x30] sm:$0xf]
        %v341 = vld [vmem:[%s331 + $0x34] sm:$0xf]
        %v342 = vld [vmem:[%s331 + $0x3c] sm:$0xf]
        %v343 = vld [vmem:[%s331 + $0x40] sm:$0xf]
        %v344 = vld [vmem:[%s331 + $0x48] sm:$0xf]
        %v345 = vld [vmem:[%s331 + $0x4c] sm:$0xf]
        %v346 = vld [vmem:[%s331 + $0x54] sm:$0xf]
        %v347 = vld [vmem:[%s331 + $0x58] sm:$0xf]
        %v348 = vld [vmem:[%s331 + $0x60] sm:$0xf]
        %v349 = vld [vmem:[%s331 + $0x64] sm:$0xf]
        %v350 = vld [vmem:[%s331 + $0x6c] sm:$0xf]
        %v351 = vld [vmem:[%s331 + $0x70] sm:$0xf]
        %v352 = vld [vmem:[%s331 + $0x78] sm:$0xf]
        %v353 = vld [vmem:[%s331 + $0x7c] sm:$0xf]
        %v354 = vld [vmem:[%s331 + $0x84] sm:$0xf]
        %v355 = vld [vmem:[%s331 + $0x88] sm:$0xf]
        %v356 = vld [vmem:[%s331 + $0x90] sm:$0xf]
        %v357 = vld [vmem:[%s331 + $0x94] sm:$0xf]
        %v358 = vld [vmem:[%s331 + $0x9c] sm:$0xf]
        %v359 = vld [vmem:[%s331 + $0xa0] sm:$0xf]
        %v360 = vld [vmem:[%s331 + $0xa8] sm:$0xf]
        %v361 = vld [vmem:[%s331 + $0xac] sm:$0xf]
        %v362 = vld [vmem:[%s331 + $0xb4] sm:$0xf]
        %v363 = vld [vmem:[%s331 + $0xb8] sm:$0xf]
        %v364 = vld [vmem:[%s331 + $0x8] sm:$0x1]
        %v365 = vld [vmem:[%s331 + $0x14] sm:$0x1]
        %v366 = vld [vmem:[%s331 + $0x20] sm:$0x1]
        %v367 = vld [vmem:[%s331 + $0x2c] sm:$0x1]
        %v368 = vld [vmem:[%s331 + $0x38] sm:$0x1]
        %v369 = vld [vmem:[%s331 + $0x44] sm:$0x1]
        %v370 = vld [vmem:[%s331 + $0x50] sm:$0x1]
        %v371 = vld [vmem:[%s331 + $0x5c] sm:$0x1]
        %v372 = vld [vmem:[%s331 + $0x68] sm:$0x1]
        %v373 = vld [vmem:[%s331 + $0x74] sm:$0x1]
        %v374 = vld [vmem:[%s331 + $0x80] sm:$0x1]
        %v375 = vld [vmem:[%s331 + $0x8c] sm:$0x1]
        %v376 = vld [vmem:[%s331 + $0x98] sm:$0x1]
        %v377 = vld [vmem:[%s331 + $0xa4] sm:$0x1]
        %v378 = vld [vmem:[%s331 + $0xb0] sm:$0x1]
        %v379 = vld [vmem:[%s331 + $0xbc] sm:$0x1]
        %v380 = vld [vmem:[%s331] sm:$0xe]
        %v381 = vld [vmem:[%s331 + $0xc] sm:$0xe]
        %v382 = vld [vmem:[%s331 + $0x18] sm:$0xe]
        %v383 = vld [vmem:[%s331 + $0x24] sm:$0xe]
        %v384 = vld [vmem:[%s331 + $0x30] sm:$0xe]
        %v385 = vld [vmem:[%s331 + $0x3c] sm:$0xe]
        %v386 = vld [vmem:[%s331 + $0x48] sm:$0xe]
        %v387 = vld [vmem:[%s331 + $0x54] sm:$0xe]
        %v388 = vld [vmem:[%s331 + $0x60] sm:$0xe]
        %v389 = vld [vmem:[%s331 + $0x6c] sm:$0xe]
        %v390 = vld [vmem:[%s331 + $0x78] sm:$0xe]
        %v391 = vld [vmem:[%s331 + $0x84] sm:$0xe]
        %v392 = vld [vmem:[%s331 + $0x90] sm:$0xe]
        %v393 = vld [vmem:[%s331 + $0x9c] sm:$0xe]
        %v394 = vld [vmem:[%s331 + $0xa8] sm:$0xe]
        %v395 = vld [vmem:[%s331 + $0xb4] sm:$0xe]
        %v428 = vunpack.c.l.b16 %v202
        %v429 = vunpack.c.l.b16 %v203
        %v430 = vunpack.c.l.b16 %v204
        %v431 = vunpack.c.l.b16 %v205
        %v432 = vunpack.c.l.b16 %v206
        %v433 = vunpack.c.l.b16 %v207
        %v434 = vunpack.c.l.b16 %v208
        %v435 = vunpack.c.l.b16 %v209
        %v436 = vunpack.c.l.b16 %v210
        %v437 = vunpack.c.l.b16 %v211
        %v438 = vunpack.c.l.b16 %v212
        %v439 = vunpack.c.l.b16 %v213
        %v440 = vunpack.c.l.b16 %v214
        %v441 = vunpack.c.l.b16 %v215
        %v442 = vunpack.c.l.b16 %v216
        %v443 = vunpack.c.l.b16 %v217
        %v444 = vunpack.c.l.b16 %v218
        %v445 = vunpack.c.l.b16 %v219
        %v446 = vunpack.c.l.b16 %v220
        %v447 = vunpack.c.l.b16 %v221
        %v448 = vunpack.c.l.b16 %v222
        %v449 = vunpack.c.l.b16 %v223
        %v450 = vunpack.c.l.b16 %v224
        %v451 = vunpack.c.l.b16 %v225
        %v452 = vunpack.c.l.b16 %v226
        %v453 = vunpack.c.l.b16 %v227
        %v454 = vunpack.c.l.b16 %v228
        %v455 = vunpack.c.l.b16 %v229
        %v456 = vunpack.c.l.b16 %v230
        %v457 = vunpack.c.l.b16 %v231
        %v458 = vunpack.c.l.b16 %v232
        %v459 = vunpack.c.l.b16 %v233
        %v460 = vpack.c.b16 %v429, %v428
        %v461 = vpack.c.b16 %v431, %v430
        %v462 = vpack.c.b16 %v433, %v432
        %v463 = vpack.c.b16 %v435, %v434
        %v464 = vpack.c.b16 %v437, %v436
        %v465 = vpack.c.b16 %v439, %v438
        %v466 = vpack.c.b16 %v441, %v440
        %v467 = vpack.c.b16 %v443, %v442
        %v468 = vpack.c.b16 %v445, %v444
        %v469 = vpack.c.b16 %v447, %v446
        %v470 = vpack.c.b16 %v449, %v448
        %v471 = vpack.c.b16 %v451, %v450
        %v472 = vpack.c.b16 %v453, %v452
        %v473 = vpack.c.b16 %v455, %v454
        %v474 = vpack.c.b16 %v457, %v456
        %v475 = vpack.c.b16 %v459, %v458
        %v492 = vunpack.c.l.b16 %v234
        %v493 = vunpack.c.l.b16 %v235
        %v494 = vunpack.c.l.b16 %v236
        %v495 = vunpack.c.l.b16 %v237
        %v496 = vunpack.c.l.b16 %v238
        %v497 = vunpack.c.l.b16 %v239
        %v498 = vunpack.c.l.b16 %v240
        %v499 = vunpack.c.l.b16 %v241
        %v500 = vunpack.c.l.b16 %v242
        %v501 = vunpack.c.l.b16 %v243
        %v502 = vunpack.c.l.b16 %v244
        %v503 = vunpack.c.l.b16 %v245
        %v504 = vunpack.c.l.b16 %v246
        %v505 = vunpack.c.l.b16 %v247
        %v506 = vunpack.c.l.b16 %v248
        %v507 = vunpack.c.l.b16 %v249
        %v508 = vpack.c.b16 %v492, %v492
        %v509 = vpack.c.b16 %v493, %v493
        %v510 = vpack.c.b16 %v494, %v494
        %v511 = vpack.c.b16 %v495, %v495
        %v512 = vpack.c.b16 %v496, %v496
        %v513 = vpack.c.b16 %v497, %v497
        %v514 = vpack.c.b16 %v498, %v498
        %v515 = vpack.c.b16 %v499, %v499
        %v516 = vpack.c.b16 %v500, %v500
        %v517 = vpack.c.b16 %v501, %v501
        %v518 = vpack.c.b16 %v502, %v502
        %v519 = vpack.c.b16 %v503, %v503
        %v520 = vpack.c.b16 %v504, %v504
        %v521 = vpack.c.b16 %v505, %v505
        %v522 = vpack.c.b16 %v506, %v506
        %v523 = vpack.c.b16 %v507, %v507
        %vm524 = vsmask.f32 7424
        %v526 = vshrl.u32 %v460, 16
        %v528 = vshll.u32 %v460, 16
        %v530 = vrot.slane %v528, 1
        %v531 = vor.u32 %v526, %v530
        %v533 = vshll.u32 %v508, 16
        %v535 = vrot.slane %v533, 1
        %v536 = vsel %vm524, %v531, %v535
        %v538 = vshrl.u32 %v461, 16
        %v540 = vshll.u32 %v461, 16
        %v542 = vrot.slane %v540, 1
        %v543 = vor.u32 %v538, %v542
        %v545 = vshll.u32 %v509, 16
        %v547 = vrot.slane %v545, 1
        %v548 = vsel %vm524, %v543, %v547
        %v550 = vshrl.u32 %v462, 16
        %v552 = vshll.u32 %v462, 16
        %v554 = vrot.slane %v552, 1
        %v555 = vor.u32 %v550, %v554
        %v557 = vshll.u32 %v510, 16
        %v559 = vrot.slane %v557, 1
        %v560 = vsel %vm524, %v555, %v559
        %v562 = vshrl.u32 %v463, 16
        %v564 = vshll.u32 %v463, 16
        %v566 = vrot.slane %v564, 1
        %v567 = vor.u32 %v562, %v566
        %v569 = vshll.u32 %v511, 16
        %v571 = vrot.slane %v569, 1
        %v572 = vsel %vm524, %v567, %v571
        %v574 = vshrl.u32 %v464, 16
        %v576 = vshll.u32 %v464, 16
        %v578 = vrot.slane %v576, 1
        %v579 = vor.u32 %v574, %v578
        %v581 = vshll.u32 %v512, 16
        %v583 = vrot.slane %v581, 1
        %v584 = vsel %vm524, %v579, %v583
        %v586 = vshrl.u32 %v465, 16
        %v588 = vshll.u32 %v465, 16
        %v590 = vrot.slane %v588, 1
        %v591 = vor.u32 %v586, %v590
        %v593 = vshll.u32 %v513, 16
        %v595 = vrot.slane %v593, 1
        %v596 = vsel %vm524, %v591, %v595
        %v598 = vshrl.u32 %v466, 16
        %v600 = vshll.u32 %v466, 16
        %v602 = vrot.slane %v600, 1
        %v603 = vor.u32 %v598, %v602
        %v605 = vshll.u32 %v514, 16
        %v607 = vrot.slane %v605, 1
        %v608 = vsel %vm524, %v603, %v607
        %v610 = vshrl.u32 %v467, 16
        %v612 = vshll.u32 %v467, 16
        %v614 = vrot.slane %v612, 1
        %v615 = vor.u32 %v610, %v614
        %v617 = vshll.u32 %v515, 16
        %v619 = vrot.slane %v617, 1
        %v620 = vsel %vm524, %v615, %v619
        %v622 = vshrl.u32 %v468, 16
        %v624 = vshll.u32 %v468, 16
        %v626 = vrot.slane %v624, 1
        %v627 = vor.u32 %v622, %v626
        %v629 = vshll.u32 %v516, 16
        %v631 = vrot.slane %v629, 1
        %v632 = vsel %vm524, %v627, %v631
        %v634 = vshrl.u32 %v469, 16
        %v636 = vshll.u32 %v469, 16
        %v638 = vrot.slane %v636, 1
        %v639 = vor.u32 %v634, %v638
        %v641 = vshll.u32 %v517, 16
        %v643 = vrot.slane %v641, 1
        %v644 = vsel %vm524, %v639, %v643
        %v646 = vshrl.u32 %v470, 16
        %v648 = vshll.u32 %v470, 16
        %v650 = vrot.slane %v648, 1
        %v651 = vor.u32 %v646, %v650
        %v653 = vshll.u32 %v518, 16
        %v655 = vrot.slane %v653, 1
        %v656 = vsel %vm524, %v651, %v655
        %v658 = vshrl.u32 %v471, 16
        %v660 = vshll.u32 %v471, 16
        %v662 = vrot.slane %v660, 1
        %v663 = vor.u32 %v658, %v662
        %v665 = vshll.u32 %v519, 16
        %v667 = vrot.slane %v665, 1
        %v668 = vsel %vm524, %v663, %v667
        %v670 = vshrl.u32 %v472, 16
        %v672 = vshll.u32 %v472, 16
        %v674 = vrot.slane %v672, 1
        %v675 = vor.u32 %v670, %v674
        %v677 = vshll.u32 %v520, 16
        %v679 = vrot.slane %v677, 1
        %v680 = vsel %vm524, %v675, %v679
        %v682 = vshrl.u32 %v473, 16
        %v684 = vshll.u32 %v473, 16
        %v686 = vrot.slane %v684, 1
        %v687 = vor.u32 %v682, %v686
        %v689 = vshll.u32 %v521, 16
        %v691 = vrot.slane %v689, 1
        %v692 = vsel %vm524, %v687, %v691
        %v694 = vshrl.u32 %v474, 16
        %v696 = vshll.u32 %v474, 16
        %v698 = vrot.slane %v696, 1
        %v699 = vor.u32 %v694, %v698
        %v701 = vshll.u32 %v522, 16
        %v703 = vrot.slane %v701, 1
        %v704 = vsel %vm524, %v699, %v703
        %v706 = vshrl.u32 %v475, 16
        %v708 = vshll.u32 %v475, 16
        %v710 = vrot.slane %v708, 1
        %v711 = vor.u32 %v706, %v710
        %v713 = vshll.u32 %v523, 16
        %v715 = vrot.slane %v713, 1
        %v716 = vsel %vm524, %v711, %v715
        %717 = vrot.lane.b32.xlu0 %v536, 32
        %v718 = vpop.permute.xlu0 %717
        %719 = vrot.lane.b32.xlu0 %v548, 32
        %v720 = vpop.permute.xlu0 %719
        %721 = vrot.lane.b32.xlu0 %v560, 32
        %v722 = vpop.permute.xlu0 %721
        %723 = vrot.lane.b32.xlu0 %v572, 32
        %v724 = vpop.permute.xlu0 %723
        %725 = vrot.lane.b32.xlu0 %v584, 32
        %v726 = vpop.permute.xlu0 %725
        %727 = vrot.lane.b32.xlu0 %v596, 32
        %v728 = vpop.permute.xlu0 %727
        %729 = vrot.lane.b32.xlu0 %v608, 32
        %v730 = vpop.permute.xlu0 %729
        %731 = vrot.lane.b32.xlu0 %v620, 32
        %v732 = vpop.permute.xlu0 %731
        %733 = vrot.lane.b32.xlu0 %v632, 32
        %v734 = vpop.permute.xlu0 %733
        %735 = vrot.lane.b32.xlu0 %v644, 32
        %v736 = vpop.permute.xlu0 %735
        %737 = vrot.lane.b32.xlu0 %v656, 32
        %v738 = vpop.permute.xlu0 %737
        %739 = vrot.lane.b32.xlu0 %v668, 32
        %v740 = vpop.permute.xlu0 %739
        %741 = vrot.lane.b32.xlu0 %v680, 32
        %v742 = vpop.permute.xlu0 %741
        %743 = vrot.lane.b32.xlu0 %v692, 32
        %v744 = vpop.permute.xlu0 %743
        %745 = vrot.lane.b32.xlu0 %v704, 32
        %v746 = vpop.permute.xlu0 %745
        %747 = vrot.lane.b32.xlu0 %v716, 32
        %v748 = vpop.permute.xlu0 %747
        %v765 = vunpack.c.l.b16 %v250
        %v766 = vunpack.c.l.b16 %v251
        %v767 = vunpack.c.l.b16 %v252
        %v768 = vunpack.c.l.b16 %v253
        %v769 = vunpack.c.l.b16 %v254
        %v770 = vunpack.c.l.b16 %v255
        %v771 = vunpack.c.l.b16 %v256
        %v772 = vunpack.c.l.b16 %v257
        %v773 = vunpack.c.l.b16 %v258
        %v774 = vunpack.c.l.b16 %v259
        %v775 = vunpack.c.l.b16 %v260
        %v776 = vunpack.c.l.b16 %v261
        %v777 = vunpack.c.l.b16 %v262
        %v778 = vunpack.c.l.b16 %v263
        %v779 = vunpack.c.l.b16 %v264
        %v780 = vunpack.c.l.b16 %v265
        %v781 = vpack.c.b16 %v429, %v765
        %v782 = vpack.c.b16 %v431, %v766
        %v783 = vpack.c.b16 %v433, %v767
        %v784 = vpack.c.b16 %v435, %v768
        %v785 = vpack.c.b16 %v437, %v769
        %v786 = vpack.c.b16 %v439, %v770
        %v787 = vpack.c.b16 %v441, %v771
        %v788 = vpack.c.b16 %v443, %v772
        %v789 = vpack.c.b16 %v445, %v773
        %v790 = vpack.c.b16 %v447, %v774
        %v791 = vpack.c.b16 %v449, %v775
        %v792 = vpack.c.b16 %v451, %v776
        %v793 = vpack.c.b16 %v453, %v777
        %v794 = vpack.c.b16 %v455, %v778
        %v795 = vpack.c.b16 %v457, %v779
        %v796 = vpack.c.b16 %v459, %v780
        %vm797 = vcmask 1046528
        %v798 = vrot.slane %v781, 1
        %v799 = vrot.slane %v508, 1
        %v800 = vsel %vm797, %v798, %v799
        %v801 = vrot.slane %v782, 1
        %v802 = vrot.slane %v509, 1
        %v803 = vsel %vm797, %v801, %v802
        %v804 = vrot.slane %v783, 1
        %v805 = vrot.slane %v510, 1
        %v806 = vsel %vm797, %v804, %v805
        %v807 = vrot.slane %v784, 1
        %v808 = vrot.slane %v511, 1
        %v809 = vsel %vm797, %v807, %v808
        %v810 = vrot.slane %v785, 1
        %v811 = vrot.slane %v512, 1
        %v812 = vsel %vm797, %v810, %v811
        %v813 = vrot.slane %v786, 1
        %v814 = vrot.slane %v513, 1
        %v815 = vsel %vm797, %v813, %v814
        %v816 = vrot.slane %v787, 1
        %v817 = vrot.slane %v514, 1
        %v818 = vsel %vm797, %v816, %v817
        %v819 = vrot.slane %v788, 1
        %v820 = vrot.slane %v515, 1
        %v821 = vsel %vm797, %v819, %v820
        %v822 = vrot.slane %v789, 1
        %v823 = vrot.slane %v516, 1
        %v824 = vsel %vm797, %v822, %v823
        %v825 = vrot.slane %v790, 1
        %v826 = vrot.slane %v517, 1
        %v827 = vsel %vm797, %v825, %v826
        %v828 = vrot.slane %v791, 1
        %v829 = vrot.slane %v518, 1
        %v830 = vsel %vm797, %v828, %v829
        %v831 = vrot.slane %v792, 1
        %v832 = vrot.slane %v519, 1
        %v833 = vsel %vm797, %v831, %v832
        %v834 = vrot.slane %v793, 1
        %v835 = vrot.slane %v520, 1
        %v836 = vsel %vm797, %v834, %v835
        %v837 = vrot.slane %v794, 1
        %v838 = vrot.slane %v521, 1
        %v839 = vsel %vm797, %v837, %v838
        %v840 = vrot.slane %v795, 1
        %v841 = vrot.slane %v522, 1
        %v842 = vsel %vm797, %v840, %v841
        %v843 = vrot.slane %v796, 1
        %v844 = vrot.slane %v523, 1
        %v845 = vsel %vm797, %v843, %v844
        %846 = vrot.lane.b32.xlu0 %v800, 64
        %v847 = vpop.permute.xlu0 %846
        %848 = vrot.lane.b32.xlu0 %v803, 64
        %v849 = vpop.permute.xlu0 %848
        %850 = vrot.lane.b32.xlu0 %v806, 64
        %v851 = vpop.permute.xlu0 %850
        %852 = vrot.lane.b32.xlu0 %v809, 64
        %v853 = vpop.permute.xlu0 %852
        %854 = vrot.lane.b32.xlu0 %v812, 64
        %v855 = vpop.permute.xlu0 %854
        %856 = vrot.lane.b32.xlu0 %v815, 64
        %v857 = vpop.permute.xlu0 %856
        %858 = vrot.lane.b32.xlu0 %v818, 64
        %v859 = vpop.permute.xlu0 %858
        %860 = vrot.lane.b32.xlu0 %v821, 64
        %v861 = vpop.permute.xlu0 %860
        %862 = vrot.lane.b32.xlu0 %v824, 64
        %v863 = vpop.permute.xlu0 %862
        %864 = vrot.lane.b32.xlu0 %v827, 64
        %v865 = vpop.permute.xlu0 %864
        %866 = vrot.lane.b32.xlu0 %v830, 64
        %v867 = vpop.permute.xlu0 %866
        %868 = vrot.lane.b32.xlu0 %v833, 64
        %v869 = vpop.permute.xlu0 %868
        %870 = vrot.lane.b32.xlu0 %v836, 64
        %v871 = vpop.permute.xlu0 %870
        %872 = vrot.lane.b32.xlu0 %v839, 64
        %v873 = vpop.permute.xlu0 %872
        %874 = vrot.lane.b32.xlu0 %v842, 64
        %v875 = vpop.permute.xlu0 %874
        %876 = vrot.lane.b32.xlu0 %v845, 64
        %v877 = vpop.permute.xlu0 %876
        %v910 = vunpack.c.l.b16 %v267
        %v911 = vunpack.c.l.b16 %v268
        %v912 = vunpack.c.l.b16 %v269
        %v913 = vunpack.c.l.b16 %v270
        %v914 = vunpack.c.l.b16 %v271
        %v915 = vunpack.c.l.b16 %v272
        %v916 = vunpack.c.l.b16 %v273
        %v917 = vunpack.c.l.b16 %v274
        %v918 = vunpack.c.l.b16 %v275
        %v919 = vunpack.c.l.b16 %v276
        %v920 = vunpack.c.l.b16 %v277
        %v921 = vunpack.c.l.b16 %v278
        %v922 = vunpack.c.l.b16 %v279
        %v923 = vunpack.c.l.b16 %v280
        %v924 = vunpack.c.l.b16 %v281
        %v925 = vunpack.c.l.b16 %v282
        %v926 = vunpack.c.l.b16 %v283
        %v927 = vunpack.c.l.b16 %v284
        %v928 = vunpack.c.l.b16 %v285
        %v929 = vunpack.c.l.b16 %v286
        %v930 = vunpack.c.l.b16 %v287
        %v931 = vunpack.c.l.b16 %v288
        %v932 = vunpack.c.l.b16 %v289
        %v933 = vunpack.c.l.b16 %v290
        %v934 = vunpack.c.l.b16 %v291
        %v935 = vunpack.c.l.b16 %v292
        %v936 = vunpack.c.l.b16 %v293
        %v937 = vunpack.c.l.b16 %v294
        %v938 = vunpack.c.l.b16 %v295
        %v939 = vunpack.c.l.b16 %v296
        %v940 = vunpack.c.l.b16 %v297
        %v941 = vunpack.c.l.b16 %v298
        %v942 = vpack.c.b16 %v911, %v910
        %v943 = vpack.c.b16 %v913, %v912
        %v944 = vpack.c.b16 %v915, %v914
        %v945 = vpack.c.b16 %v917, %v916
        %v946 = vpack.c.b16 %v919, %v918
        %v947 = vpack.c.b16 %v921, %v920
        %v948 = vpack.c.b16 %v923, %v922
        %v949 = vpack.c.b16 %v925, %v924
        %v950 = vpack.c.b16 %v927, %v926
        %v951 = vpack.c.b16 %v929, %v928
        %v952 = vpack.c.b16 %v931, %v930
        %v953 = vpack.c.b16 %v933, %v932
        %v954 = vpack.c.b16 %v935, %v934
        %v955 = vpack.c.b16 %v937, %v936
        %v956 = vpack.c.b16 %v939, %v938
        %v957 = vpack.c.b16 %v941, %v940
        %958 = vrot.lane.b32.xlu0 %v942, 96
        %v959 = vpop.permute.xlu0 %958
        %960 = vrot.lane.b32.xlu0 %v943, 96
        %v961 = vpop.permute.xlu0 %960
        %962 = vrot.lane.b32.xlu0 %v944, 96
        %v963 = vpop.permute.xlu0 %962
        %964 = vrot.lane.b32.xlu0 %v945, 96
        %v965 = vpop.permute.xlu0 %964
        %966 = vrot.lane.b32.xlu0 %v946, 96
        %v967 = vpop.permute.xlu0 %966
        %968 = vrot.lane.b32.xlu0 %v947, 96
        %v969 = vpop.permute.xlu0 %968
        %970 = vrot.lane.b32.xlu0 %v948, 96
        %v971 = vpop.permute.xlu0 %970
        %972 = vrot.lane.b32.xlu0 %v949, 96
        %v973 = vpop.permute.xlu0 %972
        %974 = vrot.lane.b32.xlu0 %v950, 96
        %v975 = vpop.permute.xlu0 %974
        %976 = vrot.lane.b32.xlu0 %v951, 96
        %v977 = vpop.permute.xlu0 %976
        %978 = vrot.lane.b32.xlu0 %v952, 96
        %v979 = vpop.permute.xlu0 %978
        %980 = vrot.lane.b32.xlu0 %v953, 96
        %v981 = vpop.permute.xlu0 %980
        %982 = vrot.lane.b32.xlu0 %v954, 96
        %v983 = vpop.permute.xlu0 %982
        %984 = vrot.lane.b32.xlu0 %v955, 96
        %v985 = vpop.permute.xlu0 %984
        %986 = vrot.lane.b32.xlu0 %v956, 96
        %v987 = vpop.permute.xlu0 %986
        %988 = vrot.lane.b32.xlu0 %v957, 96
        %v989 = vpop.permute.xlu0 %988
        %v1006 = vunpack.c.l.b16 %v299
        %v1007 = vunpack.c.l.b16 %v300
        %v1008 = vunpack.c.l.b16 %v301
        %v1009 = vunpack.c.l.b16 %v302
        %v1010 = vunpack.c.l.b16 %v303
        %v1011 = vunpack.c.l.b16 %v304
        %v1012 = vunpack.c.l.b16 %v305
        %v1013 = vunpack.c.l.b16 %v306
        %v1014 = vunpack.c.l.b16 %v307
        %v1015 = vunpack.c.l.b16 %v308
        %v1016 = vunpack.c.l.b16 %v309
        %v1017 = vunpack.c.l.b16 %v310
        %v1018 = vunpack.c.l.b16 %v311
        %v1019 = vunpack.c.l.b16 %v312
        %v1020 = vunpack.c.l.b16 %v313
        %v1021 = vunpack.c.l.b16 %v314
        %v1022 = vpack.c.b16 %v1006, %v1006
        %v1023 = vpack.c.b16 %v1007, %v1007
        %v1024 = vpack.c.b16 %v1008, %v1008
        %v1025 = vpack.c.b16 %v1009, %v1009
        %v1026 = vpack.c.b16 %v1010, %v1010
        %v1027 = vpack.c.b16 %v1011, %v1011
        %v1028 = vpack.c.b16 %v1012, %v1012
        %v1029 = vpack.c.b16 %v1013, %v1013
        %v1030 = vpack.c.b16 %v1014, %v1014
        %v1031 = vpack.c.b16 %v1015, %v1015
        %v1032 = vpack.c.b16 %v1016, %v1016
        %v1033 = vpack.c.b16 %v1017, %v1017
        %v1034 = vpack.c.b16 %v1018, %v1018
        %v1035 = vpack.c.b16 %v1019, %v1019
        %v1036 = vpack.c.b16 %v1020, %v1020
        %v1037 = vpack.c.b16 %v1021, %v1021
        %v1039 = vshrl.u32 %v942, 16
        %v1041 = vshll.u32 %v942, 16
        %v1043 = vrot.slane %v1041, 1
        %v1044 = vor.u32 %v1039, %v1043
        %v1046 = vshll.u32 %v1022, 16
        %v1048 = vrot.slane %v1046, 1
        %v1049 = vsel %vm524, %v1044, %v1048
        %v1051 = vshrl.u32 %v943, 16
        %v1053 = vshll.u32 %v943, 16
        %v1055 = vrot.slane %v1053, 1
        %v1056 = vor.u32 %v1051, %v1055
        %v1058 = vshll.u32 %v1023, 16
        %v1060 = vrot.slane %v1058, 1
        %v1061 = vsel %vm524, %v1056, %v1060
        %v1063 = vshrl.u32 %v944, 16
        %v1065 = vshll.u32 %v944, 16
        %v1067 = vrot.slane %v1065, 1
        %v1068 = vor.u32 %v1063, %v1067
        %v1070 = vshll.u32 %v1024, 16
        %v1072 = vrot.slane %v1070, 1
        %v1073 = vsel %vm524, %v1068, %v1072
        %v1075 = vshrl.u32 %v945, 16
        %v1077 = vshll.u32 %v945, 16
        %v1079 = vrot.slane %v1077, 1
        %v1080 = vor.u32 %v1075, %v1079
        %v1082 = vshll.u32 %v1025, 16
        %v1084 = vrot.slane %v1082, 1
        %v1085 = vsel %vm524, %v1080, %v1084
        %v1087 = vshrl.u32 %v946, 16
        %v1089 = vshll.u32 %v946, 16
        %v1091 = vrot.slane %v1089, 1
        %v1092 = vor.u32 %v1087, %v1091
        %v1094 = vshll.u32 %v1026, 16
        %v1096 = vrot.slane %v1094, 1
        %v1097 = vsel %vm524, %v1092, %v1096
        %v1099 = vshrl.u32 %v947, 16
        %v1101 = vshll.u32 %v947, 16
        %v1103 = vrot.slane %v1101, 1
        %v1104 = vor.u32 %v1099, %v1103
        %v1106 = vshll.u32 %v1027, 16
        %v1108 = vrot.slane %v1106, 1
        %v1109 = vsel %vm524, %v1104, %v1108
        %v1111 = vshrl.u32 %v948, 16
        %v1113 = vshll.u32 %v948, 16
        %v1115 = vrot.slane %v1113, 1
        %v1116 = vor.u32 %v1111, %v1115
        %v1118 = vshll.u32 %v1028, 16
        %v1120 = vrot.slane %v1118, 1
        %v1121 = vsel %vm524, %v1116, %v1120
        %v1123 = vshrl.u32 %v949, 16
        %v1125 = vshll.u32 %v949, 16
        %v1127 = vrot.slane %v1125, 1
        %v1128 = vor.u32 %v1123, %v1127
        %v1130 = vshll.u32 %v1029, 16
        %v1132 = vrot.slane %v1130, 1
        %v1133 = vsel %vm524, %v1128, %v1132
        %v1135 = vshrl.u32 %v950, 16
        %v1137 = vshll.u32 %v950, 16
        %v1139 = vrot.slane %v1137, 1
        %v1140 = vor.u32 %v1135, %v1139
        %v1142 = vshll.u32 %v1030, 16
        %v1144 = vrot.slane %v1142, 1
        %v1145 = vsel %vm524, %v1140, %v1144
        %v1147 = vshrl.u32 %v951, 16
        %v1149 = vshll.u32 %v951, 16
        %v1151 = vrot.slane %v1149, 1
        %v1152 = vor.u32 %v1147, %v1151
        %v1154 = vshll.u32 %v1031, 16
        %v1156 = vrot.slane %v1154, 1
        %v1157 = vsel %vm524, %v1152, %v1156
        %v1159 = vshrl.u32 %v952, 16
        %v1161 = vshll.u32 %v952, 16
        %v1163 = vrot.slane %v1161, 1
        %v1164 = vor.u32 %v1159, %v1163
        %v1166 = vshll.u32 %v1032, 16
        %v1168 = vrot.slane %v1166, 1
        %v1169 = vsel %vm524, %v1164, %v1168
        %v1171 = vshrl.u32 %v953, 16
        %v1173 = vshll.u32 %v953, 16
        %v1175 = vrot.slane %v1173, 1
        %v1176 = vor.u32 %v1171, %v1175
        %v1178 = vshll.u32 %v1033, 16
        %v1180 = vrot.slane %v1178, 1
        %v1181 = vsel %vm524, %v1176, %v1180
        %v1183 = vshrl.u32 %v954, 16
        %v1185 = vshll.u32 %v954, 16
        %v1187 = vrot.slane %v1185, 1
        %v1188 = vor.u32 %v1183, %v1187
        %v1190 = vshll.u32 %v1034, 16
        %v1192 = vrot.slane %v1190, 1
        %v1193 = vsel %vm524, %v1188, %v1192
        %v1195 = vshrl.u32 %v955, 16
        %v1197 = vshll.u32 %v955, 16
        %v1199 = vrot.slane %v1197, 1
        %v1200 = vor.u32 %v1195, %v1199
        %v1202 = vshll.u32 %v1035, 16
        %v1204 = vrot.slane %v1202, 1
        %v1205 = vsel %vm524, %v1200, %v1204
        %v1207 = vshrl.u32 %v956, 16
        %v1209 = vshll.u32 %v956, 16
        %v1211 = vrot.slane %v1209, 1
        %v1212 = vor.u32 %v1207, %v1211
        %v1214 = vshll.u32 %v1036, 16
        %v1216 = vrot.slane %v1214, 1
        %v1217 = vsel %vm524, %v1212, %v1216
        %v1219 = vshrl.u32 %v957, 16
        %v1221 = vshll.u32 %v957, 16
        %v1223 = vrot.slane %v1221, 1
        %v1224 = vor.u32 %v1219, %v1223
        %v1226 = vshll.u32 %v1037, 16
        %v1228 = vrot.slane %v1226, 1
        %v1229 = vsel %vm524, %v1224, %v1228
        %v1246 = vunpack.c.l.b16 %v315
        %v1247 = vunpack.c.l.b16 %v316
        %v1248 = vunpack.c.l.b16 %v317
        %v1249 = vunpack.c.l.b16 %v318
        %v1250 = vunpack.c.l.b16 %v319
        %v1251 = vunpack.c.l.b16 %v320
        %v1252 = vunpack.c.l.b16 %v321
        %v1253 = vunpack.c.l.b16 %v322
        %v1254 = vunpack.c.l.b16 %v323
        %v1255 = vunpack.c.l.b16 %v324
        %v1256 = vunpack.c.l.b16 %v325
        %v1257 = vunpack.c.l.b16 %v326
        %v1258 = vunpack.c.l.b16 %v327
        %v1259 = vunpack.c.l.b16 %v328
        %v1260 = vunpack.c.l.b16 %v329
        %v1261 = vunpack.c.l.b16 %v330
        %v1262 = vpack.c.b16 %v911, %v1246
        %v1263 = vpack.c.b16 %v913, %v1247
        %v1264 = vpack.c.b16 %v915, %v1248
        %v1265 = vpack.c.b16 %v917, %v1249
        %v1266 = vpack.c.b16 %v919, %v1250
        %v1267 = vpack.c.b16 %v921, %v1251
        %v1268 = vpack.c.b16 %v923, %v1252
        %v1269 = vpack.c.b16 %v925, %v1253
        %v1270 = vpack.c.b16 %v927, %v1254
        %v1271 = vpack.c.b16 %v929, %v1255
        %v1272 = vpack.c.b16 %v931, %v1256
        %v1273 = vpack.c.b16 %v933, %v1257
        %v1274 = vpack.c.b16 %v935, %v1258
        %v1275 = vpack.c.b16 %v937, %v1259
        %v1276 = vpack.c.b16 %v939, %v1260
        %v1277 = vpack.c.b16 %v941, %v1261
        %v1278 = vrot.slane %v1262, 1
        %v1279 = vrot.slane %v1022, 1
        %v1280 = vsel %vm797, %v1278, %v1279
        %v1281 = vrot.slane %v1263, 1
        %v1282 = vrot.slane %v1023, 1
        %v1283 = vsel %vm797, %v1281, %v1282
        %v1284 = vrot.slane %v1264, 1
        %v1285 = vrot.slane %v1024, 1
        %v1286 = vsel %vm797, %v1284, %v1285
        %v1287 = vrot.slane %v1265, 1
        %v1288 = vrot.slane %v1025, 1
        %v1289 = vsel %vm797, %v1287, %v1288
        %v1290 = vrot.slane %v1266, 1
        %v1291 = vrot.slane %v1026, 1
        %v1292 = vsel %vm797, %v1290, %v1291
        %v1293 = vrot.slane %v1267, 1
        %v1294 = vrot.slane %v1027, 1
        %v1295 = vsel %vm797, %v1293, %v1294
        %v1296 = vrot.slane %v1268, 1
        %v1297 = vrot.slane %v1028, 1
        %v1298 = vsel %vm797, %v1296, %v1297
        %v1299 = vrot.slane %v1269, 1
        %v1300 = vrot.slane %v1029, 1
        %v1301 = vsel %vm797, %v1299, %v1300
        %v1302 = vrot.slane %v1270, 1
        %v1303 = vrot.slane %v1030, 1
        %v1304 = vsel %vm797, %v1302, %v1303
        %v1305 = vrot.slane %v1271, 1
        %v1306 = vrot.slane %v1031, 1
        %v1307 = vsel %vm797, %v1305, %v1306
        %v1308 = vrot.slane %v1272, 1
        %v1309 = vrot.slane %v1032, 1
        %v1310 = vsel %vm797, %v1308, %v1309
        %v1311 = vrot.slane %v1273, 1
        %v1312 = vrot.slane %v1033, 1
        %v1313 = vsel %vm797, %v1311, %v1312
        %v1314 = vrot.slane %v1274, 1
        %v1315 = vrot.slane %v1034, 1
        %v1316 = vsel %vm797, %v1314, %v1315
        %v1317 = vrot.slane %v1275, 1
        %v1318 = vrot.slane %v1035, 1
        %v1319 = vsel %vm797, %v1317, %v1318
        %v1320 = vrot.slane %v1276, 1
        %v1321 = vrot.slane %v1036, 1
        %v1322 = vsel %vm797, %v1320, %v1321
        %v1323 = vrot.slane %v1277, 1
        %v1324 = vrot.slane %v1037, 1
        %v1325 = vsel %vm797, %v1323, %v1324
        %1326 = vrot.lane.b32.xlu0 %v1280, 32
        %v1327 = vpop.permute.xlu0 %1326
        %1328 = vrot.lane.b32.xlu0 %v1283, 32
        %v1329 = vpop.permute.xlu0 %1328
        %1330 = vrot.lane.b32.xlu0 %v1286, 32
        %v1331 = vpop.permute.xlu0 %1330
        %1332 = vrot.lane.b32.xlu0 %v1289, 32
        %v1333 = vpop.permute.xlu0 %1332
        %1334 = vrot.lane.b32.xlu0 %v1292, 32
        %v1335 = vpop.permute.xlu0 %1334
        %1336 = vrot.lane.b32.xlu0 %v1295, 32
        %v1337 = vpop.permute.xlu0 %1336
        %1338 = vrot.lane.b32.xlu0 %v1298, 32
        %v1339 = vpop.permute.xlu0 %1338
        %1340 = vrot.lane.b32.xlu0 %v1301, 32
        %v1341 = vpop.permute.xlu0 %1340
        %1342 = vrot.lane.b32.xlu0 %v1304, 32
        %v1343 = vpop.permute.xlu0 %1342
        %1344 = vrot.lane.b32.xlu0 %v1307, 32
        %v1345 = vpop.permute.xlu0 %1344
        %1346 = vrot.lane.b32.xlu0 %v1310, 32
        %v1347 = vpop.permute.xlu0 %1346
        %1348 = vrot.lane.b32.xlu0 %v1313, 32
        %v1349 = vpop.permute.xlu0 %1348
        %1350 = vrot.lane.b32.xlu0 %v1316, 32
        %v1351 = vpop.permute.xlu0 %1350
        %1352 = vrot.lane.b32.xlu0 %v1319, 32
        %v1353 = vpop.permute.xlu0 %1352
        %1354 = vrot.lane.b32.xlu0 %v1322, 32
        %v1355 = vpop.permute.xlu0 %1354
        %1356 = vrot.lane.b32.xlu0 %v1325, 32
        %v1357 = vpop.permute.xlu0 %1356
        %v1390 = vunpack.c.l.b16 %v332
        %v1391 = vunpack.c.l.b16 %v333
        %v1392 = vunpack.c.l.b16 %v334
        %v1393 = vunpack.c.l.b16 %v335
        %v1394 = vunpack.c.l.b16 %v336
        %v1395 = vunpack.c.l.b16 %v337
        %v1396 = vunpack.c.l.b16 %v338
        %v1397 = vunpack.c.l.b16 %v339
        %v1398 = vunpack.c.l.b16 %v340
        %v1399 = vunpack.c.l.b16 %v341
        %v1400 = vunpack.c.l.b16 %v342
        %v1401 = vunpack.c.l.b16 %v343
        %v1402 = vunpack.c.l.b16 %v344
        %v1403 = vunpack.c.l.b16 %v345
        %v1404 = vunpack.c.l.b16 %v346
        %v1405 = vunpack.c.l.b16 %v347
        %v1406 = vunpack.c.l.b16 %v348
        %v1407 = vunpack.c.l.b16 %v349
        %v1408 = vunpack.c.l.b16 %v350
        %v1409 = vunpack.c.l.b16 %v351
        %v1410 = vunpack.c.l.b16 %v352
        %v1411 = vunpack.c.l.b16 %v353
        %v1412 = vunpack.c.l.b16 %v354
        %v1413 = vunpack.c.l.b16 %v355
        %v1414 = vunpack.c.l.b16 %v356
        %v1415 = vunpack.c.l.b16 %v357
        %v1416 = vunpack.c.l.b16 %v358
        %v1417 = vunpack.c.l.b16 %v359
        %v1418 = vunpack.c.l.b16 %v360
        %v1419 = vunpack.c.l.b16 %v361
        %v1420 = vunpack.c.l.b16 %v362
        %v1421 = vunpack.c.l.b16 %v363
        %v1422 = vpack.c.b16 %v1391, %v1390
        %v1423 = vpack.c.b16 %v1393, %v1392
        %v1424 = vpack.c.b16 %v1395, %v1394
        %v1425 = vpack.c.b16 %v1397, %v1396
        %v1426 = vpack.c.b16 %v1399, %v1398
        %v1427 = vpack.c.b16 %v1401, %v1400
        %v1428 = vpack.c.b16 %v1403, %v1402
        %v1429 = vpack.c.b16 %v1405, %v1404
        %v1430 = vpack.c.b16 %v1407, %v1406
        %v1431 = vpack.c.b16 %v1409, %v1408
        %v1432 = vpack.c.b16 %v1411, %v1410
        %v1433 = vpack.c.b16 %v1413, %v1412
        %v1434 = vpack.c.b16 %v1415, %v1414
        %v1435 = vpack.c.b16 %v1417, %v1416
        %v1436 = vpack.c.b16 %v1419, %v1418
        %v1437 = vpack.c.b16 %v1421, %v1420
        %1438 = vrot.lane.b32.xlu0 %v1422, 64
        %v1439 = vpop.permute.xlu0 %1438
        %1440 = vrot.lane.b32.xlu0 %v1423, 64
        %v1441 = vpop.permute.xlu0 %1440
        %1442 = vrot.lane.b32.xlu0 %v1424, 64
        %v1443 = vpop.permute.xlu0 %1442
        %1444 = vrot.lane.b32.xlu0 %v1425, 64
        %v1445 = vpop.permute.xlu0 %1444
        %1446 = vrot.lane.b32.xlu0 %v1426, 64
        %v1447 = vpop.permute.xlu0 %1446
        %1448 = vrot.lane.b32.xlu0 %v1427, 64
        %v1449 = vpop.permute.xlu0 %1448
        %1450 = vrot.lane.b32.xlu0 %v1428, 64
        %v1451 = vpop.permute.xlu0 %1450
        %1452 = vrot.lane.b32.xlu0 %v1429, 64
        %v1453 = vpop.permute.xlu0 %1452
        %1454 = vrot.lane.b32.xlu0 %v1430, 64
        %v1455 = vpop.permute.xlu0 %1454
        %1456 = vrot.lane.b32.xlu0 %v1431, 64
        %v1457 = vpop.permute.xlu0 %1456
        %1458 = vrot.lane.b32.xlu0 %v1432, 64
        %v1459 = vpop.permute.xlu0 %1458
        %1460 = vrot.lane.b32.xlu0 %v1433, 64
        %v1461 = vpop.permute.xlu0 %1460
        %1462 = vrot.lane.b32.xlu0 %v1434, 64
        %v1463 = vpop.permute.xlu0 %1462
        %1464 = vrot.lane.b32.xlu0 %v1435, 64
        %v1465 = vpop.permute.xlu0 %1464
        %1466 = vrot.lane.b32.xlu0 %v1436, 64
        %v1467 = vpop.permute.xlu0 %1466
        %1468 = vrot.lane.b32.xlu0 %v1437, 64
        %v1469 = vpop.permute.xlu0 %1468
        %v1486 = vunpack.c.l.b16 %v364
        %v1487 = vunpack.c.l.b16 %v365
        %v1488 = vunpack.c.l.b16 %v366
        %v1489 = vunpack.c.l.b16 %v367
        %v1490 = vunpack.c.l.b16 %v368
        %v1491 = vunpack.c.l.b16 %v369
        %v1492 = vunpack.c.l.b16 %v370
        %v1493 = vunpack.c.l.b16 %v371
        %v1494 = vunpack.c.l.b16 %v372
        %v1495 = vunpack.c.l.b16 %v373
        %v1496 = vunpack.c.l.b16 %v374
        %v1497 = vunpack.c.l.b16 %v375
        %v1498 = vunpack.c.l.b16 %v376
        %v1499 = vunpack.c.l.b16 %v377
        %v1500 = vunpack.c.l.b16 %v378
        %v1501 = vunpack.c.l.b16 %v379
        %v1502 = vpack.c.b16 %v1486, %v1486
        %v1503 = vpack.c.b16 %v1487, %v1487
        %v1504 = vpack.c.b16 %v1488, %v1488
        %v1505 = vpack.c.b16 %v1489, %v1489
        %v1506 = vpack.c.b16 %v1490, %v1490
        %v1507 = vpack.c.b16 %v1491, %v1491
        %v1508 = vpack.c.b16 %v1492, %v1492
        %v1509 = vpack.c.b16 %v1493, %v1493
        %v1510 = vpack.c.b16 %v1494, %v1494
        %v1511 = vpack.c.b16 %v1495, %v1495
        %v1512 = vpack.c.b16 %v1496, %v1496
        %v1513 = vpack.c.b16 %v1497, %v1497
        %v1514 = vpack.c.b16 %v1498, %v1498
        %v1515 = vpack.c.b16 %v1499, %v1499
        %v1516 = vpack.c.b16 %v1500, %v1500
        %v1517 = vpack.c.b16 %v1501, %v1501
        %v1519 = vshrl.u32 %v1422, 16
        %v1521 = vshll.u32 %v1422, 16
        %v1523 = vrot.slane %v1521, 1
        %v1524 = vor.u32 %v1519, %v1523
        %v1526 = vshll.u32 %v1502, 16
        %v1528 = vrot.slane %v1526, 1
        %v1529 = vsel %vm524, %v1524, %v1528
        %v1531 = vshrl.u32 %v1423, 16
        %v1533 = vshll.u32 %v1423, 16
        %v1535 = vrot.slane %v1533, 1
        %v1536 = vor.u32 %v1531, %v1535
        %v1538 = vshll.u32 %v1503, 16
        %v1540 = vrot.slane %v1538, 1
        %v1541 = vsel %vm524, %v1536, %v1540
        %v1543 = vshrl.u32 %v1424, 16
        %v1545 = vshll.u32 %v1424, 16
        %v1547 = vrot.slane %v1545, 1
        %v1548 = vor.u32 %v1543, %v1547
        %v1550 = vshll.u32 %v1504, 16
        %v1552 = vrot.slane %v1550, 1
        %v1553 = vsel %vm524, %v1548, %v1552
        %v1555 = vshrl.u32 %v1425, 16
        %v1557 = vshll.u32 %v1425, 16
        %v1559 = vrot.slane %v1557, 1
        %v1560 = vor.u32 %v1555, %v1559
        %v1562 = vshll.u32 %v1505, 16
        %v1564 = vrot.slane %v1562, 1
        %v1565 = vsel %vm524, %v1560, %v1564
        %v1567 = vshrl.u32 %v1426, 16
        %v1569 = vshll.u32 %v1426, 16
        %v1571 = vrot.slane %v1569, 1
        %v1572 = vor.u32 %v1567, %v1571
        %v1574 = vshll.u32 %v1506, 16
        %v1576 = vrot.slane %v1574, 1
        %v1577 = vsel %vm524, %v1572, %v1576
        %v1579 = vshrl.u32 %v1427, 16
        %v1581 = vshll.u32 %v1427, 16
        %v1583 = vrot.slane %v1581, 1
        %v1584 = vor.u32 %v1579, %v1583
        %v1586 = vshll.u32 %v1507, 16
        %v1588 = vrot.slane %v1586, 1
        %v1589 = vsel %vm524, %v1584, %v1588
        %v1591 = vshrl.u32 %v1428, 16
        %v1593 = vshll.u32 %v1428, 16
        %v1595 = vrot.slane %v1593, 1
        %v1596 = vor.u32 %v1591, %v1595
        %v1598 = vshll.u32 %v1508, 16
        %v1600 = vrot.slane %v1598, 1
        %v1601 = vsel %vm524, %v1596, %v1600
        %v1603 = vshrl.u32 %v1429, 16
        %v1605 = vshll.u32 %v1429, 16
        %v1607 = vrot.slane %v1605, 1
        %v1608 = vor.u32 %v1603, %v1607
        %v1610 = vshll.u32 %v1509, 16
        %v1612 = vrot.slane %v1610, 1
        %v1613 = vsel %vm524, %v1608, %v1612
        %v1615 = vshrl.u32 %v1430, 16
        %v1617 = vshll.u32 %v1430, 16
        %v1619 = vrot.slane %v1617, 1
        %v1620 = vor.u32 %v1615, %v1619
        %v1622 = vshll.u32 %v1510, 16
        %v1624 = vrot.slane %v1622, 1
        %v1625 = vsel %vm524, %v1620, %v1624
        %v1627 = vshrl.u32 %v1431, 16
        %v1629 = vshll.u32 %v1431, 16
        %v1631 = vrot.slane %v1629, 1
        %v1632 = vor.u32 %v1627, %v1631
        %v1634 = vshll.u32 %v1511, 16
        %v1636 = vrot.slane %v1634, 1
        %v1637 = vsel %vm524, %v1632, %v1636
        %v1639 = vshrl.u32 %v1432, 16
        %v1641 = vshll.u32 %v1432, 16
        %v1643 = vrot.slane %v1641, 1
        %v1644 = vor.u32 %v1639, %v1643
        %v1646 = vshll.u32 %v1512, 16
        %v1648 = vrot.slane %v1646, 1
        %v1649 = vsel %vm524, %v1644, %v1648
        %v1651 = vshrl.u32 %v1433, 16
        %v1653 = vshll.u32 %v1433, 16
        %v1655 = vrot.slane %v1653, 1
        %v1656 = vor.u32 %v1651, %v1655
        %v1658 = vshll.u32 %v1513, 16
        %v1660 = vrot.slane %v1658, 1
        %v1661 = vsel %vm524, %v1656, %v1660
        %v1663 = vshrl.u32 %v1434, 16
        %v1665 = vshll.u32 %v1434, 16
        %v1667 = vrot.slane %v1665, 1
        %v1668 = vor.u32 %v1663, %v1667
        %v1670 = vshll.u32 %v1514, 16
        %v1672 = vrot.slane %v1670, 1
        %v1673 = vsel %vm524, %v1668, %v1672
        %v1675 = vshrl.u32 %v1435, 16
        %v1677 = vshll.u32 %v1435, 16
        %v1679 = vrot.slane %v1677, 1
        %v1680 = vor.u32 %v1675, %v1679
        %v1682 = vshll.u32 %v1515, 16
        %v1684 = vrot.slane %v1682, 1
        %v1685 = vsel %vm524, %v1680, %v1684
        %v1687 = vshrl.u32 %v1436, 16
        %v1689 = vshll.u32 %v1436, 16
        %v1691 = vrot.slane %v1689, 1
        %v1692 = vor.u32 %v1687, %v1691
        %v1694 = vshll.u32 %v1516, 16
        %v1696 = vrot.slane %v1694, 1
        %v1697 = vsel %vm524, %v1692, %v1696
        %v1699 = vshrl.u32 %v1437, 16
        %v1701 = vshll.u32 %v1437, 16
        %v1703 = vrot.slane %v1701, 1
        %v1704 = vor.u32 %v1699, %v1703
        %v1706 = vshll.u32 %v1517, 16
        %v1708 = vrot.slane %v1706, 1
        %v1709 = vsel %vm524, %v1704, %v1708
        %1710 = vrot.lane.b32.xlu0 %v1529, 96
        %v1711 = vpop.permute.xlu0 %1710
        %1712 = vrot.lane.b32.xlu0 %v1541, 96
        %v1713 = vpop.permute.xlu0 %1712
        %1714 = vrot.lane.b32.xlu0 %v1553, 96
        %v1715 = vpop.permute.xlu0 %1714
        %1716 = vrot.lane.b32.xlu0 %v1565, 96
        %v1717 = vpop.permute.xlu0 %1716
        %1718 = vrot.lane.b32.xlu0 %v1577, 96
        %v1719 = vpop.permute.xlu0 %1718
        %1720 = vrot.lane.b32.xlu0 %v1589, 96
        %v1721 = vpop.permute.xlu0 %1720
        %1722 = vrot.lane.b32.xlu0 %v1601, 96
        %v1723 = vpop.permute.xlu0 %1722
        %1724 = vrot.lane.b32.xlu0 %v1613, 96
        %v1725 = vpop.permute.xlu0 %1724
        %1726 = vrot.lane.b32.xlu0 %v1625, 96
        %v1727 = vpop.permute.xlu0 %1726
        %1728 = vrot.lane.b32.xlu0 %v1637, 96
        %v1729 = vpop.permute.xlu0 %1728
        %1730 = vrot.lane.b32.xlu0 %v1649, 96
        %v1731 = vpop.permute.xlu0 %1730
        %1732 = vrot.lane.b32.xlu0 %v1661, 96
        %v1733 = vpop.permute.xlu0 %1732
        %1734 = vrot.lane.b32.xlu0 %v1673, 96
        %v1735 = vpop.permute.xlu0 %1734
        %1736 = vrot.lane.b32.xlu0 %v1685, 96
        %v1737 = vpop.permute.xlu0 %1736
        %1738 = vrot.lane.b32.xlu0 %v1697, 96
        %v1739 = vpop.permute.xlu0 %1738
        %1740 = vrot.lane.b32.xlu0 %v1709, 96
        %v1741 = vpop.permute.xlu0 %1740
        %v1758 = vunpack.c.l.b16 %v380
        %v1759 = vunpack.c.l.b16 %v381
        %v1760 = vunpack.c.l.b16 %v382
        %v1761 = vunpack.c.l.b16 %v383
        %v1762 = vunpack.c.l.b16 %v384
        %v1763 = vunpack.c.l.b16 %v385
        %v1764 = vunpack.c.l.b16 %v386
        %v1765 = vunpack.c.l.b16 %v387
        %v1766 = vunpack.c.l.b16 %v388
        %v1767 = vunpack.c.l.b16 %v389
        %v1768 = vunpack.c.l.b16 %v390
        %v1769 = vunpack.c.l.b16 %v391
        %v1770 = vunpack.c.l.b16 %v392
        %v1771 = vunpack.c.l.b16 %v393
        %v1772 = vunpack.c.l.b16 %v394
        %v1773 = vunpack.c.l.b16 %v395
        %v1774 = vpack.c.b16 %v1391, %v1758
        %v1775 = vpack.c.b16 %v1393, %v1759
        %v1776 = vpack.c.b16 %v1395, %v1760
        %v1777 = vpack.c.b16 %v1397, %v1761
        %v1778 = vpack.c.b16 %v1399, %v1762
        %v1779 = vpack.c.b16 %v1401, %v1763
        %v1780 = vpack.c.b16 %v1403, %v1764
        %v1781 = vpack.c.b16 %v1405, %v1765
        %v1782 = vpack.c.b16 %v1407, %v1766
        %v1783 = vpack.c.b16 %v1409, %v1767
        %v1784 = vpack.c.b16 %v1411, %v1768
        %v1785 = vpack.c.b16 %v1413, %v1769
        %v1786 = vpack.c.b16 %v1415, %v1770
        %v1787 = vpack.c.b16 %v1417, %v1771
        %v1788 = vpack.c.b16 %v1419, %v1772
        %v1789 = vpack.c.b16 %v1421, %v1773
        %v1790 = vrot.slane %v1774, 1
        %v1791 = vrot.slane %v1502, 1
        %v1792 = vsel %vm797, %v1790, %v1791
        %v1793 = vrot.slane %v1775, 1
        %v1794 = vrot.slane %v1503, 1
        %v1795 = vsel %vm797, %v1793, %v1794
        %v1796 = vrot.slane %v1776, 1
        %v1797 = vrot.slane %v1504, 1
        %v1798 = vsel %vm797, %v1796, %v1797
        %v1799 = vrot.slane %v1777, 1
        %v1800 = vrot.slane %v1505, 1
        %v1801 = vsel %vm797, %v1799, %v1800
        %v1802 = vrot.slane %v1778, 1
        %v1803 = vrot.slane %v1506, 1
        %v1804 = vsel %vm797, %v1802, %v1803
        %v1805 = vrot.slane %v1779, 1
        %v1806 = vrot.slane %v1507, 1
        %v1807 = vsel %vm797, %v1805, %v1806
        %v1808 = vrot.slane %v1780, 1
        %v1809 = vrot.slane %v1508, 1
        %v1810 = vsel %vm797, %v1808, %v1809
        %v1811 = vrot.slane %v1781, 1
        %v1812 = vrot.slane %v1509, 1
        %v1813 = vsel %vm797, %v1811, %v1812
        %v1814 = vrot.slane %v1782, 1
        %v1815 = vrot.slane %v1510, 1
        %v1816 = vsel %vm797, %v1814, %v1815
        %v1817 = vrot.slane %v1783, 1
        %v1818 = vrot.slane %v1511, 1
        %v1819 = vsel %vm797, %v1817, %v1818
        %v1820 = vrot.slane %v1784, 1
        %v1821 = vrot.slane %v1512, 1
        %v1822 = vsel %vm797, %v1820, %v1821
        %v1823 = vrot.slane %v1785, 1
        %v1824 = vrot.slane %v1513, 1
        %v1825 = vsel %vm797, %v1823, %v1824
        %v1826 = vrot.slane %v1786, 1
        %v1827 = vrot.slane %v1514, 1
        %v1828 = vsel %vm797, %v1826, %v1827
        %v1829 = vrot.slane %v1787, 1
        %v1830 = vrot.slane %v1515, 1
        %v1831 = vsel %vm797, %v1829, %v1830
        %v1832 = vrot.slane %v1788, 1
        %v1833 = vrot.slane %v1516, 1
        %v1834 = vsel %vm797, %v1832, %v1833
        %v1835 = vrot.slane %v1789, 1
        %v1836 = vrot.slane %v1517, 1
        %v1837 = vsel %vm797, %v1835, %v1836
        %vm1838 = vcmask 261120
        %v1840 = vsel %vm1838, %v460, %v718
        %v1842 = vsel %vm1838, %v461, %v720
        %v1844 = vsel %vm1838, %v462, %v722
        %v1846 = vsel %vm1838, %v463, %v724
        %v1848 = vsel %vm1838, %v464, %v726
        %v1850 = vsel %vm1838, %v465, %v728
        %v1852 = vsel %vm1838, %v466, %v730
        %v1854 = vsel %vm1838, %v467, %v732
        %v1856 = vsel %vm1838, %v468, %v734
        %v1858 = vsel %vm1838, %v469, %v736
        %v1860 = vsel %vm1838, %v470, %v738
        %v1862 = vsel %vm1838, %v471, %v740
        %v1864 = vsel %vm1838, %v472, %v742
        %v1866 = vsel %vm1838, %v473, %v744
        %v1868 = vsel %vm1838, %v474, %v746
        %v1870 = vsel %vm1838, %v475, %v748
        %vm1871 = vcmask 523264
        %v1873 = vsel %vm1871, %v1840, %v847
        %v1875 = vsel %vm1871, %v1842, %v849
        %v1877 = vsel %vm1871, %v1844, %v851
        %v1879 = vsel %vm1871, %v1846, %v853
        %v1881 = vsel %vm1871, %v1848, %v855
        %v1883 = vsel %vm1871, %v1850, %v857
        %v1885 = vsel %vm1871, %v1852, %v859
        %v1887 = vsel %vm1871, %v1854, %v861
        %v1889 = vsel %vm1871, %v1856, %v863
        %v1891 = vsel %vm1871, %v1858, %v865
        %v1893 = vsel %vm1871, %v1860, %v867
        %v1895 = vsel %vm1871, %v1862, %v869
        %v1897 = vsel %vm1871, %v1864, %v871
        %v1899 = vsel %vm1871, %v1866, %v873
        %v1901 = vsel %vm1871, %v1868, %v875
        %v1903 = vsel %vm1871, %v1870, %v877
        %vm1904 = vcmask 785408
        %v1906 = vsel %vm1904, %v1873, %v959
        %v1909 = vsel %vm1904, %v1875, %v961
        %v1912 = vsel %vm1904, %v1877, %v963
        %v1915 = vsel %vm1904, %v1879, %v965
        %v1918 = vsel %vm1904, %v1881, %v967
        %v1921 = vsel %vm1904, %v1883, %v969
        %v1924 = vsel %vm1904, %v1885, %v971
        %v1927 = vsel %vm1904, %v1887, %v973
        %v1930 = vsel %vm1904, %v1889, %v975
        %v1933 = vsel %vm1904, %v1891, %v977
        %v1936 = vsel %vm1904, %v1893, %v979
        %v1939 = vsel %vm1904, %v1895, %v981
        %v1942 = vsel %vm1904, %v1897, %v983
        %v1945 = vsel %vm1904, %v1899, %v985
        %v1948 = vsel %vm1904, %v1901, %v987
        %v1951 = vsel %vm1904, %v1903, %v989
        %v1955 = vsel %vm1838, %v1049, %v1327
        %v1958 = vsel %vm1838, %v1061, %v1329
        %v1961 = vsel %vm1838, %v1073, %v1331
        %v1964 = vsel %vm1838, %v1085, %v1333
        %v1967 = vsel %vm1838, %v1097, %v1335
        %v1970 = vsel %vm1838, %v1109, %v1337
        %v1973 = vsel %vm1838, %v1121, %v1339
        %v1976 = vsel %vm1838, %v1133, %v1341
        %v1979 = vsel %vm1838, %v1145, %v1343
        %v1982 = vsel %vm1838, %v1157, %v1345
        %v1985 = vsel %vm1838, %v1169, %v1347
        %v1988 = vsel %vm1838, %v1181, %v1349
        %v1991 = vsel %vm1838, %v1193, %v1351
        %v1994 = vsel %vm1838, %v1205, %v1353
        %v1997 = vsel %vm1838, %v1217, %v1355
        %v2000 = vsel %vm1838, %v1229, %v1357
        %v2002 = vsel %vm1871, %v1955, %v1439
        %v2004 = vsel %vm1871, %v1958, %v1441
        %v2006 = vsel %vm1871, %v1961, %v1443
        %v2008 = vsel %vm1871, %v1964, %v1445
        %v2010 = vsel %vm1871, %v1967, %v1447
        %v2012 = vsel %vm1871, %v1970, %v1449
        %v2014 = vsel %vm1871, %v1973, %v1451
        %v2016 = vsel %vm1871, %v1976, %v1453
        %v2018 = vsel %vm1871, %v1979, %v1455
        %v2020 = vsel %vm1871, %v1982, %v1457
        %v2022 = vsel %vm1871, %v1985, %v1459
        %v2024 = vsel %vm1871, %v1988, %v1461
        %v2026 = vsel %vm1871, %v1991, %v1463
        %v2028 = vsel %vm1871, %v1994, %v1465
        %v2030 = vsel %vm1871, %v1997, %v1467
        %v2032 = vsel %vm1871, %v2000, %v1469
        %v2034 = vsel %vm1904, %v2002, %v1711
        %v2037 = vsel %vm1904, %v2004, %v1713
        %v2040 = vsel %vm1904, %v2006, %v1715
        %v2043 = vsel %vm1904, %v2008, %v1717
        %v2046 = vsel %vm1904, %v2010, %v1719
        %v2049 = vsel %vm1904, %v2012, %v1721
        %v2052 = vsel %vm1904, %v2014, %v1723
        %v2055 = vsel %vm1904, %v2016, %v1725
        %v2058 = vsel %vm1904, %v2018, %v1727
        %v2061 = vsel %vm1904, %v2020, %v1729
        %v2064 = vsel %vm1904, %v2022, %v1731
        %v2067 = vsel %vm1904, %v2024, %v1733
        %v2070 = vsel %vm1904, %v2026, %v1735
        %v2073 = vsel %vm1904, %v2028, %v1737
        %v2076 = vsel %vm1904, %v2030, %v1739
        %v2079 = vsel %vm1904, %v2032, %v1741
        %v2081 = vld [vmem:[#allocation2] sm:$0xff]
        %v2082 = vld [vmem:[#allocation2 + $0x8] sm:$0xff]
        %v2083 = vld [vmem:[#allocation2 + $0x10] sm:$0xff]
        %v2084 = vld [vmem:[#allocation2 + $0x18] sm:$0xff]
        %v2085 = vld [vmem:[#allocation2 + $0x20] sm:$0xff]
        %v2086 = vld [vmem:[#allocation2 + $0x28] sm:$0xff]
        %v2087 = vld [vmem:[#allocation2 + $0x30] sm:$0xff]
        %v2088 = vld [vmem:[#allocation2 + $0x38] sm:$0xff]
        %v2089 = vld [vmem:[#allocation2 + $0x40] sm:$0xff]
        %v2090 = vld [vmem:[#allocation2 + $0x48] sm:$0xff]
        %v2091 = vld [vmem:[#allocation2 + $0x50] sm:$0xff]
        %v2092 = vld [vmem:[#allocation2 + $0x58] sm:$0xff]
        %v2093 = vld [vmem:[#allocation2 + $0x60] sm:$0xff]
        %v2094 = vld [vmem:[#allocation2 + $0x68] sm:$0xff]
        %v2095 = vld [vmem:[#allocation2 + $0x70] sm:$0xff]
        %v2096 = vld [vmem:[#allocation2 + $0x78] sm:$0xff]
        %v2097 = vld [vmem:[#allocation2 + $0x80] sm:$0xff]
        %v2098 = vld [vmem:[#allocation2 + $0x88] sm:$0xff]
        %v2099 = vld [vmem:[#allocation2 + $0x90] sm:$0xff]
        %v2100 = vld [vmem:[#allocation2 + $0x98] sm:$0xff]
        %v2101 = vld [vmem:[#allocation2 + $0xa0] sm:$0xff]
        %v2102 = vld [vmem:[#allocation2 + $0xa8] sm:$0xff]
        %v2103 = vld [vmem:[#allocation2 + $0xb0] sm:$0xff]
        %v2104 = vld [vmem:[#allocation2 + $0xb8] sm:$0xff]
        %v2105 = vld [vmem:[#allocation2 + $0xc0] sm:$0xff]
        %v2106 = vld [vmem:[#allocation2 + $0xc8] sm:$0xff]
        %v2107 = vld [vmem:[#allocation2 + $0xd0] sm:$0xff]
        %v2108 = vld [vmem:[#allocation2 + $0xd8] sm:$0xff]
        %v2109 = vld [vmem:[#allocation2 + $0xe0] sm:$0xff]
        %v2110 = vld [vmem:[#allocation2 + $0xe8] sm:$0xff]
        %v2111 = vld [vmem:[#allocation2 + $0xf0] sm:$0xff]
        %v2112 = vld [vmem:[#allocation2 + $0xf8] sm:$0xff]
        %v2113 = vld [vmem:[#allocation2 + $0x100] sm:$0xff]
        %v2114 = vld [vmem:[#allocation2 + $0x108] sm:$0xff]
        %v2115 = vld [vmem:[#allocation2 + $0x110] sm:$0xff]
        %v2116 = vld [vmem:[#allocation2 + $0x118] sm:$0xff]
        %v2117 = vld [vmem:[#allocation2 + $0x120] sm:$0xff]
        %v2118 = vld [vmem:[#allocation2 + $0x128] sm:$0xff]
        %v2119 = vld [vmem:[#allocation2 + $0x130] sm:$0xff]
        %v2120 = vld [vmem:[#allocation2 + $0x138] sm:$0xff]
        %v2121 = vld [vmem:[#allocation2 + $0x140] sm:$0xff]
        %v2122 = vld [vmem:[#allocation2 + $0x148] sm:$0xff]
        %v2123 = vld [vmem:[#allocation2 + $0x150] sm:$0xff]
        %v2124 = vld [vmem:[#allocation2 + $0x158] sm:$0xff]
        %v2125 = vld [vmem:[#allocation2 + $0x160] sm:$0xff]
        %v2126 = vld [vmem:[#allocation2 + $0x168] sm:$0xff]
        %v2127 = vld [vmem:[#allocation2 + $0x170] sm:$0xff]
        %v2128 = vld [vmem:[#allocation2 + $0x178] sm:$0xff]
        %v2129 = vld [vmem:[#allocation2 + $0x180] sm:$0xff]
        %v2130 = vld [vmem:[#allocation2 + $0x188] sm:$0xff]
        %v2131 = vld [vmem:[#allocation2 + $0x190] sm:$0xff]
        %v2132 = vld [vmem:[#allocation2 + $0x198] sm:$0xff]
        %v2133 = vld [vmem:[#allocation2 + $0x1a0] sm:$0xff]
        %v2134 = vld [vmem:[#allocation2 + $0x1a8] sm:$0xff]
        %v2135 = vld [vmem:[#allocation2 + $0x1b0] sm:$0xff]
        %v2136 = vld [vmem:[#allocation2 + $0x1b8] sm:$0xff]
        %v2137 = vld [vmem:[#allocation2 + $0x1c0] sm:$0xff]
        %v2138 = vld [vmem:[#allocation2 + $0x1c8] sm:$0xff]
        %v2139 = vld [vmem:[#allocation2 + $0x1d0] sm:$0xff]
        %v2140 = vld [vmem:[#allocation2 + $0x1d8] sm:$0xff]
        %v2141 = vld [vmem:[#allocation2 + $0x1e0] sm:$0xff]
        %v2142 = vld [vmem:[#allocation2 + $0x1e8] sm:$0xff]
        %v2143 = vld [vmem:[#allocation2 + $0x1f0] sm:$0xff]
        %v2144 = vld [vmem:[#allocation2 + $0x1f8] sm:$0xff]
        %v2145 = vld [vmem:[#allocation2 + $0x200] sm:$0xff]
        %v2146 = vld [vmem:[#allocation2 + $0x208] sm:$0xff]
        %v2147 = vld [vmem:[#allocation2 + $0x210] sm:$0xff]
        %v2148 = vld [vmem:[#allocation2 + $0x218] sm:$0xff]
        %v2149 = vld [vmem:[#allocation2 + $0x220] sm:$0xff]
        %v2150 = vld [vmem:[#allocation2 + $0x228] sm:$0xff]
        %v2151 = vld [vmem:[#allocation2 + $0x230] sm:$0xff]
        %v2152 = vld [vmem:[#allocation2 + $0x238] sm:$0xff]
        %v2153 = vld [vmem:[#allocation5] sm:$0xf]
        %v2155 = vperm.slane %v2153, 0
        %v2156 = vperm.slane %v2153, 1
        %v2157 = vperm.slane %v2153, 2
        %v2158 = vperm.slane %v2153, 3
        %v2235 = vunpack.c.l.b16 %v2081
        %v2236 = vunpack.c.h.b16 %v2081
        %v2237 = vunpack.c.l.b16 %v2082
        %v2238 = vunpack.c.h.b16 %v2082
        %v2239 = vunpack.c.l.b16 %v2083
        %v2240 = vunpack.c.h.b16 %v2083
        %v2241 = vunpack.c.l.b16 %v2084
        %v2242 = vunpack.c.h.b16 %v2084
        %v2243 = vunpack.c.l.b16 %v2085
        %v2244 = vunpack.c.h.b16 %v2085
        %v2245 = vunpack.c.l.b16 %v2086
        %v2246 = vunpack.c.h.b16 %v2086
        %v2247 = vunpack.c.l.b16 %v2087
        %v2248 = vunpack.c.h.b16 %v2087
        %v2249 = vunpack.c.l.b16 %v2088
        %v2250 = vunpack.c.h.b16 %v2088
        %v2251 = vunpack.c.l.b16 %v2089
        %v2252 = vunpack.c.h.b16 %v2089
        %v2253 = vunpack.c.l.b16 %v2090
        %v2254 = vunpack.c.h.b16 %v2090
        %v2255 = vunpack.c.l.b16 %v2091
        %v2256 = vunpack.c.h.b16 %v2091
        %v2257 = vunpack.c.l.b16 %v2092
        %v2258 = vunpack.c.h.b16 %v2092
        %v2259 = vunpack.c.l.b16 %v2093
        %v2260 = vunpack.c.h.b16 %v2093
        %v2261 = vunpack.c.l.b16 %v2094
        %v2262 = vunpack.c.h.b16 %v2094
        %v2263 = vunpack.c.l.b16 %v2095
        %v2264 = vunpack.c.h.b16 %v2095
        %v2265 = vunpack.c.l.b16 %v2096
        %v2266 = vunpack.c.h.b16 %v2096
        %v2267 = vunpack.c.l.b16 %v2097
        %v2268 = vunpack.c.h.b16 %v2097
        %v2269 = vunpack.c.l.b16 %v2098
        %v2270 = vunpack.c.h.b16 %v2098
        %v2271 = vunpack.c.l.b16 %v2099
        %v2272 = vunpack.c.h.b16 %v2099
        %v2273 = vunpack.c.l.b16 %v2100
        %v2274 = vunpack.c.h.b16 %v2100
        %v2275 = vunpack.c.l.b16 %v2101
        %v2276 = vunpack.c.h.b16 %v2101
        %v2277 = vunpack.c.l.b16 %v2102
        %v2278 = vunpack.c.h.b16 %v2102
        %v2279 = vunpack.c.l.b16 %v2103
        %v2280 = vunpack.c.h.b16 %v2103
        %v2281 = vunpack.c.l.b16 %v2104
        %v2282 = vunpack.c.h.b16 %v2104
        %v2283 = vunpack.c.l.b16 %v2105
        %v2284 = vunpack.c.h.b16 %v2105
        %v2285 = vunpack.c.l.b16 %v2106
        %v2286 = vunpack.c.h.b16 %v2106
        %v2287 = vunpack.c.l.b16 %v2107
        %v2288 = vunpack.c.h.b16 %v2107
        %v2289 = vunpack.c.l.b16 %v2108
        %v2290 = vunpack.c.h.b16 %v2108
        %v2291 = vunpack.c.l.b16 %v2109
        %v2292 = vunpack.c.h.b16 %v2109
        %v2293 = vunpack.c.l.b16 %v2110
        %v2294 = vunpack.c.h.b16 %v2110
        %v2295 = vunpack.c.l.b16 %v2111
        %v2296 = vunpack.c.h.b16 %v2111
        %v2297 = vunpack.c.l.b16 %v2112
        %v2298 = vunpack.c.h.b16 %v2112
        %v2299 = vunpack.c.l.b16 %v2113
        %v2300 = vunpack.c.h.b16 %v2113
        %v2301 = vunpack.c.l.b16 %v2114
        %v2302 = vunpack.c.h.b16 %v2114
        %v2303 = vunpack.c.l.b16 %v2115
        %v2304 = vunpack.c.h.b16 %v2115
        %v2305 = vunpack.c.l.b16 %v2116
        %v2306 = vunpack.c.h.b16 %v2116
        %v2307 = vunpack.c.l.b16 %v2117
        %v2308 = vunpack.c.h.b16 %v2117
        %v2309 = vunpack.c.l.b16 %v2118
        %v2310 = vunpack.c.h.b16 %v2118
        %v2311 = vunpack.c.l.b16 %v2119
        %v2312 = vunpack.c.h.b16 %v2119
        %v2313 = vunpack.c.l.b16 %v2120
        %v2314 = vunpack.c.h.b16 %v2120
        %v2315 = vunpack.c.l.b16 %v2121
        %v2316 = vunpack.c.h.b16 %v2121
        %v2317 = vunpack.c.l.b16 %v2122
        %v2318 = vunpack.c.h.b16 %v2122
        %v2319 = vunpack.c.l.b16 %v2123
        %v2320 = vunpack.c.h.b16 %v2123
        %v2321 = vunpack.c.l.b16 %v2124
        %v2322 = vunpack.c.h.b16 %v2124
        %v2323 = vunpack.c.l.b16 %v2125
        %v2324 = vunpack.c.h.b16 %v2125
        %v2325 = vunpack.c.l.b16 %v2126
        %v2326 = vunpack.c.h.b16 %v2126
        %v2327 = vunpack.c.l.b16 %v2127
        %v2328 = vunpack.c.h.b16 %v2127
        %v2329 = vunpack.c.l.b16 %v2128
        %v2330 = vunpack.c.h.b16 %v2128
        %v2331 = vunpack.c.l.b16 %v2129
        %v2332 = vunpack.c.h.b16 %v2129
        %v2333 = vunpack.c.l.b16 %v2130
        %v2334 = vunpack.c.h.b16 %v2130
        %v2335 = vunpack.c.l.b16 %v2131
        %v2336 = vunpack.c.h.b16 %v2131
        %v2337 = vunpack.c.l.b16 %v2132
        %v2338 = vunpack.c.h.b16 %v2132
        %v2339 = vunpack.c.l.b16 %v2133
        %v2340 = vunpack.c.h.b16 %v2133
        %v2341 = vunpack.c.l.b16 %v2134
        %v2342 = vunpack.c.h.b16 %v2134
        %v2343 = vunpack.c.l.b16 %v2135
        %v2344 = vunpack.c.h.b16 %v2135
        %v2345 = vunpack.c.l.b16 %v2136
        %v2346 = vunpack.c.h.b16 %v2136
        %v2347 = vunpack.c.l.b16 %v2137
        %v2348 = vunpack.c.h.b16 %v2137
        %v2349 = vunpack.c.l.b16 %v2138
        %v2350 = vunpack.c.h.b16 %v2138
        %v2351 = vunpack.c.l.b16 %v2139
        %v2352 = vunpack.c.h.b16 %v2139
        %v2353 = vunpack.c.l.b16 %v2140
        %v2354 = vunpack.c.h.b16 %v2140
        %v2355 = vunpack.c.l.b16 %v2141
        %v2356 = vunpack.c.h.b16 %v2141
        %v2357 = vunpack.c.l.b16 %v2142
        %v2358 = vunpack.c.h.b16 %v2142
        %v2359 = vunpack.c.l.b16 %v2143
        %v2360 = vunpack.c.h.b16 %v2143
        %v2361 = vunpack.c.l.b16 %v2144
        %v2362 = vunpack.c.h.b16 %v2144
        %v2363 = vunpack.c.l.b16 %v2145
        %v2364 = vunpack.c.h.b16 %v2145
        %v2365 = vunpack.c.l.b16 %v2146
        %v2366 = vunpack.c.h.b16 %v2146
        %v2367 = vunpack.c.l.b16 %v2147
        %v2368 = vunpack.c.h.b16 %v2147
        %v2369 = vunpack.c.l.b16 %v2148
        %v2370 = vunpack.c.h.b16 %v2148
        %v2371 = vunpack.c.l.b16 %v2149
        %v2372 = vunpack.c.h.b16 %v2149
        %v2373 = vunpack.c.l.b16 %v2150
        %v2374 = vunpack.c.h.b16 %v2150
        %v2375 = vunpack.c.l.b16 %v2151
        %v2376 = vunpack.c.h.b16 %v2151
        %v2377 = vunpack.c.l.b16 %v2152
        %v2378 = vunpack.c.h.b16 %v2152
        %v2379 = vpack.c.b16 %v2239, %v2235
        %v2380 = vpack.c.b16 %v2240, %v2236
        %v2381 = vpack.c.b16 %v2241, %v2237
        %v2382 = vpack.c.b16 %v2242, %v2238
        %v2383 = vpack.c.b16 %v2247, %v2243
        %v2384 = vpack.c.b16 %v2248, %v2244
        %v2385 = vpack.c.b16 %v2249, %v2245
        %v2386 = vpack.c.b16 %v2250, %v2246
        %v2387 = vpack.c.b16 %v2255, %v2251
        %v2388 = vpack.c.b16 %v2256, %v2252
        %v2389 = vpack.c.b16 %v2257, %v2253
        %v2390 = vpack.c.b16 %v2258, %v2254
        %v2391 = vpack.c.b16 %v2263, %v2259
        %v2392 = vpack.c.b16 %v2264, %v2260
        %v2393 = vpack.c.b16 %v2265, %v2261
        %v2394 = vpack.c.b16 %v2266, %v2262
        %v2395 = vpack.c.b16 %v2271, %v2267
        %v2396 = vpack.c.b16 %v2272, %v2268
        %v2397 = vpack.c.b16 %v2273, %v2269
        %v2398 = vpack.c.b16 %v2274, %v2270
        %v2399 = vpack.c.b16 %v2279, %v2275
        %v2400 = vpack.c.b16 %v2280, %v2276
        %v2401 = vpack.c.b16 %v2281, %v2277
        %v2402 = vpack.c.b16 %v2282, %v2278
        %v2403 = vpack.c.b16 %v2287, %v2283
        %v2404 = vpack.c.b16 %v2288, %v2284
        %v2405 = vpack.c.b16 %v2289, %v2285
        %v2406 = vpack.c.b16 %v2290, %v2286
        %v2407 = vpack.c.b16 %v2295, %v2291
        %v2408 = vpack.c.b16 %v2296, %v2292
        %v2409 = vpack.c.b16 %v2297, %v2293
        %v2410 = vpack.c.b16 %v2298, %v2294
        %v2411 = vpack.c.b16 %v2303, %v2299
        %v2412 = vpack.c.b16 %v2304, %v2300
        %v2413 = vpack.c.b16 %v2305, %v2301
        %v2414 = vpack.c.b16 %v2306, %v2302
        %v2415 = vpack.c.b16 %v2311, %v2307
        %v2416 = vpack.c.b16 %v2312, %v2308
        %v2417 = vpack.c.b16 %v2313, %v2309
        %v2418 = vpack.c.b16 %v2314, %v2310
        %v2419 = vpack.c.b16 %v2319, %v2315
        %v2420 = vpack.c.b16 %v2320, %v2316
        %v2421 = vpack.c.b16 %v2321, %v2317
        %v2422 = vpack.c.b16 %v2322, %v2318
        %v2423 = vpack.c.b16 %v2327, %v2323
        %v2424 = vpack.c.b16 %v2328, %v2324
        %v2425 = vpack.c.b16 %v2329, %v2325
        %v2426 = vpack.c.b16 %v2330, %v2326
        %v2427 = vpack.c.b16 %v2335, %v2331
        %v2428 = vpack.c.b16 %v2336, %v2332
        %v2429 = vpack.c.b16 %v2337, %v2333
        %v2430 = vpack.c.b16 %v2338, %v2334
        %v2431 = vpack.c.b16 %v2343, %v2339
        %v2432 = vpack.c.b16 %v2344, %v2340
        %v2433 = vpack.c.b16 %v2345, %v2341
        %v2434 = vpack.c.b16 %v2346, %v2342
        %v2435 = vpack.c.b16 %v2351, %v2347
        %v2436 = vpack.c.b16 %v2352, %v2348
        %v2437 = vpack.c.b16 %v2353, %v2349
        %v2438 = vpack.c.b16 %v2354, %v2350
        %v2439 = vpack.c.b16 %v2359, %v2355
        %v2440 = vpack.c.b16 %v2360, %v2356
        %v2441 = vpack.c.b16 %v2361, %v2357
        %v2442 = vpack.c.b16 %v2362, %v2358
        %v2443 = vpack.c.b16 %v2367, %v2363
        %v2444 = vpack.c.b16 %v2368, %v2364
        %v2445 = vpack.c.b16 %v2369, %v2365
        %v2446 = vpack.c.b16 %v2370, %v2366
        %v2447 = vpack.c.b16 %v2375, %v2371
        %v2448 = vpack.c.b16 %v2376, %v2372
        %v2449 = vpack.c.b16 %v2377, %v2373
        %v2450 = vpack.c.b16 %v2378, %v2374
        %v2524 = vsel %vm1838, %v1792, 0
        %v2527 = vsel %vm1838, %v1795, 0
        %v2530 = vsel %vm1838, %v1798, 0
        %v2533 = vsel %vm1838, %v1801, 0
        %v2536 = vsel %vm1838, %v1804, 0
        %v2539 = vsel %vm1838, %v1807, 0
        %v2542 = vsel %vm1838, %v1810, 0
        %v2545 = vsel %vm1838, %v1813, 0
        %v2548 = vsel %vm1838, %v1816, 0
        %v2551 = vsel %vm1838, %v1819, 0
        %v2554 = vsel %vm1838, %v1822, 0
        %v2557 = vsel %vm1838, %v1825, 0
        %v2560 = vsel %vm1838, %v1828, 0
        %v2563 = vsel %vm1838, %v1831, 0
        %v2566 = vsel %vm1838, %v1834, 0
        %v2569 = vsel %vm1838, %v1837, 0
        %2571 = vmatpush.bf16.msra.mxu0 %v2407
        %2572 = vmatpush.bf16.msra.mxu0 %v2403
        %2573 = vmatpush.bf16.msra.mxu0 %v2399
        %2574 = vmatpush.bf16.msra.mxu0 %v2395
        %2575 = vmatpush.bf16.msra.mxu0 %v2391
        %2576 = vmatpush.bf16.msra.mxu0 %v2387
        %2577 = vmatpush.bf16.msra.mxu0 %v2383
        %2578 = vmatpush.bf16.msra.mxu0 %v2379
        %2579 = vmatmul.bf16.gmra.mxu0 %v1906
        %v2580 = vpop.f32.mrf.mxu0
        %v2581 = vadd.f32 %v2155, %v2580
        %v2582 = vpop.f32.mrf.mxu0
        %v2583 = vadd.f32 %v2155, %v2582
        %2584 = vmatmul.bf16.gmra.mxu0 %v1909
        %v2585 = vpop.f32.mrf.mxu0
        %v2586 = vadd.f32 %v2155, %v2585
        %v2587 = vpop.f32.mrf.mxu0
        %v2588 = vadd.f32 %v2155, %v2587
        %2589 = vmatmul.bf16.gmra.mxu0 %v1912
        %v2590 = vpop.f32.mrf.mxu0
        %v2591 = vadd.f32 %v2155, %v2590
        %v2592 = vpop.f32.mrf.mxu0
        %v2593 = vadd.f32 %v2155, %v2592
        %2594 = vmatmul.bf16.gmra.mxu0 %v1915
        %v2595 = vpop.f32.mrf.mxu0
        %v2596 = vadd.f32 %v2155, %v2595
        %v2597 = vpop.f32.mrf.mxu0
        %v2598 = vadd.f32 %v2155, %v2597
        %2599 = vmatmul.bf16.gmra.mxu0 %v1918
        %v2600 = vpop.f32.mrf.mxu0
        %v2601 = vadd.f32 %v2155, %v2600
        %v2602 = vpop.f32.mrf.mxu0
        %v2603 = vadd.f32 %v2155, %v2602
        %2604 = vmatmul.bf16.gmra.mxu0 %v1921
        %v2605 = vpop.f32.mrf.mxu0
        %v2606 = vadd.f32 %v2155, %v2605
        %v2607 = vpop.f32.mrf.mxu0
        %v2608 = vadd.f32 %v2155, %v2607
        %2609 = vmatmul.bf16.gmra.mxu0 %v1924
        %v2610 = vpop.f32.mrf.mxu0
        %v2611 = vadd.f32 %v2155, %v2610
        %v2612 = vpop.f32.mrf.mxu0
        %v2613 = vadd.f32 %v2155, %v2612
        %2614 = vmatmul.bf16.gmra.mxu0 %v1927
        %v2615 = vpop.f32.mrf.mxu0
        %v2616 = vadd.f32 %v2155, %v2615
        %v2617 = vpop.f32.mrf.mxu0
        %v2618 = vadd.f32 %v2155, %v2617
        %2619 = vmatmul.bf16.gmra.mxu0 %v1930
        %v2620 = vpop.f32.mrf.mxu0
        %v2621 = vadd.f32 %v2155, %v2620
        %v2622 = vpop.f32.mrf.mxu0
        %v2623 = vadd.f32 %v2155, %v2622
        %2624 = vmatmul.bf16.gmra.mxu0 %v1933
        %v2625 = vpop.f32.mrf.mxu0
        %v2626 = vadd.f32 %v2155, %v2625
        %v2627 = vpop.f32.mrf.mxu0
        %v2628 = vadd.f32 %v2155, %v2627
        %2629 = vmatmul.bf16.gmra.mxu0 %v1936
        %v2630 = vpop.f32.mrf.mxu0
        %v2631 = vadd.f32 %v2155, %v2630
        %v2632 = vpop.f32.mrf.mxu0
        %v2633 = vadd.f32 %v2155, %v2632
        %2634 = vmatmul.bf16.gmra.mxu0 %v1939
        %v2635 = vpop.f32.mrf.mxu0
        %v2636 = vadd.f32 %v2155, %v2635
        %v2637 = vpop.f32.mrf.mxu0
        %v2638 = vadd.f32 %v2155, %v2637
        %2639 = vmatmul.bf16.gmra.mxu0 %v1942
        %v2640 = vpop.f32.mrf.mxu0
        %v2641 = vadd.f32 %v2155, %v2640
        %v2642 = vpop.f32.mrf.mxu0
        %v2643 = vadd.f32 %v2155, %v2642
        %2644 = vmatmul.bf16.gmra.mxu0 %v1945
        %v2645 = vpop.f32.mrf.mxu0
        %v2646 = vadd.f32 %v2155, %v2645
        %v2647 = vpop.f32.mrf.mxu0
        %v2648 = vadd.f32 %v2155, %v2647
        %2649 = vmatmul.bf16.gmra.mxu0 %v1948
        %v2650 = vpop.f32.mrf.mxu0
        %v2651 = vadd.f32 %v2155, %v2650
        %v2652 = vpop.f32.mrf.mxu0
        %v2653 = vadd.f32 %v2155, %v2652
        %2654 = vmatmul.bf16.gmra.mxu0 %v1951
        %v2655 = vpop.f32.mrf.mxu0
        %v2656 = vadd.f32 %v2155, %v2655
        %v2657 = vpop.f32.mrf.mxu0
        %v2658 = vadd.f32 %v2155, %v2657
        %2659 = vdwg.mxu0
        %2660 = vmatpush.bf16.msra.mxu0 %v2439
        %2661 = vmatpush.bf16.msra.mxu0 %v2435
        %2662 = vmatpush.bf16.msra.mxu0 %v2431
        %2663 = vmatpush.bf16.msra.mxu0 %v2427
        %2664 = vmatpush.bf16.msra.mxu0 %v2423
        %2665 = vmatpush.bf16.msra.mxu0 %v2419
        %2666 = vmatpush.bf16.msra.mxu0 %v2415
        %2667 = vmatpush.bf16.msra.mxu0 %v2411
        %2668 = vmatmul.bf16.gmra.mxu0 %v2034
        %v2669 = vpop.f32.mrf.mxu0
        %v2670 = vadd.f32 %v2581, %v2669
        %v2671 = vpop.f32.mrf.mxu0
        %v2672 = vadd.f32 %v2583, %v2671
        %2673 = vmatmul.bf16.gmra.mxu0 %v2037
        %v2674 = vpop.f32.mrf.mxu0
        %v2675 = vadd.f32 %v2586, %v2674
        %v2676 = vpop.f32.mrf.mxu0
        %v2677 = vadd.f32 %v2588, %v2676
        %2678 = vmatmul.bf16.gmra.mxu0 %v2040
        %v2679 = vpop.f32.mrf.mxu0
        %v2680 = vadd.f32 %v2591, %v2679
        %v2681 = vpop.f32.mrf.mxu0
        %v2682 = vadd.f32 %v2593, %v2681
        %2683 = vmatmul.bf16.gmra.mxu0 %v2043
        %v2684 = vpop.f32.mrf.mxu0
        %v2685 = vadd.f32 %v2596, %v2684
        %v2686 = vpop.f32.mrf.mxu0
        %v2687 = vadd.f32 %v2598, %v2686
        %2688 = vmatmul.bf16.gmra.mxu0 %v2046
        %v2689 = vpop.f32.mrf.mxu0
        %v2690 = vadd.f32 %v2601, %v2689
        %v2691 = vpop.f32.mrf.mxu0
        %v2692 = vadd.f32 %v2603, %v2691
        %2693 = vmatmul.bf16.gmra.mxu0 %v2049
        %v2694 = vpop.f32.mrf.mxu0
        %v2695 = vadd.f32 %v2606, %v2694
        %v2696 = vpop.f32.mrf.mxu0
        %v2697 = vadd.f32 %v2608, %v2696
        %2698 = vmatmul.bf16.gmra.mxu0 %v2052
        %v2699 = vpop.f32.mrf.mxu0
        %v2700 = vadd.f32 %v2611, %v2699
        %v2701 = vpop.f32.mrf.mxu0
        %v2702 = vadd.f32 %v2613, %v2701
        %2703 = vmatmul.bf16.gmra.mxu0 %v2055
        %v2704 = vpop.f32.mrf.mxu0
        %v2705 = vadd.f32 %v2616, %v2704
        %v2706 = vpop.f32.mrf.mxu0
        %v2707 = vadd.f32 %v2618, %v2706
        %2708 = vmatmul.bf16.gmra.mxu0 %v2058
        %v2709 = vpop.f32.mrf.mxu0
        %v2710 = vadd.f32 %v2621, %v2709
        %v2711 = vpop.f32.mrf.mxu0
        %v2712 = vadd.f32 %v2623, %v2711
        %2713 = vmatmul.bf16.gmra.mxu0 %v2061
        %v2714 = vpop.f32.mrf.mxu0
        %v2715 = vadd.f32 %v2626, %v2714
        %v2716 = vpop.f32.mrf.mxu0
        %v2717 = vadd.f32 %v2628, %v2716
        %2718 = vmatmul.bf16.gmra.mxu0 %v2064
        %v2719 = vpop.f32.mrf.mxu0
        %v2720 = vadd.f32 %v2631, %v2719
        %v2721 = vpop.f32.mrf.mxu0
        %v2722 = vadd.f32 %v2633, %v2721
        %2723 = vmatmul.bf16.gmra.mxu0 %v2067
        %v2724 = vpop.f32.mrf.mxu0
        %v2725 = vadd.f32 %v2636, %v2724
        %v2726 = vpop.f32.mrf.mxu0
        %v2727 = vadd.f32 %v2638, %v2726
        %2728 = vmatmul.bf16.gmra.mxu0 %v2070
        %v2729 = vpop.f32.mrf.mxu0
        %v2730 = vadd.f32 %v2641, %v2729
        %v2731 = vpop.f32.mrf.mxu0
        %v2732 = vadd.f32 %v2643, %v2731
        %2733 = vmatmul.bf16.gmra.mxu0 %v2073
        %v2734 = vpop.f32.mrf.mxu0
        %v2735 = vadd.f32 %v2646, %v2734
        %v2736 = vpop.f32.mrf.mxu0
        %v2737 = vadd.f32 %v2648, %v2736
        %2738 = vmatmul.bf16.gmra.mxu0 %v2076
        %v2739 = vpop.f32.mrf.mxu0
        %v2740 = vadd.f32 %v2651, %v2739
        %v2741 = vpop.f32.mrf.mxu0
        %v2742 = vadd.f32 %v2653, %v2741
        %2743 = vmatmul.bf16.gmra.mxu0 %v2079
        %v2744 = vpop.f32.mrf.mxu0
        %v2745 = vadd.f32 %v2656, %v2744
        %v2746 = vpop.f32.mrf.mxu0
        %v2747 = vadd.f32 %v2658, %v2746
        %2748 = vdwg.mxu0
        %2749 = vmatpush.bf16.msra.mxu0 0
        %2750 = vmatpush.bf16.msra.mxu0 0
        %2751 = vmatpush.bf16.msra.mxu0 0
        %2752 = vmatpush.bf16.msra.mxu0 0
        %2753 = vmatpush.bf16.msra.mxu0 0
        %2754 = vmatpush.bf16.msra.mxu0 0
        %2755 = vmatpush.bf16.msra.mxu0 %v2447
        %2756 = vmatpush.bf16.msra.mxu0 %v2443
        %2757 = vmatmul.bf16.gmra.mxu0 %v2524
        %v2758 = vpop.f32.mrf.mxu0
        %v2759 = vadd.f32 %v2670, %v2758
        %v2760 = vpop.f32.mrf.mxu0
        %v2761 = vadd.f32 %v2672, %v2760
        %2762 = vmatmul.bf16.gmra.mxu0 %v2527
        %v2763 = vpop.f32.mrf.mxu0
        %v2764 = vadd.f32 %v2675, %v2763
        %v2765 = vpop.f32.mrf.mxu0
        %v2766 = vadd.f32 %v2677, %v2765
        %2767 = vmatmul.bf16.gmra.mxu0 %v2530
        %v2768 = vpop.f32.mrf.mxu0
        %v2769 = vadd.f32 %v2680, %v2768
        %v2770 = vpop.f32.mrf.mxu0
        %v2771 = vadd.f32 %v2682, %v2770
        %2772 = vmatmul.bf16.gmra.mxu0 %v2533
        %v2773 = vpop.f32.mrf.mxu0
        %v2774 = vadd.f32 %v2685, %v2773
        %v2775 = vpop.f32.mrf.mxu0
        %v2776 = vadd.f32 %v2687, %v2775
        %2777 = vmatmul.bf16.gmra.mxu0 %v2536
        %v2778 = vpop.f32.mrf.mxu0
        %v2779 = vadd.f32 %v2690, %v2778
        %v2780 = vpop.f32.mrf.mxu0
        %v2781 = vadd.f32 %v2692, %v2780
        %2782 = vmatmul.bf16.gmra.mxu0 %v2539
        %v2783 = vpop.f32.mrf.mxu0
        %v2784 = vadd.f32 %v2695, %v2783
        %v2785 = vpop.f32.mrf.mxu0
        %v2786 = vadd.f32 %v2697, %v2785
        %2787 = vmatmul.bf16.gmra.mxu0 %v2542
        %v2788 = vpop.f32.mrf.mxu0
        %v2789 = vadd.f32 %v2700, %v2788
        %v2790 = vpop.f32.mrf.mxu0
        %v2791 = vadd.f32 %v2702, %v2790
        %2792 = vmatmul.bf16.gmra.mxu0 %v2545
        %v2793 = vpop.f32.mrf.mxu0
        %v2794 = vadd.f32 %v2705, %v2793
        %v2795 = vpop.f32.mrf.mxu0
        %v2796 = vadd.f32 %v2707, %v2795
        %2797 = vmatmul.bf16.gmra.mxu0 %v2548
        %v2798 = vpop.f32.mrf.mxu0
        %v2799 = vadd.f32 %v2710, %v2798
        %v2800 = vpop.f32.mrf.mxu0
        %v2801 = vadd.f32 %v2712, %v2800
        %2802 = vmatmul.bf16.gmra.mxu0 %v2551
        %v2803 = vpop.f32.mrf.mxu0
        %v2804 = vadd.f32 %v2715, %v2803
        %v2805 = vpop.f32.mrf.mxu0
        %v2806 = vadd.f32 %v2717, %v2805
        %2807 = vmatmul.bf16.gmra.mxu0 %v2554
        %v2808 = vpop.f32.mrf.mxu0
        %v2809 = vadd.f32 %v2720, %v2808
        %v2810 = vpop.f32.mrf.mxu0
        %v2811 = vadd.f32 %v2722, %v2810
        %2812 = vmatmul.bf16.gmra.mxu0 %v2557
        %v2813 = vpop.f32.mrf.mxu0
        %v2814 = vadd.f32 %v2725, %v2813
        %v2815 = vpop.f32.mrf.mxu0
        %v2816 = vadd.f32 %v2727, %v2815
        %2817 = vmatmul.bf16.gmra.mxu0 %v2560
        %v2818 = vpop.f32.mrf.mxu0
        %v2819 = vadd.f32 %v2730, %v2818
        %v2820 = vpop.f32.mrf.mxu0
        %v2821 = vadd.f32 %v2732, %v2820
        %2822 = vmatmul.bf16.gmra.mxu0 %v2563
        %v2823 = vpop.f32.mrf.mxu0
        %v2824 = vadd.f32 %v2735, %v2823
        %v2825 = vpop.f32.mrf.mxu0
        %v2826 = vadd.f32 %v2737, %v2825
        %2827 = vmatmul.bf16.gmra.mxu0 %v2566
        %v2828 = vpop.f32.mrf.mxu0
        %v2829 = vadd.f32 %v2740, %v2828
        %v2830 = vpop.f32.mrf.mxu0
        %v2831 = vadd.f32 %v2742, %v2830
        %2832 = vmatmul.bf16.gmra.mxu0 %v2569
        %v2833 = vpop.f32.mrf.mxu0
        %v2834 = vadd.f32 %v2745, %v2833
        %v2835 = vpop.f32.mrf.mxu0
        %v2836 = vadd.f32 %v2747, %v2835
        %2837 = vdwg.mxu0
        %2838 = vmatpush.bf16.msra.mxu0 %v2408
        %2839 = vmatpush.bf16.msra.mxu0 %v2404
        %2840 = vmatpush.bf16.msra.mxu0 %v2400
        %2841 = vmatpush.bf16.msra.mxu0 %v2396
        %2842 = vmatpush.bf16.msra.mxu0 %v2392
        %2843 = vmatpush.bf16.msra.mxu0 %v2388
        %2844 = vmatpush.bf16.msra.mxu0 %v2384
        %2845 = vmatpush.bf16.msra.mxu0 %v2380
        %2846 = vmatmul.bf16.gmra.mxu0 %v1906
        %v2847 = vpop.f32.mrf.mxu0
        %v2848 = vadd.f32 %v2156, %v2847
        %v2849 = vpop.f32.mrf.mxu0
        %v2850 = vadd.f32 %v2156, %v2849
        %2851 = vmatmul.bf16.gmra.mxu0 %v1909
        %v2852 = vpop.f32.mrf.mxu0
        %v2853 = vadd.f32 %v2156, %v2852
        %v2854 = vpop.f32.mrf.mxu0
        %v2855 = vadd.f32 %v2156, %v2854
        %2856 = vmatmul.bf16.gmra.mxu0 %v1912
        %v2857 = vpop.f32.mrf.mxu0
        %v2858 = vadd.f32 %v2156, %v2857
        %v2859 = vpop.f32.mrf.mxu0
        %v2860 = vadd.f32 %v2156, %v2859
        %2861 = vmatmul.bf16.gmra.mxu0 %v1915
        %v2862 = vpop.f32.mrf.mxu0
        %v2863 = vadd.f32 %v2156, %v2862
        %v2864 = vpop.f32.mrf.mxu0
        %v2865 = vadd.f32 %v2156, %v2864
        %2866 = vmatmul.bf16.gmra.mxu0 %v1918
        %v2867 = vpop.f32.mrf.mxu0
        %v2868 = vadd.f32 %v2156, %v2867
        %v2869 = vpop.f32.mrf.mxu0
        %v2870 = vadd.f32 %v2156, %v2869
        %2871 = vmatmul.bf16.gmra.mxu0 %v1921
        %v2872 = vpop.f32.mrf.mxu0
        %v2873 = vadd.f32 %v2156, %v2872
        %v2874 = vpop.f32.mrf.mxu0
        %v2875 = vadd.f32 %v2156, %v2874
        %2876 = vmatmul.bf16.gmra.mxu0 %v1924
        %v2877 = vpop.f32.mrf.mxu0
        %v2878 = vadd.f32 %v2156, %v2877
        %v2879 = vpop.f32.mrf.mxu0
        %v2880 = vadd.f32 %v2156, %v2879
        %2881 = vmatmul.bf16.gmra.mxu0 %v1927
        %v2882 = vpop.f32.mrf.mxu0
        %v2883 = vadd.f32 %v2156, %v2882
        %v2884 = vpop.f32.mrf.mxu0
        %v2885 = vadd.f32 %v2156, %v2884
        %2886 = vmatmul.bf16.gmra.mxu0 %v1930
        %v2887 = vpop.f32.mrf.mxu0
        %v2888 = vadd.f32 %v2156, %v2887
        %v2889 = vpop.f32.mrf.mxu0
        %v2890 = vadd.f32 %v2156, %v2889
        %2891 = vmatmul.bf16.gmra.mxu0 %v1933
        %v2892 = vpop.f32.mrf.mxu0
        %v2893 = vadd.f32 %v2156, %v2892
        %v2894 = vpop.f32.mrf.mxu0
        %v2895 = vadd.f32 %v2156, %v2894
        %2896 = vmatmul.bf16.gmra.mxu0 %v1936
        %v2897 = vpop.f32.mrf.mxu0
        %v2898 = vadd.f32 %v2156, %v2897
        %v2899 = vpop.f32.mrf.mxu0
        %v2900 = vadd.f32 %v2156, %v2899
        %2901 = vmatmul.bf16.gmra.mxu0 %v1939
        %v2902 = vpop.f32.mrf.mxu0
        %v2903 = vadd.f32 %v2156, %v2902
        %v2904 = vpop.f32.mrf.mxu0
        %v2905 = vadd.f32 %v2156, %v2904
        %2906 = vmatmul.bf16.gmra.mxu0 %v1942
        %v2907 = vpop.f32.mrf.mxu0
        %v2908 = vadd.f32 %v2156, %v2907
        %v2909 = vpop.f32.mrf.mxu0
        %v2910 = vadd.f32 %v2156, %v2909
        %2911 = vmatmul.bf16.gmra.mxu0 %v1945
        %v2912 = vpop.f32.mrf.mxu0
        %v2913 = vadd.f32 %v2156, %v2912
        %v2914 = vpop.f32.mrf.mxu0
        %v2915 = vadd.f32 %v2156, %v2914
        %2916 = vmatmul.bf16.gmra.mxu0 %v1948
        %v2917 = vpop.f32.mrf.mxu0
        %v2918 = vadd.f32 %v2156, %v2917
        %v2919 = vpop.f32.mrf.mxu0
        %v2920 = vadd.f32 %v2156, %v2919
        %2921 = vmatmul.bf16.gmra.mxu0 %v1951
        %v2922 = vpop.f32.mrf.mxu0
        %v2923 = vadd.f32 %v2156, %v2922
        %v2924 = vpop.f32.mrf.mxu0
        %v2925 = vadd.f32 %v2156, %v2924
        %2926 = vdwg.mxu0
        %2927 = vmatpush.bf16.msra.mxu0 %v2440
        %2928 = vmatpush.bf16.msra.mxu0 %v2436
        %2929 = vmatpush.bf16.msra.mxu0 %v2432
        %2930 = vmatpush.bf16.msra.mxu0 %v2428
        %2931 = vmatpush.bf16.msra.mxu0 %v2424
        %2932 = vmatpush.bf16.msra.mxu0 %v2420
        %2933 = vmatpush.bf16.msra.mxu0 %v2416
        %2934 = vmatpush.bf16.msra.mxu0 %v2412
        %2935 = vmatmul.bf16.gmra.mxu0 %v2034
        %v2936 = vpop.f32.mrf.mxu0
        %v2937 = vadd.f32 %v2848, %v2936
        %v2938 = vpop.f32.mrf.mxu0
        %v2939 = vadd.f32 %v2850, %v2938
        %2940 = vmatmul.bf16.gmra.mxu0 %v2037
        %v2941 = vpop.f32.mrf.mxu0
        %v2942 = vadd.f32 %v2853, %v2941
        %v2943 = vpop.f32.mrf.mxu0
        %v2944 = vadd.f32 %v2855, %v2943
        %2945 = vmatmul.bf16.gmra.mxu0 %v2040
        %v2946 = vpop.f32.mrf.mxu0
        %v2947 = vadd.f32 %v2858, %v2946
        %v2948 = vpop.f32.mrf.mxu0
        %v2949 = vadd.f32 %v2860, %v2948
        %2950 = vmatmul.bf16.gmra.mxu0 %v2043
        %v2951 = vpop.f32.mrf.mxu0
        %v2952 = vadd.f32 %v2863, %v2951
        %v2953 = vpop.f32.mrf.mxu0
        %v2954 = vadd.f32 %v2865, %v2953
        %2955 = vmatmul.bf16.gmra.mxu0 %v2046
        %v2956 = vpop.f32.mrf.mxu0
        %v2957 = vadd.f32 %v2868, %v2956
        %v2958 = vpop.f32.mrf.mxu0
        %v2959 = vadd.f32 %v2870, %v2958
        %2960 = vmatmul.bf16.gmra.mxu0 %v2049
        %v2961 = vpop.f32.mrf.mxu0
        %v2962 = vadd.f32 %v2873, %v2961
        %v2963 = vpop.f32.mrf.mxu0
        %v2964 = vadd.f32 %v2875, %v2963
        %2965 = vmatmul.bf16.gmra.mxu0 %v2052
        %v2966 = vpop.f32.mrf.mxu0
        %v2967 = vadd.f32 %v2878, %v2966
        %v2968 = vpop.f32.mrf.mxu0
        %v2969 = vadd.f32 %v2880, %v2968
        %2970 = vmatmul.bf16.gmra.mxu0 %v2055
        %v2971 = vpop.f32.mrf.mxu0
        %v2972 = vadd.f32 %v2883, %v2971
        %v2973 = vpop.f32.mrf.mxu0
        %v2974 = vadd.f32 %v2885, %v2973
        %2975 = vmatmul.bf16.gmra.mxu0 %v2058
        %v2976 = vpop.f32.mrf.mxu0
        %v2977 = vadd.f32 %v2888, %v2976
        %v2978 = vpop.f32.mrf.mxu0
        %v2979 = vadd.f32 %v2890, %v2978
        %2980 = vmatmul.bf16.gmra.mxu0 %v2061
        %v2981 = vpop.f32.mrf.mxu0
        %v2982 = vadd.f32 %v2893, %v2981
        %v2983 = vpop.f32.mrf.mxu0
        %v2984 = vadd.f32 %v2895, %v2983
        %2985 = vmatmul.bf16.gmra.mxu0 %v2064
        %v2986 = vpop.f32.mrf.mxu0
        %v2987 = vadd.f32 %v2898, %v2986
        %v2988 = vpop.f32.mrf.mxu0
        %v2989 = vadd.f32 %v2900, %v2988
        %2990 = vmatmul.bf16.gmra.mxu0 %v2067
        %v2991 = vpop.f32.mrf.mxu0
        %v2992 = vadd.f32 %v2903, %v2991
        %v2993 = vpop.f32.mrf.mxu0
        %v2994 = vadd.f32 %v2905, %v2993
        %2995 = vmatmul.bf16.gmra.mxu0 %v2070
        %v2996 = vpop.f32.mrf.mxu0
        %v2997 = vadd.f32 %v2908, %v2996
        %v2998 = vpop.f32.mrf.mxu0
        %v2999 = vadd.f32 %v2910, %v2998
        %3000 = vmatmul.bf16.gmra.mxu0 %v2073
        %v3001 = vpop.f32.mrf.mxu0
        %v3002 = vadd.f32 %v2913, %v3001
        %v3003 = vpop.f32.mrf.mxu0
        %v3004 = vadd.f32 %v2915, %v3003
        %3005 = vmatmul.bf16.gmra.mxu0 %v2076
        %v3006 = vpop.f32.mrf.mxu0
        %v3007 = vadd.f32 %v2918, %v3006
        %v3008 = vpop.f32.mrf.mxu0
        %v3009 = vadd.f32 %v2920, %v3008
        %3010 = vmatmul.bf16.gmra.mxu0 %v2079
        %v3011 = vpop.f32.mrf.mxu0
        %v3012 = vadd.f32 %v2923, %v3011
        %v3013 = vpop.f32.mrf.mxu0
        %v3014 = vadd.f32 %v2925, %v3013
        %3015 = vdwg.mxu0
        %3016 = vmatpush.bf16.msra.mxu0 0
        %3017 = vmatpush.bf16.msra.mxu0 0
        %3018 = vmatpush.bf16.msra.mxu0 0
        %3019 = vmatpush.bf16.msra.mxu0 0
        %3020 = vmatpush.bf16.msra.mxu0 0
        %3021 = vmatpush.bf16.msra.mxu0 0
        %3022 = vmatpush.bf16.msra.mxu0 %v2448
        %3023 = vmatpush.bf16.msra.mxu0 %v2444
        %3024 = vmatmul.bf16.gmra.mxu0 %v2524
        %v3025 = vpop.f32.mrf.mxu0
        %v3026 = vadd.f32 %v2937, %v3025
        %v3027 = vpop.f32.mrf.mxu0
        %v3028 = vadd.f32 %v2939, %v3027
        %3029 = vmatmul.bf16.gmra.mxu0 %v2527
        %v3030 = vpop.f32.mrf.mxu0
        %v3031 = vadd.f32 %v2942, %v3030
        %v3032 = vpop.f32.mrf.mxu0
        %v3033 = vadd.f32 %v2944, %v3032
        %3034 = vmatmul.bf16.gmra.mxu0 %v2530
        %v3035 = vpop.f32.mrf.mxu0
        %v3036 = vadd.f32 %v2947, %v3035
        %v3037 = vpop.f32.mrf.mxu0
        %v3038 = vadd.f32 %v2949, %v3037
        %3039 = vmatmul.bf16.gmra.mxu0 %v2533
        %v3040 = vpop.f32.mrf.mxu0
        %v3041 = vadd.f32 %v2952, %v3040
        %v3042 = vpop.f32.mrf.mxu0
        %v3043 = vadd.f32 %v2954, %v3042
        %3044 = vmatmul.bf16.gmra.mxu0 %v2536
        %v3045 = vpop.f32.mrf.mxu0
        %v3046 = vadd.f32 %v2957, %v3045
        %v3047 = vpop.f32.mrf.mxu0
        %v3048 = vadd.f32 %v2959, %v3047
        %3049 = vmatmul.bf16.gmra.mxu0 %v2539
        %v3050 = vpop.f32.mrf.mxu0
        %v3051 = vadd.f32 %v2962, %v3050
        %v3052 = vpop.f32.mrf.mxu0
        %v3053 = vadd.f32 %v2964, %v3052
        %3054 = vmatmul.bf16.gmra.mxu0 %v2542
        %v3055 = vpop.f32.mrf.mxu0
        %v3056 = vadd.f32 %v2967, %v3055
        %v3057 = vpop.f32.mrf.mxu0
        %v3058 = vadd.f32 %v2969, %v3057
        %3059 = vmatmul.bf16.gmra.mxu0 %v2545
        %v3060 = vpop.f32.mrf.mxu0
        %v3061 = vadd.f32 %v2972, %v3060
        %v3062 = vpop.f32.mrf.mxu0
        %v3063 = vadd.f32 %v2974, %v3062
        %3064 = vmatmul.bf16.gmra.mxu0 %v2548
        %v3065 = vpop.f32.mrf.mxu0
        %v3066 = vadd.f32 %v2977, %v3065
        %v3067 = vpop.f32.mrf.mxu0
        %v3068 = vadd.f32 %v2979, %v3067
        %3069 = vmatmul.bf16.gmra.mxu0 %v2551
        %v3070 = vpop.f32.mrf.mxu0
        %v3071 = vadd.f32 %v2982, %v3070
        %v3072 = vpop.f32.mrf.mxu0
        %v3073 = vadd.f32 %v2984, %v3072
        %3074 = vmatmul.bf16.gmra.mxu0 %v2554
        %v3075 = vpop.f32.mrf.mxu0
        %v3076 = vadd.f32 %v2987, %v3075
        %v3077 = vpop.f32.mrf.mxu0
        %v3078 = vadd.f32 %v2989, %v3077
        %3079 = vmatmul.bf16.gmra.mxu0 %v2557
        %v3080 = vpop.f32.mrf.mxu0
        %v3081 = vadd.f32 %v2992, %v3080
        %v3082 = vpop.f32.mrf.mxu0
        %v3083 = vadd.f32 %v2994, %v3082
        %3084 = vmatmul.bf16.gmra.mxu0 %v2560
        %v3085 = vpop.f32.mrf.mxu0
        %v3086 = vadd.f32 %v2997, %v3085
        %v3087 = vpop.f32.mrf.mxu0
        %v3088 = vadd.f32 %v2999, %v3087
        %3089 = vmatmul.bf16.gmra.mxu0 %v2563
        %v3090 = vpop.f32.mrf.mxu0
        %v3091 = vadd.f32 %v3002, %v3090
        %v3092 = vpop.f32.mrf.mxu0
        %v3093 = vadd.f32 %v3004, %v3092
        %3094 = vmatmul.bf16.gmra.mxu0 %v2566
        %v3095 = vpop.f32.mrf.mxu0
        %v3096 = vadd.f32 %v3007, %v3095
        %v3097 = vpop.f32.mrf.mxu0
        %v3098 = vadd.f32 %v3009, %v3097
        %3099 = vmatmul.bf16.gmra.mxu0 %v2569
        %v3100 = vpop.f32.mrf.mxu0
        %v3101 = vadd.f32 %v3012, %v3100
        %v3102 = vpop.f32.mrf.mxu0
        %v3103 = vadd.f32 %v3014, %v3102
        %3104 = vdwg.mxu0
        %3105 = vmatpush.bf16.msra.mxu0 %v2409
        %3106 = vmatpush.bf16.msra.mxu0 %v2405
        %3107 = vmatpush.bf16.msra.mxu0 %v2401
        %3108 = vmatpush.bf16.msra.mxu0 %v2397
        %3109 = vmatpush.bf16.msra.mxu0 %v2393
        %3110 = vmatpush.bf16.msra.mxu0 %v2389
        %3111 = vmatpush.bf16.msra.mxu0 %v2385
        %3112 = vmatpush.bf16.msra.mxu0 %v2381
        %3113 = vmatmul.bf16.gmra.mxu0 %v1906
        %v3114 = vpop.f32.mrf.mxu0
        %v3115 = vadd.f32 %v2157, %v3114
        %v3116 = vpop.f32.mrf.mxu0
        %v3117 = vadd.f32 %v2157, %v3116
        %3118 = vmatmul.bf16.gmra.mxu0 %v1909
        %v3119 = vpop.f32.mrf.mxu0
        %v3120 = vadd.f32 %v2157, %v3119
        %v3121 = vpop.f32.mrf.mxu0
        %v3122 = vadd.f32 %v2157, %v3121
        %3123 = vmatmul.bf16.gmra.mxu0 %v1912
        %v3124 = vpop.f32.mrf.mxu0
        %v3125 = vadd.f32 %v2157, %v3124
        %v3126 = vpop.f32.mrf.mxu0
        %v3127 = vadd.f32 %v2157, %v3126
        %3128 = vmatmul.bf16.gmra.mxu0 %v1915
        %v3129 = vpop.f32.mrf.mxu0
        %v3130 = vadd.f32 %v2157, %v3129
        %v3131 = vpop.f32.mrf.mxu0
        %v3132 = vadd.f32 %v2157, %v3131
        %3133 = vmatmul.bf16.gmra.mxu0 %v1918
        %v3134 = vpop.f32.mrf.mxu0
        %v3135 = vadd.f32 %v2157, %v3134
        %v3136 = vpop.f32.mrf.mxu0
        %v3137 = vadd.f32 %v2157, %v3136
        %3138 = vmatmul.bf16.gmra.mxu0 %v1921
        %v3139 = vpop.f32.mrf.mxu0
        %v3140 = vadd.f32 %v2157, %v3139
        %v3141 = vpop.f32.mrf.mxu0
        %v3142 = vadd.f32 %v2157, %v3141
        %3143 = vmatmul.bf16.gmra.mxu0 %v1924
        %v3144 = vpop.f32.mrf.mxu0
        %v3145 = vadd.f32 %v2157, %v3144
        %v3146 = vpop.f32.mrf.mxu0
        %v3147 = vadd.f32 %v2157, %v3146
        %3148 = vmatmul.bf16.gmra.mxu0 %v1927
        %v3149 = vpop.f32.mrf.mxu0
        %v3150 = vadd.f32 %v2157, %v3149
        %v3151 = vpop.f32.mrf.mxu0
        %v3152 = vadd.f32 %v2157, %v3151
        %3153 = vmatmul.bf16.gmra.mxu0 %v1930
        %v3154 = vpop.f32.mrf.mxu0
        %v3155 = vadd.f32 %v2157, %v3154
        %v3156 = vpop.f32.mrf.mxu0
        %v3157 = vadd.f32 %v2157, %v3156
        %3158 = vmatmul.bf16.gmra.mxu0 %v1933
        %v3159 = vpop.f32.mrf.mxu0
        %v3160 = vadd.f32 %v2157, %v3159
        %v3161 = vpop.f32.mrf.mxu0
        %v3162 = vadd.f32 %v2157, %v3161
        %3163 = vmatmul.bf16.gmra.mxu0 %v1936
        %v3164 = vpop.f32.mrf.mxu0
        %v3165 = vadd.f32 %v2157, %v3164
        %v3166 = vpop.f32.mrf.mxu0
        %v3167 = vadd.f32 %v2157, %v3166
        %3168 = vmatmul.bf16.gmra.mxu0 %v1939
        %v3169 = vpop.f32.mrf.mxu0
        %v3170 = vadd.f32 %v2157, %v3169
        %v3171 = vpop.f32.mrf.mxu0
        %v3172 = vadd.f32 %v2157, %v3171
        %3173 = vmatmul.bf16.gmra.mxu0 %v1942
        %v3174 = vpop.f32.mrf.mxu0
        %v3175 = vadd.f32 %v2157, %v3174
        %v3176 = vpop.f32.mrf.mxu0
        %v3177 = vadd.f32 %v2157, %v3176
        %3178 = vmatmul.bf16.gmra.mxu0 %v1945
        %v3179 = vpop.f32.mrf.mxu0
        %v3180 = vadd.f32 %v2157, %v3179
        %v3181 = vpop.f32.mrf.mxu0
        %v3182 = vadd.f32 %v2157, %v3181
        %3183 = vmatmul.bf16.gmra.mxu0 %v1948
        %v3184 = vpop.f32.mrf.mxu0
        %v3185 = vadd.f32 %v2157, %v3184
        %v3186 = vpop.f32.mrf.mxu0
        %v3187 = vadd.f32 %v2157, %v3186
        %3188 = vmatmul.bf16.gmra.mxu0 %v1951
        %v3189 = vpop.f32.mrf.mxu0
        %v3190 = vadd.f32 %v2157, %v3189
        %v3191 = vpop.f32.mrf.mxu0
        %v3192 = vadd.f32 %v2157, %v3191
        %3193 = vdwg.mxu0
        %3194 = vmatpush.bf16.msra.mxu0 %v2441
        %3195 = vmatpush.bf16.msra.mxu0 %v2437
        %3196 = vmatpush.bf16.msra.mxu0 %v2433
        %3197 = vmatpush.bf16.msra.mxu0 %v2429
        %3198 = vmatpush.bf16.msra.mxu0 %v2425
        %3199 = vmatpush.bf16.msra.mxu0 %v2421
        %3200 = vmatpush.bf16.msra.mxu0 %v2417
        %3201 = vmatpush.bf16.msra.mxu0 %v2413
        %3202 = vmatmul.bf16.gmra.mxu0 %v2034
        %v3203 = vpop.f32.mrf.mxu0
        %v3204 = vadd.f32 %v3115, %v3203
        %v3205 = vpop.f32.mrf.mxu0
        %v3206 = vadd.f32 %v3117, %v3205
        %3207 = vmatmul.bf16.gmra.mxu0 %v2037
        %v3208 = vpop.f32.mrf.mxu0
        %v3209 = vadd.f32 %v3120, %v3208
        %v3210 = vpop.f32.mrf.mxu0
        %v3211 = vadd.f32 %v3122, %v3210
        %3212 = vmatmul.bf16.gmra.mxu0 %v2040
        %v3213 = vpop.f32.mrf.mxu0
        %v3214 = vadd.f32 %v3125, %v3213
        %v3215 = vpop.f32.mrf.mxu0
        %v3216 = vadd.f32 %v3127, %v3215
        %3217 = vmatmul.bf16.gmra.mxu0 %v2043
        %v3218 = vpop.f32.mrf.mxu0
        %v3219 = vadd.f32 %v3130, %v3218
        %v3220 = vpop.f32.mrf.mxu0
        %v3221 = vadd.f32 %v3132, %v3220
        %3222 = vmatmul.bf16.gmra.mxu0 %v2046
        %v3223 = vpop.f32.mrf.mxu0
        %v3224 = vadd.f32 %v3135, %v3223
        %v3225 = vpop.f32.mrf.mxu0
        %v3226 = vadd.f32 %v3137, %v3225
        %3227 = vmatmul.bf16.gmra.mxu0 %v2049
        %v3228 = vpop.f32.mrf.mxu0
        %v3229 = vadd.f32 %v3140, %v3228
        %v3230 = vpop.f32.mrf.mxu0
        %v3231 = vadd.f32 %v3142, %v3230
        %3232 = vmatmul.bf16.gmra.mxu0 %v2052
        %v3233 = vpop.f32.mrf.mxu0
        %v3234 = vadd.f32 %v3145, %v3233
        %v3235 = vpop.f32.mrf.mxu0
        %v3236 = vadd.f32 %v3147, %v3235
        %3237 = vmatmul.bf16.gmra.mxu0 %v2055
        %v3238 = vpop.f32.mrf.mxu0
        %v3239 = vadd.f32 %v3150, %v3238
        %v3240 = vpop.f32.mrf.mxu0
        %v3241 = vadd.f32 %v3152, %v3240
        %3242 = vmatmul.bf16.gmra.mxu0 %v2058
        %v3243 = vpop.f32.mrf.mxu0
        %v3244 = vadd.f32 %v3155, %v3243
        %v3245 = vpop.f32.mrf.mxu0
        %v3246 = vadd.f32 %v3157, %v3245
        %3247 = vmatmul.bf16.gmra.mxu0 %v2061
        %v3248 = vpop.f32.mrf.mxu0
        %v3249 = vadd.f32 %v3160, %v3248
        %v3250 = vpop.f32.mrf.mxu0
        %v3251 = vadd.f32 %v3162, %v3250
        %3252 = vmatmul.bf16.gmra.mxu0 %v2064
        %v3253 = vpop.f32.mrf.mxu0
        %v3254 = vadd.f32 %v3165, %v3253
        %v3255 = vpop.f32.mrf.mxu0
        %v3256 = vadd.f32 %v3167, %v3255
        %3257 = vmatmul.bf16.gmra.mxu0 %v2067
        %v3258 = vpop.f32.mrf.mxu0
        %v3259 = vadd.f32 %v3170, %v3258
        %v3260 = vpop.f32.mrf.mxu0
        %v3261 = vadd.f32 %v3172, %v3260
        %3262 = vmatmul.bf16.gmra.mxu0 %v2070
        %v3263 = vpop.f32.mrf.mxu0
        %v3264 = vadd.f32 %v3175, %v3263
        %v3265 = vpop.f32.mrf.mxu0
        %v3266 = vadd.f32 %v3177, %v3265
        %3267 = vmatmul.bf16.gmra.mxu0 %v2073
        %v3268 = vpop.f32.mrf.mxu0
        %v3269 = vadd.f32 %v3180, %v3268
        %v3270 = vpop.f32.mrf.mxu0
        %v3271 = vadd.f32 %v3182, %v3270
        %3272 = vmatmul.bf16.gmra.mxu0 %v2076
        %v3273 = vpop.f32.mrf.mxu0
        %v3274 = vadd.f32 %v3185, %v3273
        %v3275 = vpop.f32.mrf.mxu0
        %v3276 = vadd.f32 %v3187, %v3275
        %3277 = vmatmul.bf16.gmra.mxu0 %v2079
        %v3278 = vpop.f32.mrf.mxu0
        %v3279 = vadd.f32 %v3190, %v3278
        %v3280 = vpop.f32.mrf.mxu0
        %v3281 = vadd.f32 %v3192, %v3280
        %3282 = vdwg.mxu0
        %3283 = vmatpush.bf16.msra.mxu0 0
        %3284 = vmatpush.bf16.msra.mxu0 0
        %3285 = vmatpush.bf16.msra.mxu0 0
        %3286 = vmatpush.bf16.msra.mxu0 0
        %3287 = vmatpush.bf16.msra.mxu0 0
        %3288 = vmatpush.bf16.msra.mxu0 0
        %3289 = vmatpush.bf16.msra.mxu0 %v2449
        %3290 = vmatpush.bf16.msra.mxu0 %v2445
        %3291 = vmatmul.bf16.gmra.mxu0 %v2524
        %v3292 = vpop.f32.mrf.mxu0
        %v3293 = vadd.f32 %v3204, %v3292
        %v3294 = vpop.f32.mrf.mxu0
        %v3295 = vadd.f32 %v3206, %v3294
        %3296 = vmatmul.bf16.gmra.mxu0 %v2527
        %v3297 = vpop.f32.mrf.mxu0
        %v3298 = vadd.f32 %v3209, %v3297
        %v3299 = vpop.f32.mrf.mxu0
        %v3300 = vadd.f32 %v3211, %v3299
        %3301 = vmatmul.bf16.gmra.mxu0 %v2530
        %v3302 = vpop.f32.mrf.mxu0
        %v3303 = vadd.f32 %v3214, %v3302
        %v3304 = vpop.f32.mrf.mxu0
        %v3305 = vadd.f32 %v3216, %v3304
        %3306 = vmatmul.bf16.gmra.mxu0 %v2533
        %v3307 = vpop.f32.mrf.mxu0
        %v3308 = vadd.f32 %v3219, %v3307
        %v3309 = vpop.f32.mrf.mxu0
        %v3310 = vadd.f32 %v3221, %v3309
        %3311 = vmatmul.bf16.gmra.mxu0 %v2536
        %v3312 = vpop.f32.mrf.mxu0
        %v3313 = vadd.f32 %v3224, %v3312
        %v3314 = vpop.f32.mrf.mxu0
        %v3315 = vadd.f32 %v3226, %v3314
        %3316 = vmatmul.bf16.gmra.mxu0 %v2539
        %v3317 = vpop.f32.mrf.mxu0
        %v3318 = vadd.f32 %v3229, %v3317
        %v3319 = vpop.f32.mrf.mxu0
        %v3320 = vadd.f32 %v3231, %v3319
        %3321 = vmatmul.bf16.gmra.mxu0 %v2542
        %v3322 = vpop.f32.mrf.mxu0
        %v3323 = vadd.f32 %v3234, %v3322
        %v3324 = vpop.f32.mrf.mxu0
        %v3325 = vadd.f32 %v3236, %v3324
        %3326 = vmatmul.bf16.gmra.mxu0 %v2545
        %v3327 = vpop.f32.mrf.mxu0
        %v3328 = vadd.f32 %v3239, %v3327
        %v3329 = vpop.f32.mrf.mxu0
        %v3330 = vadd.f32 %v3241, %v3329
        %3331 = vmatmul.bf16.gmra.mxu0 %v2548
        %v3332 = vpop.f32.mrf.mxu0
        %v3333 = vadd.f32 %v3244, %v3332
        %v3334 = vpop.f32.mrf.mxu0
        %v3335 = vadd.f32 %v3246, %v3334
        %3336 = vmatmul.bf16.gmra.mxu0 %v2551
        %v3337 = vpop.f32.mrf.mxu0
        %v3338 = vadd.f32 %v3249, %v3337
        %v3339 = vpop.f32.mrf.mxu0
        %v3340 = vadd.f32 %v3251, %v3339
        %3341 = vmatmul.bf16.gmra.mxu0 %v2554
        %v3342 = vpop.f32.mrf.mxu0
        %v3343 = vadd.f32 %v3254, %v3342
        %v3344 = vpop.f32.mrf.mxu0
        %v3345 = vadd.f32 %v3256, %v3344
        %3346 = vmatmul.bf16.gmra.mxu0 %v2557
        %v3347 = vpop.f32.mrf.mxu0
        %v3348 = vadd.f32 %v3259, %v3347
        %v3349 = vpop.f32.mrf.mxu0
        %v3350 = vadd.f32 %v3261, %v3349
        %3351 = vmatmul.bf16.gmra.mxu0 %v2560
        %v3352 = vpop.f32.mrf.mxu0
        %v3353 = vadd.f32 %v3264, %v3352
        %v3354 = vpop.f32.mrf.mxu0
        %v3355 = vadd.f32 %v3266, %v3354
        %3356 = vmatmul.bf16.gmra.mxu0 %v2563
        %v3357 = vpop.f32.mrf.mxu0
        %v3358 = vadd.f32 %v3269, %v3357
        %v3359 = vpop.f32.mrf.mxu0
        %v3360 = vadd.f32 %v3271, %v3359
        %3361 = vmatmul.bf16.gmra.mxu0 %v2566
        %v3362 = vpop.f32.mrf.mxu0
        %v3363 = vadd.f32 %v3274, %v3362
        %v3364 = vpop.f32.mrf.mxu0
        %v3365 = vadd.f32 %v3276, %v3364
        %3366 = vmatmul.bf16.gmra.mxu0 %v2569
        %v3367 = vpop.f32.mrf.mxu0
        %v3368 = vadd.f32 %v3279, %v3367
        %v3369 = vpop.f32.mrf.mxu0
        %v3370 = vadd.f32 %v3281, %v3369
        %3371 = vdwg.mxu0
        %3372 = vmatpush.bf16.msra.mxu0 %v2410
        %3373 = vmatpush.bf16.msra.mxu0 %v2406
        %3374 = vmatpush.bf16.msra.mxu0 %v2402
        %3375 = vmatpush.bf16.msra.mxu0 %v2398
        %3376 = vmatpush.bf16.msra.mxu0 %v2394
        %3377 = vmatpush.bf16.msra.mxu0 %v2390
        %3378 = vmatpush.bf16.msra.mxu0 %v2386
        %3379 = vmatpush.bf16.msra.mxu0 %v2382
        %3380 = vmatmul.bf16.gmra.mxu0 %v1906
        %v3381 = vpop.f32.mrf.mxu0
        %v3382 = vadd.f32 %v2158, %v3381
        %v3383 = vpop.f32.mrf.mxu0
        %v3384 = vadd.f32 %v2158, %v3383
        %3385 = vmatmul.bf16.gmra.mxu0 %v1909
        %v3386 = vpop.f32.mrf.mxu0
        %v3387 = vadd.f32 %v2158, %v3386
        %v3388 = vpop.f32.mrf.mxu0
        %v3389 = vadd.f32 %v2158, %v3388
        %3390 = vmatmul.bf16.gmra.mxu0 %v1912
        %v3391 = vpop.f32.mrf.mxu0
        %v3392 = vadd.f32 %v2158, %v3391
        %v3393 = vpop.f32.mrf.mxu0
        %v3394 = vadd.f32 %v2158, %v3393
        %3395 = vmatmul.bf16.gmra.mxu0 %v1915
        %v3396 = vpop.f32.mrf.mxu0
        %v3397 = vadd.f32 %v2158, %v3396
        %v3398 = vpop.f32.mrf.mxu0
        %v3399 = vadd.f32 %v2158, %v3398
        %3400 = vmatmul.bf16.gmra.mxu0 %v1918
        %v3401 = vpop.f32.mrf.mxu0
        %v3402 = vadd.f32 %v2158, %v3401
        %v3403 = vpop.f32.mrf.mxu0
        %v3404 = vadd.f32 %v2158, %v3403
        %3405 = vmatmul.bf16.gmra.mxu0 %v1921
        %v3406 = vpop.f32.mrf.mxu0
        %v3407 = vadd.f32 %v2158, %v3406
        %v3408 = vpop.f32.mrf.mxu0
        %v3409 = vadd.f32 %v2158, %v3408
        %3410 = vmatmul.bf16.gmra.mxu0 %v1924
        %v3411 = vpop.f32.mrf.mxu0
        %v3412 = vadd.f32 %v2158, %v3411
        %v3413 = vpop.f32.mrf.mxu0
        %v3414 = vadd.f32 %v2158, %v3413
        %3415 = vmatmul.bf16.gmra.mxu0 %v1927
        %v3416 = vpop.f32.mrf.mxu0
        %v3417 = vadd.f32 %v2158, %v3416
        %v3418 = vpop.f32.mrf.mxu0
        %v3419 = vadd.f32 %v2158, %v3418
        %3420 = vmatmul.bf16.gmra.mxu0 %v1930
        %v3421 = vpop.f32.mrf.mxu0
        %v3422 = vadd.f32 %v2158, %v3421
        %v3423 = vpop.f32.mrf.mxu0
        %v3424 = vadd.f32 %v2158, %v3423
        %3425 = vmatmul.bf16.gmra.mxu0 %v1933
        %v3426 = vpop.f32.mrf.mxu0
        %v3427 = vadd.f32 %v2158, %v3426
        %v3428 = vpop.f32.mrf.mxu0
        %v3429 = vadd.f32 %v2158, %v3428
        %3430 = vmatmul.bf16.gmra.mxu0 %v1936
        %v3431 = vpop.f32.mrf.mxu0
        %v3432 = vadd.f32 %v2158, %v3431
        %v3433 = vpop.f32.mrf.mxu0
        %v3434 = vadd.f32 %v2158, %v3433
        %3435 = vmatmul.bf16.gmra.mxu0 %v1939
        %v3436 = vpop.f32.mrf.mxu0
        %v3437 = vadd.f32 %v2158, %v3436
        %v3438 = vpop.f32.mrf.mxu0
        %v3439 = vadd.f32 %v2158, %v3438
        %3440 = vmatmul.bf16.gmra.mxu0 %v1942
        %v3441 = vpop.f32.mrf.mxu0
        %v3442 = vadd.f32 %v2158, %v3441
        %v3443 = vpop.f32.mrf.mxu0
        %v3444 = vadd.f32 %v2158, %v3443
        %3445 = vmatmul.bf16.gmra.mxu0 %v1945
        %v3446 = vpop.f32.mrf.mxu0
        %v3447 = vadd.f32 %v2158, %v3446
        %v3448 = vpop.f32.mrf.mxu0
        %v3449 = vadd.f32 %v2158, %v3448
        %3450 = vmatmul.bf16.gmra.mxu0 %v1948
        %v3451 = vpop.f32.mrf.mxu0
        %v3452 = vadd.f32 %v2158, %v3451
        %v3453 = vpop.f32.mrf.mxu0
        %v3454 = vadd.f32 %v2158, %v3453
        %3455 = vmatmul.bf16.gmra.mxu0 %v1951
        %v3456 = vpop.f32.mrf.mxu0
        %v3457 = vadd.f32 %v2158, %v3456
        %v3458 = vpop.f32.mrf.mxu0
        %v3459 = vadd.f32 %v2158, %v3458
        %3460 = vdwg.mxu0
        %3461 = vmatpush.bf16.msra.mxu0 %v2442
        %3462 = vmatpush.bf16.msra.mxu0 %v2438
        %3463 = vmatpush.bf16.msra.mxu0 %v2434
        %3464 = vmatpush.bf16.msra.mxu0 %v2430
        %3465 = vmatpush.bf16.msra.mxu0 %v2426
        %3466 = vmatpush.bf16.msra.mxu0 %v2422
        %3467 = vmatpush.bf16.msra.mxu0 %v2418
        %3468 = vmatpush.bf16.msra.mxu0 %v2414
        %3469 = vmatmul.bf16.gmra.mxu0 %v2034
        %v3470 = vpop.f32.mrf.mxu0
        %v3471 = vadd.f32 %v3382, %v3470
        %v3472 = vpop.f32.mrf.mxu0
        %v3473 = vadd.f32 %v3384, %v3472
        %3474 = vmatmul.bf16.gmra.mxu0 %v2037
        %v3475 = vpop.f32.mrf.mxu0
        %v3476 = vadd.f32 %v3387, %v3475
        %v3477 = vpop.f32.mrf.mxu0
        %v3478 = vadd.f32 %v3389, %v3477
        %3479 = vmatmul.bf16.gmra.mxu0 %v2040
        %v3480 = vpop.f32.mrf.mxu0
        %v3481 = vadd.f32 %v3392, %v3480
        %v3482 = vpop.f32.mrf.mxu0
        %v3483 = vadd.f32 %v3394, %v3482
        %3484 = vmatmul.bf16.gmra.mxu0 %v2043
        %v3485 = vpop.f32.mrf.mxu0
        %v3486 = vadd.f32 %v3397, %v3485
        %v3487 = vpop.f32.mrf.mxu0
        %v3488 = vadd.f32 %v3399, %v3487
        %3489 = vmatmul.bf16.gmra.mxu0 %v2046
        %v3490 = vpop.f32.mrf.mxu0
        %v3491 = vadd.f32 %v3402, %v3490
        %v3492 = vpop.f32.mrf.mxu0
        %v3493 = vadd.f32 %v3404, %v3492
        %3494 = vmatmul.bf16.gmra.mxu0 %v2049
        %v3495 = vpop.f32.mrf.mxu0
        %v3496 = vadd.f32 %v3407, %v3495
        %v3497 = vpop.f32.mrf.mxu0
        %v3498 = vadd.f32 %v3409, %v3497
        %3499 = vmatmul.bf16.gmra.mxu0 %v2052
        %v3500 = vpop.f32.mrf.mxu0
        %v3501 = vadd.f32 %v3412, %v3500
        %v3502 = vpop.f32.mrf.mxu0
        %v3503 = vadd.f32 %v3414, %v3502
        %3504 = vmatmul.bf16.gmra.mxu0 %v2055
        %v3505 = vpop.f32.mrf.mxu0
        %v3506 = vadd.f32 %v3417, %v3505
        %v3507 = vpop.f32.mrf.mxu0
        %v3508 = vadd.f32 %v3419, %v3507
        %3509 = vmatmul.bf16.gmra.mxu0 %v2058
        %v3510 = vpop.f32.mrf.mxu0
        %v3511 = vadd.f32 %v3422, %v3510
        %v3512 = vpop.f32.mrf.mxu0
        %v3513 = vadd.f32 %v3424, %v3512
        %3514 = vmatmul.bf16.gmra.mxu0 %v2061
        %v3515 = vpop.f32.mrf.mxu0
        %v3516 = vadd.f32 %v3427, %v3515
        %v3517 = vpop.f32.mrf.mxu0
        %v3518 = vadd.f32 %v3429, %v3517
        %3519 = vmatmul.bf16.gmra.mxu0 %v2064
        %v3520 = vpop.f32.mrf.mxu0
        %v3521 = vadd.f32 %v3432, %v3520
        %v3522 = vpop.f32.mrf.mxu0
        %v3523 = vadd.f32 %v3434, %v3522
        %3524 = vmatmul.bf16.gmra.mxu0 %v2067
        %v3525 = vpop.f32.mrf.mxu0
        %v3526 = vadd.f32 %v3437, %v3525
        %v3527 = vpop.f32.mrf.mxu0
        %v3528 = vadd.f32 %v3439, %v3527
        %3529 = vmatmul.bf16.gmra.mxu0 %v2070
        %v3530 = vpop.f32.mrf.mxu0
        %v3531 = vadd.f32 %v3442, %v3530
        %v3532 = vpop.f32.mrf.mxu0
        %v3533 = vadd.f32 %v3444, %v3532
        %3534 = vmatmul.bf16.gmra.mxu0 %v2073
        %v3535 = vpop.f32.mrf.mxu0
        %v3536 = vadd.f32 %v3447, %v3535
        %v3537 = vpop.f32.mrf.mxu0
        %v3538 = vadd.f32 %v3449, %v3537
        %3539 = vmatmul.bf16.gmra.mxu0 %v2076
        %v3540 = vpop.f32.mrf.mxu0
        %v3541 = vadd.f32 %v3452, %v3540
        %v3542 = vpop.f32.mrf.mxu0
        %v3543 = vadd.f32 %v3454, %v3542
        %3544 = vmatmul.bf16.gmra.mxu0 %v2079
        %v3545 = vpop.f32.mrf.mxu0
        %v3546 = vadd.f32 %v3457, %v3545
        %v3547 = vpop.f32.mrf.mxu0
        %v3548 = vadd.f32 %v3459, %v3547
        %3549 = vdwg.mxu0
        %3550 = vmatpush.bf16.msra.mxu0 0
        %3551 = vmatpush.bf16.msra.mxu0 0
        %3552 = vmatpush.bf16.msra.mxu0 0
        %3553 = vmatpush.bf16.msra.mxu0 0
        %3554 = vmatpush.bf16.msra.mxu0 0
        %3555 = vmatpush.bf16.msra.mxu0 0
        %3556 = vmatpush.bf16.msra.mxu0 %v2450
        %3557 = vmatpush.bf16.msra.mxu0 %v2446
        %3558 = vmatmul.bf16.gmra.mxu0 %v2524
        %v3559 = vpop.f32.mrf.mxu0
        %v3560 = vadd.f32 %v3471, %v3559
        %v3561 = vpop.f32.mrf.mxu0
        %v3562 = vadd.f32 %v3473, %v3561
        %3563 = vmatmul.bf16.gmra.mxu0 %v2527
        %v3564 = vpop.f32.mrf.mxu0
        %v3565 = vadd.f32 %v3476, %v3564
        %v3566 = vpop.f32.mrf.mxu0
        %v3567 = vadd.f32 %v3478, %v3566
        %3568 = vmatmul.bf16.gmra.mxu0 %v2530
        %v3569 = vpop.f32.mrf.mxu0
        %v3570 = vadd.f32 %v3481, %v3569
        %v3571 = vpop.f32.mrf.mxu0
        %v3572 = vadd.f32 %v3483, %v3571
        %3573 = vmatmul.bf16.gmra.mxu0 %v2533
        %v3574 = vpop.f32.mrf.mxu0
        %v3575 = vadd.f32 %v3486, %v3574
        %v3576 = vpop.f32.mrf.mxu0
        %v3577 = vadd.f32 %v3488, %v3576
        %3578 = vmatmul.bf16.gmra.mxu0 %v2536
        %v3579 = vpop.f32.mrf.mxu0
        %v3580 = vadd.f32 %v3491, %v3579
        %v3581 = vpop.f32.mrf.mxu0
        %v3582 = vadd.f32 %v3493, %v3581
        %3583 = vmatmul.bf16.gmra.mxu0 %v2539
        %v3584 = vpop.f32.mrf.mxu0
        %v3585 = vadd.f32 %v3496, %v3584
        %v3586 = vpop.f32.mrf.mxu0
        %v3587 = vadd.f32 %v3498, %v3586
        %3588 = vmatmul.bf16.gmra.mxu0 %v2542
        %v3589 = vpop.f32.mrf.mxu0
        %v3590 = vadd.f32 %v3501, %v3589
        %v3591 = vpop.f32.mrf.mxu0
        %v3592 = vadd.f32 %v3503, %v3591
        %3593 = vmatmul.bf16.gmra.mxu0 %v2545
        %v3594 = vpop.f32.mrf.mxu0
        %v3595 = vadd.f32 %v3506, %v3594
        %v3596 = vpop.f32.mrf.mxu0
        %v3597 = vadd.f32 %v3508, %v3596
        %3598 = vmatmul.bf16.gmra.mxu0 %v2548
        %v3599 = vpop.f32.mrf.mxu0
        %v3600 = vadd.f32 %v3511, %v3599
        %v3601 = vpop.f32.mrf.mxu0
        %v3602 = vadd.f32 %v3513, %v3601
        %3603 = vmatmul.bf16.gmra.mxu0 %v2551
        %v3604 = vpop.f32.mrf.mxu0
        %v3605 = vadd.f32 %v3516, %v3604
        %v3606 = vpop.f32.mrf.mxu0
        %v3607 = vadd.f32 %v3518, %v3606
        %3608 = vmatmul.bf16.gmra.mxu0 %v2554
        %v3609 = vpop.f32.mrf.mxu0
        %v3610 = vadd.f32 %v3521, %v3609
        %v3611 = vpop.f32.mrf.mxu0
        %v3612 = vadd.f32 %v3523, %v3611
        %3613 = vmatmul.bf16.gmra.mxu0 %v2557
        %v3614 = vpop.f32.mrf.mxu0
        %v3615 = vadd.f32 %v3526, %v3614
        %v3616 = vpop.f32.mrf.mxu0
        %v3617 = vadd.f32 %v3528, %v3616
        %3618 = vmatmul.bf16.gmra.mxu0 %v2560
        %v3619 = vpop.f32.mrf.mxu0
        %v3620 = vadd.f32 %v3531, %v3619
        %v3621 = vpop.f32.mrf.mxu0
        %v3622 = vadd.f32 %v3533, %v3621
        %3623 = vmatmul.bf16.gmra.mxu0 %v2563
        %v3624 = vpop.f32.mrf.mxu0
        %v3625 = vadd.f32 %v3536, %v3624
        %v3626 = vpop.f32.mrf.mxu0
        %v3627 = vadd.f32 %v3538, %v3626
        %3628 = vmatmul.bf16.gmra.mxu0 %v2566
        %v3629 = vpop.f32.mrf.mxu0
        %v3630 = vadd.f32 %v3541, %v3629
        %v3631 = vpop.f32.mrf.mxu0
        %v3632 = vadd.f32 %v3543, %v3631
        %3633 = vmatmul.bf16.gmra.mxu0 %v2569
        %v3634 = vpop.f32.mrf.mxu0
        %v3635 = vadd.f32 %v3546, %v3634
        %v3636 = vpop.f32.mrf.mxu0
        %v3637 = vadd.f32 %v3548, %v3636
        %3638 = vdwg.mxu0
        %3639 = vst [vmem:[%s195] sm:$0xff] %v2759
        %3640 = vst [vmem:[%s195 + $0x8] sm:$0xff] %v3026
        %3641 = vst [vmem:[%s195 + $0x10] sm:$0xff] %v3293
        %3642 = vst [vmem:[%s195 + $0x18] sm:$0xff] %v3560
        %3643 = vst [vmem:[%s195 + $0x20] sm:$0xff] %v2761
        %3644 = vst [vmem:[%s195 + $0x28] sm:$0xff] %v3028
        %3645 = vst [vmem:[%s195 + $0x30] sm:$0xff] %v3295
        %3646 = vst [vmem:[%s195 + $0x38] sm:$0xff] %v3562
        %3647 = vst [vmem:[%s195 + $0x40] sm:$0xff] %v2764
        %3648 = vst [vmem:[%s195 + $0x48] sm:$0xff] %v3031
        %3649 = vst [vmem:[%s195 + $0x50] sm:$0xff] %v3298
        %3650 = vst [vmem:[%s195 + $0x58] sm:$0xff] %v3565
        %3651 = vst [vmem:[%s195 + $0x60] sm:$0xff] %v2766
        %3652 = vst [vmem:[%s195 + $0x68] sm:$0xff] %v3033
        %3653 = vst [vmem:[%s195 + $0x70] sm:$0xff] %v3300
        %3654 = vst [vmem:[%s195 + $0x78] sm:$0xff] %v3567
        %3655 = vst [vmem:[%s195 + $0x80] sm:$0xff] %v2769
        %3656 = vst [vmem:[%s195 + $0x88] sm:$0xff] %v3036
        %3657 = vst [vmem:[%s195 + $0x90] sm:$0xff] %v3303
        %3658 = vst [vmem:[%s195 + $0x98] sm:$0xff] %v3570
        %3659 = vst [vmem:[%s195 + $0xa0] sm:$0xff] %v2771
        %3660 = vst [vmem:[%s195 + $0xa8] sm:$0xff] %v3038
        %3661 = vst [vmem:[%s195 + $0xb0] sm:$0xff] %v3305
        %3662 = vst [vmem:[%s195 + $0xb8] sm:$0xff] %v3572
        %3663 = vst [vmem:[%s195 + $0xc0] sm:$0xff] %v2774
        %3664 = vst [vmem:[%s195 + $0xc8] sm:$0xff] %v3041
        %3665 = vst [vmem:[%s195 + $0xd0] sm:$0xff] %v3308
        %3666 = vst [vmem:[%s195 + $0xd8] sm:$0xff] %v3575
        %3667 = vst [vmem:[%s195 + $0xe0] sm:$0xff] %v2776
        %3668 = vst [vmem:[%s195 + $0xe8] sm:$0xff] %v3043
        %3669 = vst [vmem:[%s195 + $0xf0] sm:$0xff] %v3310
        %3670 = vst [vmem:[%s195 + $0xf8] sm:$0xff] %v3577
        %3671 = vst [vmem:[%s195 + $0x100] sm:$0xff] %v2779
        %3672 = vst [vmem:[%s195 + $0x108] sm:$0xff] %v3046
        %3673 = vst [vmem:[%s195 + $0x110] sm:$0xff] %v3313
        %3674 = vst [vmem:[%s195 + $0x118] sm:$0xff] %v3580
        %3675 = vst [vmem:[%s195 + $0x120] sm:$0xff] %v2781
        %3676 = vst [vmem:[%s195 + $0x128] sm:$0xff] %v3048
        %3677 = vst [vmem:[%s195 + $0x130] sm:$0xff] %v3315
        %3678 = vst [vmem:[%s195 + $0x138] sm:$0xff] %v3582
        %3679 = vst [vmem:[%s195 + $0x140] sm:$0xff] %v2784
        %3680 = vst [vmem:[%s195 + $0x148] sm:$0xff] %v3051
        %3681 = vst [vmem:[%s195 + $0x150] sm:$0xff] %v3318
        %3682 = vst [vmem:[%s195 + $0x158] sm:$0xff] %v3585
        %3683 = vst [vmem:[%s195 + $0x160] sm:$0xff] %v2786
        %3684 = vst [vmem:[%s195 + $0x168] sm:$0xff] %v3053
        %3685 = vst [vmem:[%s195 + $0x170] sm:$0xff] %v3320
        %3686 = vst [vmem:[%s195 + $0x178] sm:$0xff] %v3587
        %3687 = vst [vmem:[%s195 + $0x180] sm:$0xff] %v2789
        %3688 = vst [vmem:[%s195 + $0x188] sm:$0xff] %v3056
        %3689 = vst [vmem:[%s195 + $0x190] sm:$0xff] %v3323
        %3690 = vst [vmem:[%s195 + $0x198] sm:$0xff] %v3590
        %3691 = vst [vmem:[%s195 + $0x1a0] sm:$0xff] %v2791
        %3692 = vst [vmem:[%s195 + $0x1a8] sm:$0xff] %v3058
        %3693 = vst [vmem:[%s195 + $0x1b0] sm:$0xff] %v3325
        %3694 = vst [vmem:[%s195 + $0x1b8] sm:$0xff] %v3592
        %3695 = vst [vmem:[%s195 + $0x1c0] sm:$0xff] %v2794
        %3696 = vst [vmem:[%s195 + $0x1c8] sm:$0xff] %v3061
        %3697 = vst [vmem:[%s195 + $0x1d0] sm:$0xff] %v3328
        %3698 = vst [vmem:[%s195 + $0x1d8] sm:$0xff] %v3595
        %3699 = vst [vmem:[%s195 + $0x1e0] sm:$0xff] %v2796
        %3700 = vst [vmem:[%s195 + $0x1e8] sm:$0xff] %v3063
        %3701 = vst [vmem:[%s195 + $0x1f0] sm:$0xff] %v3330
        %3702 = vst [vmem:[%s195 + $0x1f8] sm:$0xff] %v3597
        %3703 = vst [vmem:[%s195 + $0x200] sm:$0xff] %v2799
        %3704 = vst [vmem:[%s195 + $0x208] sm:$0xff] %v3066
        %3705 = vst [vmem:[%s195 + $0x210] sm:$0xff] %v3333
        %3706 = vst [vmem:[%s195 + $0x218] sm:$0xff] %v3600
        %3707 = vst [vmem:[%s195 + $0x220] sm:$0xff] %v2801
        %3708 = vst [vmem:[%s195 + $0x228] sm:$0xff] %v3068
        %3709 = vst [vmem:[%s195 + $0x230] sm:$0xff] %v3335
        %3710 = vst [vmem:[%s195 + $0x238] sm:$0xff] %v3602
        %3711 = vst [vmem:[%s195 + $0x240] sm:$0xff] %v2804
        %3712 = vst [vmem:[%s195 + $0x248] sm:$0xff] %v3071
        %3713 = vst [vmem:[%s195 + $0x250] sm:$0xff] %v3338
        %3714 = vst [vmem:[%s195 + $0x258] sm:$0xff] %v3605
        %3715 = vst [vmem:[%s195 + $0x260] sm:$0xff] %v2806
        %3716 = vst [vmem:[%s195 + $0x268] sm:$0xff] %v3073
        %3717 = vst [vmem:[%s195 + $0x270] sm:$0xff] %v3340
        %3718 = vst [vmem:[%s195 + $0x278] sm:$0xff] %v3607
        %3719 = vst [vmem:[%s195 + $0x280] sm:$0xff] %v2809
        %3720 = vst [vmem:[%s195 + $0x288] sm:$0xff] %v3076
        %3721 = vst [vmem:[%s195 + $0x290] sm:$0xff] %v3343
        %3722 = vst [vmem:[%s195 + $0x298] sm:$0xff] %v3610
        %3723 = vst [vmem:[%s195 + $0x2a0] sm:$0xff] %v2811
        %3724 = vst [vmem:[%s195 + $0x2a8] sm:$0xff] %v3078
        %3725 = vst [vmem:[%s195 + $0x2b0] sm:$0xff] %v3345
        %3726 = vst [vmem:[%s195 + $0x2b8] sm:$0xff] %v3612
        %3727 = vst [vmem:[%s195 + $0x2c0] sm:$0xff] %v2814
        %3728 = vst [vmem:[%s195 + $0x2c8] sm:$0xff] %v3081
        %3729 = vst [vmem:[%s195 + $0x2d0] sm:$0xff] %v3348
        %3730 = vst [vmem:[%s195 + $0x2d8] sm:$0xff] %v3615
        %3731 = vst [vmem:[%s195 + $0x2e0] sm:$0xff] %v2816
        %3732 = vst [vmem:[%s195 + $0x2e8] sm:$0xff] %v3083
        %3733 = vst [vmem:[%s195 + $0x2f0] sm:$0xff] %v3350
        %3734 = vst [vmem:[%s195 + $0x2f8] sm:$0xff] %v3617
        %3735 = vst [vmem:[%s195 + $0x300] sm:$0xff] %v2819
        %3736 = vst [vmem:[%s195 + $0x308] sm:$0xff] %v3086
        %3737 = vst [vmem:[%s195 + $0x310] sm:$0xff] %v3353
        %3738 = vst [vmem:[%s195 + $0x318] sm:$0xff] %v3620
        %3739 = vst [vmem:[%s195 + $0x320] sm:$0xff] %v2821
        %3740 = vst [vmem:[%s195 + $0x328] sm:$0xff] %v3088
        %3741 = vst [vmem:[%s195 + $0x330] sm:$0xff] %v3355
        %3742 = vst [vmem:[%s195 + $0x338] sm:$0xff] %v3622
        %3743 = vst [vmem:[%s195 + $0x340] sm:$0xff] %v2824
        %3744 = vst [vmem:[%s195 + $0x348] sm:$0xff] %v3091
        %3745 = vst [vmem:[%s195 + $0x350] sm:$0xff] %v3358
        %3746 = vst [vmem:[%s195 + $0x358] sm:$0xff] %v3625
        %3747 = vst [vmem:[%s195 + $0x360] sm:$0xff] %v2826
        %3748 = vst [vmem:[%s195 + $0x368] sm:$0xff] %v3093
        %3749 = vst [vmem:[%s195 + $0x370] sm:$0xff] %v3360
        %3750 = vst [vmem:[%s195 + $0x378] sm:$0xff] %v3627
        %3751 = vst [vmem:[%s195 + $0x380] sm:$0xff] %v2829
        %3752 = vst [vmem:[%s195 + $0x388] sm:$0xff] %v3096
        %3753 = vst [vmem:[%s195 + $0x390] sm:$0xff] %v3363
        %3754 = vst [vmem:[%s195 + $0x398] sm:$0xff] %v3630
        %3755 = vst [vmem:[%s195 + $0x3a0] sm:$0xff] %v2831
        %3756 = vst [vmem:[%s195 + $0x3a8] sm:$0xff] %v3098
        %3757 = vst [vmem:[%s195 + $0x3b0] sm:$0xff] %v3365
        %3758 = vst [vmem:[%s195 + $0x3b8] sm:$0xff] %v3632
        %3759 = vst [vmem:[%s195 + $0x3c0] sm:$0xff] %v2834
        %3760 = vst [vmem:[%s195 + $0x3c8] sm:$0xff] %v3101
        %3761 = vst [vmem:[%s195 + $0x3d0] sm:$0xff] %v3368
        %3762 = vst [vmem:[%s195 + $0x3d8] sm:$0xff] %v3635
        %3763 = vst [vmem:[%s195 + $0x3e0] sm:$0xff] %v2836
        %3764 = vst [vmem:[%s195 + $0x3e8] sm:$0xff] %v3103
        %3765 = vst [vmem:[%s195 + $0x3f0] sm:$0xff] %v3370
        %3766 = vst [vmem:[%s195 + $0x3f8] sm:$0xff] %v3637
        %s3767 = sand.u32 %s95, 1
        %s3768 = scalar_lea.sflag [#allocation4], %s3767
        %s3769 = sand.u32 %s95, 1
        %s3770 = smul.addr %s3769, 1024
        %s3771 = scalar_lea.vmem [#allocation7], %s3770
        // Predicated region
        $region41: #{tpu_custom_call.1} parent=31 // pred_check
          %p3772 = pneg %p105
        $region42: #{tpu_custom_call.1} parent=31 // pred_check_branch
          %3774 = sbr.rel (%p3772) target = $region44
        $region43: #{tpu_custom_call.1} parent=31 // pred_region
          %3776 = vsyncadd %s3768, 0
          %s3777 = smul.addr %s19, 128
          %s3778 = smul.addr %s3777, 8
          %s3779 = scalar_lea.hbm %s3, %s3778
          %s3780 = sshll.u32 %s3771, 4
          %s3781 = int_to_ptr.vmem [resolvable:$true] %s3780
          %s3782 = sshll.u32 %s3779, 4
          %s3783 = int_to_ptr.hbm [resolvable:$true] %s3782
          %3788 = dma.vmem_to_hbm [thread:$0]  %s3781, 16384, %s3783, %s3768, 512, 512, 32
        $region44: #{tpu_custom_call.1} parent=31 // pred_fallthru
          _
      $region32: #{tpu_custom_call.1} parent=5 // pred_fallthru
        _
      %p3789 = scmp.le.s32.totalorder 2, %s14
      // Predicated region
      $region45: #{tpu_custom_call.1} parent=5 // pred_check
        %p3790 = pneg %p3789
      $region46: #{tpu_custom_call.1} parent=5 // pred_check_branch
        %3792 = sbr.rel (%p3790) target = $region48
      $region47: #{tpu_custom_call.1} parent=5 // pred_region
        %s3793 = ssub.s32 %s14, 2
        // Predicated region
        $region49: #{tpu_custom_call.1} parent=47 // pred_check
          %p3794 = pneg %p111
        $region50: #{tpu_custom_call.1} parent=47 // pred_check_branch
          %3796 = sbr.rel (%p3794) target = $region52
        $region51: #{tpu_custom_call.1} parent=47 // pred_region
          %s3797 = sand.u32 %s96, 1
          %s3798 = scalar_lea.sflag [#allocation4], %s3797
          %s3799 = sand.u32 %s96, 1
          %s3800 = smul.addr %s3799, 1024
          %s3801 = scalar_lea.vmem [#allocation7], %s3800
          %3803 = dma.done %s3798, 16384
        $region52: #{tpu_custom_call.1} parent=47 // pred_fallthru
          _
      $region48: #{tpu_custom_call.1} parent=5 // pred_fallthru
        _
    $region6: #{tpu_custom_call.1} parent=1 // loop_footer
      %s18 = sadd.s32 1, %s14
    $region7: #{tpu_custom_call.1} parent=1 // loop_footer_branch
      %13 = sbr.rel target = $region3
    $region8: #{tpu_custom_call.1} parent=1 // loop_exit
      _
    %3804 = vsyncpa [#allocation3], 1
    %s3805 = scalar_lea.sflag [#allocation3], 1
    %3806 = vsyncpa %s3805, 1
    %3807 = vsyncpa [#allocation6], 1
    %3808 = vsyncpa [#allocation4], 1
    %s3809 = scalar_lea.sflag [#allocation4], 1
    %3810 = vsyncpa %s3809, 1

</llo_original>
